<compile_context>
chip_gen: v7x
topology: tpu7x:2x2x1
jax: 0.10.0
libtpu: 0.0.40
codegen_flags: <defaults>
</compile_context>

<pallas_src>
import jax
import jax.numpy as jnp
from jax.experimental import pallas as pl
from jax.experimental.pallas import tpu as pltpu

# ----------------------------- small T5 config ------------------------------
VOCAB = 128
D_MODEL = 32
N_HEADS = 4
D_KV = 8                    # per-head dim
INNER = N_HEADS * D_KV      # 32
D_FF = 64
N_LAYERS = 2
REL_BUCKETS = 32
REL_MAX_DIST = 128
EPS = 1e-6
NEG_INF = -1e9              # additive mask value (HF uses finfo.min; identical after softmax)

D_PAD = 128                 # lane-dense model width (zero-padded)
D_FF_PAD = 128              # lane-dense FFN width (zero-padded)


# ------------------------------ fused Pallas kernel -------------------------
def t5_stack_kernel(x_ref, mask_ref, bias_ref, ln_attn_ref, wqkv_ref, wo_ref,
                    ln_ff_ref, wi_ref, wo_ff_ref, final_ln_ref, o_ref):
    """One grid step = one batch element run through the full encoder stack."""
    S, DP = x_ref.shape                       # [S, D_PAD]
    H = bias_ref.shape[0]                     # heads
    n_layers = wqkv_ref.shape[0]

    def rms(x, w):
        # T5LayerNorm: no mean subtraction, no bias, fp32 accumulation.
        # Divide by the TRUE model dim (padding lanes are zero, so the sum is exact).
        var = jnp.sum(x * x, axis=-1, keepdims=True) * (1.0 / D_MODEL)
        return x * jax.lax.rsqrt(var + EPS) * w

    h = x_ref[...]                            # [S, D_PAD] f32, stays resident in vregs

    # Hoisted: shared relative-position bias + additive padding mask, once per step.
    bias_mask = bias_ref[...] + mask_ref[0]   # [H,S,S] + [1,S] -> [H,S,S]

    for l in range(n_layers):
        # ---------------- self-attention block (pre-norm + residual) ----------------
        normed = rms(h, ln_attn_ref[l])                                   # [S, D_PAD]
        normed_b = jnp.broadcast_to(normed, (3 * H, S, DP))               # [3H, S, D_PAD]
        # One batched projection for q|k|v of ALL heads (head-major weights).
        qkv = jnp.einsum('hsd,hdk->hsk', normed_b, wqkv_ref[l],
                         preferred_element_type=jnp.float32)              # [3H, S, DKV]
        q = qkv[:H]                                                       # [H, S, DKV]
        k = qkv[H:2 * H]
        v = qkv[2 * H:]

        # T5 does NOT scale scores by 1/sqrt(d_kv).
        s = jnp.einsum('hqd,hkd->hqk', q, k,
                       preferred_element_type=jnp.float32)                # [H, S, S]
        s = s + bias_mask
        s = s - jnp.max(s, axis=-1, keepdims=True)
        p = jnp.exp(s)
        p = p * pl.reciprocal(jnp.sum(p, axis=-1, keepdims=True), approx=True)

        ctx = jnp.einsum('hqk,hkd->hqd', p, v,
                         preferred_element_type=jnp.float32)              # [H, S, DKV]
        # Output projection for all heads at once, then reduce over heads.
        attn = jnp.sum(jnp.einsum('hsd,hdm->hsm', ctx, wo_ref[l],
                                  preferred_element_type=jnp.float32),
                       axis=0)                                            # [S, D_PAD]
        h = h + attn

        # ---------------- feed-forward block (pre-norm + residual) ------------------
        normed = rms(h, ln_ff_ref[l])                                     # [S, D_PAD]
        ff = jnp.dot(normed, wi_ref[l], preferred_element_type=jnp.float32)  # [S, D_FF_PAD]
        ff = jnp.maximum(ff, 0.0)                                         # ReLU
        h = h + jnp.dot(ff, wo_ff_ref[l], preferred_element_type=jnp.float32)

    # Final RMSNorm, stored lane-dense directly.
    o_ref[...] = rms(h, final_ln_ref[...])                                # [S, D_PAD]


# ------------------------------- glue (plain JAX) ----------------------------
def _relative_position_bucket(relative_position, num_buckets, max_distance):
    # Bidirectional bucketing (encoder) — mirrors HF T5Attention._relative_position_bucket.
    num_buckets = num_buckets // 2
    relative_buckets = (relative_position > 0).astype(jnp.int32) * num_buckets
    relative_position = jnp.abs(relative_position)
    max_exact = num_buckets // 2
    is_small = relative_position < max_exact
    rel_f = jnp.maximum(relative_position.astype(jnp.float32), 1.0)
    rel_if_large = max_exact + (
        jnp.log(rel_f / max_exact)
        / jnp.log(max_distance / max_exact)
        * (num_buckets - max_exact)
    ).astype(jnp.int32)
    rel_if_large = jnp.minimum(rel_if_large, num_buckets - 1)
    relative_buckets = relative_buckets + jnp.where(is_small, relative_position, rel_if_large)
    return relative_buckets


def compute_position_bias(rel_emb, seq_len):
    ctx = jnp.arange(seq_len, dtype=jnp.int32)[:, None]
    mem = jnp.arange(seq_len, dtype=jnp.int32)[None, :]
    buckets = _relative_position_bucket(mem - ctx, REL_BUCKETS, REL_MAX_DIST)  # [S, S]
    values = rel_emb[buckets]                                                  # [S, S, H]
    return jnp.transpose(values, (2, 0, 1))                                    # [H, S, S]


def init_params(key):
    std = 0.02
    keys = jax.random.split(key, 8)

    def nrm(k, shape):
        return jax.random.normal(k, shape, jnp.float32) * std

    return {
        "embed":    nrm(keys[0], (VOCAB, D_MODEL)),
        "rel_emb":  nrm(keys[1], (REL_BUCKETS, N_HEADS)),
        "ln_attn":  jnp.ones((N_LAYERS, 1, D_MODEL), jnp.float32),
        "wq":       nrm(keys[2], (N_LAYERS, D_MODEL, INNER)),
        "wk":       nrm(keys[3], (N_LAYERS, D_MODEL, INNER)),
        "wv":       nrm(keys[4], (N_LAYERS, D_MODEL, INNER)),
        "wo":       nrm(keys[5], (N_LAYERS, INNER, D_MODEL)),
        "ln_ff":    jnp.ones((N_LAYERS, 1, D_MODEL), jnp.float32),
        "wi":       nrm(keys[6], (N_LAYERS, D_MODEL, D_FF)),
        "wo_ff":    nrm(keys[7], (N_LAYERS, D_FF, D_MODEL)),
        "final_ln": jnp.ones((1, D_MODEL), jnp.float32),
    }


def _prepare_weights(params):
    """Head-major relayout + zero-padding to 128 lanes (done once, outside the kernel)."""
    dpad = D_PAD - D_MODEL
    ffpad = D_FF_PAD - D_FF

    def to_heads_in(w):   # [L, D_MODEL, INNER] -> [L, H, D_PAD, D_KV]
        w = w.reshape(N_LAYERS, D_MODEL, N_HEADS, D_KV).transpose(0, 2, 1, 3)
        return jnp.pad(w, ((0, 0), (0, 0), (0, dpad), (0, 0)))

    wqkv = jnp.concatenate([to_heads_in(params["wq"]),
                            to_heads_in(params["wk"]),
                            to_heads_in(params["wv"])], axis=1)            # [L, 3H, D_PAD, D_KV]

    wo = params["wo"].reshape(N_LAYERS, N_HEADS, D_KV, D_MODEL)
    wo = jnp.pad(wo, ((0, 0), (0, 0), (0, 0), (0, dpad)))                  # [L, H, D_KV, D_PAD]

    wi = jnp.pad(params["wi"], ((0, 0), (0, dpad), (0, ffpad)))            # [L, D_PAD, D_FF_PAD]
    wo_ff = jnp.pad(params["wo_ff"], ((0, 0), (0, ffpad), (0, dpad)))      # [L, D_FF_PAD, D_PAD]
    ln_attn = jnp.pad(params["ln_attn"], ((0, 0), (0, 0), (0, dpad)))      # [L, 1, D_PAD]
    ln_ff = jnp.pad(params["ln_ff"], ((0, 0), (0, 0), (0, dpad)))          # [L, 1, D_PAD]
    final_ln = jnp.pad(params["final_ln"], ((0, 0), (0, dpad)))            # [1, D_PAD]
    return wqkv, wo, wi, wo_ff, ln_attn, ln_ff, final_ln


@jax.jit
def t5_encoder(params, input_ids, attention_mask):
    """Returns last_hidden_state == T5Encoder.forward(input_ids, attention_mask)."""
    B, S = input_ids.shape

    # Glue: embedding gather (padded to 128 lanes), shared rel-pos bias, padding mask.
    hidden = params["embed"][input_ids].reshape(B * S, D_MODEL)
    hidden = jnp.pad(hidden, ((0, 0), (0, D_PAD - D_MODEL)))               # [B*S, D_PAD]
    mask_add = ((1.0 - attention_mask.astype(jnp.float32)) * NEG_INF).reshape(B, 1, S)
    pos_bias = compute_position_bias(params["rel_emb"], S)                 # [H, S, S]
    wqkv, wo, wi, wo_ff, ln_attn, ln_ff, final_ln = _prepare_weights(params)

    out = pl.pallas_call(
        t5_stack_kernel,
        out_shape=jax.ShapeDtypeStruct((B * S, D_PAD), jnp.float32),
        grid=(B,),
        in_specs=[
            pl.BlockSpec((S, D_PAD), lambda b: (b, 0)),                               # hidden rows
            pl.BlockSpec((1, 1, S), lambda b: (b, 0, 0)),                             # additive mask
            pl.BlockSpec((N_HEADS, S, S), lambda b: (0, 0, 0)),                       # position bias
            pl.BlockSpec((N_LAYERS, 1, D_PAD), lambda b: (0, 0, 0)),                  # ln_attn
            pl.BlockSpec((N_LAYERS, 3 * N_HEADS, D_PAD, D_KV), lambda b: (0, 0, 0, 0)),  # wqkv
            pl.BlockSpec((N_LAYERS, N_HEADS, D_KV, D_PAD), lambda b: (0, 0, 0, 0)),   # wo
            pl.BlockSpec((N_LAYERS, 1, D_PAD), lambda b: (0, 0, 0)),                  # ln_ff
            pl.BlockSpec((N_LAYERS, D_PAD, D_FF_PAD), lambda b: (0, 0, 0)),           # wi
            pl.BlockSpec((N_LAYERS, D_FF_PAD, D_PAD), lambda b: (0, 0, 0)),           # wo_ff
            pl.BlockSpec((1, D_PAD), lambda b: (0, 0)),                               # final_ln
        ],
        out_specs=pl.BlockSpec((S, D_PAD), lambda b: (b, 0)),
        compiler_params=pltpu.CompilerParams(
            dimension_semantics=("parallel",),
            vmem_limit_bytes=32 * 1024 * 1024,
        ),
    )(hidden, mask_add, pos_bias,
      ln_attn, wqkv, wo, ln_ff, wi, wo_ff, final_ln)

    return out[:, :D_MODEL].reshape(B, S, D_MODEL)


# ------------------------------------ main ------------------------------------
if __name__ == "__main__":
    B, S = 2, 8
    key = jax.random.PRNGKey(0)
    k_params, k_ids = jax.random.split(key)

    params = init_params(k_params)
    input_ids = jax.random.randint(k_ids, (B, S), 0, VOCAB, dtype=jnp.int32)
    attention_mask = jnp.ones((B, S), dtype=jnp.int32)
    attention_mask = attention_mask.at[1, S - 2:].set(0)   # pad last 2 tokens of example 1

    out = t5_encoder(params, input_ids, attention_mask)
    jax.block_until_ready(out)
    assert out.shape == (B, S, D_MODEL) and out.dtype == jnp.float32
    assert bool(jnp.all(jnp.isfinite(out)))
    print("KERNEL_OK")
</pallas_src>

<mosaic_0001>
module attributes {stable_mosaic.version = 11 : i64} {
  func.func @t5_stack_kernel(%arg0: i32, %arg1: memref<8x128xf32, #tpu.memory_space<vmem>>, %arg2: memref<1x1x8xf32, #tpu.memory_space<vmem>>, %arg3: memref<4x8x8xf32, #tpu.memory_space<vmem>>, %arg4: memref<2x1x128xf32, #tpu.memory_space<vmem>>, %arg5: memref<2x12x128x8xf32, #tpu.memory_space<vmem>>, %arg6: memref<2x4x8x128xf32, #tpu.memory_space<vmem>>, %arg7: memref<2x1x128xf32, #tpu.memory_space<vmem>>, %arg8: memref<2x128x128xf32, #tpu.memory_space<vmem>>, %arg9: memref<2x128x128xf32, #tpu.memory_space<vmem>>, %arg10: memref<1x128xf32, #tpu.memory_space<vmem>>, %arg11: memref<8x128xf32, #tpu.memory_space<vmem>>) attributes {dimension_semantics = [#tpu.dimension_semantics<parallel>], iteration_bounds = array<i64: 2>, scalar_prefetch = 0 : i64, scratch_operands = 0 : i64, tpu.core_type = #tpu.core_type<tc>, window_params = [{transform_indices = @transform_0, window_bounds = array<i64: 8, 128>}, {transform_indices = @transform_1, window_bounds = array<i64: 1, 1, 8>}, {pipeline_mode = #tpu.pipeline_mode<synchronous>, transform_indices = @transform_2, window_bounds = array<i64: 4, 8, 8>}, {pipeline_mode = #tpu.pipeline_mode<synchronous>, transform_indices = @transform_3, window_bounds = array<i64: 2, 1, 128>}, {pipeline_mode = #tpu.pipeline_mode<synchronous>, transform_indices = @transform_4, window_bounds = array<i64: 2, 12, 128, 8>}, {pipeline_mode = #tpu.pipeline_mode<synchronous>, transform_indices = @transform_5, window_bounds = array<i64: 2, 4, 8, 128>}, {pipeline_mode = #tpu.pipeline_mode<synchronous>, transform_indices = @transform_6, window_bounds = array<i64: 2, 1, 128>}, {pipeline_mode = #tpu.pipeline_mode<synchronous>, transform_indices = @transform_7, window_bounds = array<i64: 2, 128, 128>}, {pipeline_mode = #tpu.pipeline_mode<synchronous>, transform_indices = @transform_8, window_bounds = array<i64: 2, 128, 128>}, {pipeline_mode = #tpu.pipeline_mode<synchronous>, transform_indices = @transform_9, window_bounds = array<i64: 1, 128>}, {transform_indices = @transform_10, window_bounds = array<i64: 8, 128>}]} {
    %c0 = arith.constant 0 : index
    %c0_0 = arith.constant 0 : index
    %0 = vector.load %arg1[%c0, %c0_0] : memref<8x128xf32, #tpu.memory_space<vmem>>, vector<8x128xf32>
    %c0_1 = arith.constant 0 : index
    %c0_2 = arith.constant 0 : index
    %c0_3 = arith.constant 0 : index
    %1 = vector.load %arg3[%c0_1, %c0_2, %c0_3] : memref<4x8x8xf32, #tpu.memory_space<vmem>>, vector<4x8x8xf32>
    %c0_4 = arith.constant 0 : index
    %c0_5 = arith.constant 0 : index
    %c0_6 = arith.constant 0 : index
    %2 = vector.load %arg2[%c0_4, %c0_5, %c0_6] : memref<1x1x8xf32, #tpu.memory_space<vmem>>, vector<1x1x8xf32>
    %3 = vector.shape_cast %2 : vector<1x1x8xf32> to vector<1x8xf32>
    %4 = vector.shape_cast %3 : vector<1x8xf32> to vector<1x1x8xf32>
    %5 = vector.broadcast %4 : vector<1x1x8xf32> to vector<4x8x8xf32>
    %6 = arith.addf %1, %5 : vector<4x8x8xf32>
    %c0_7 = arith.constant 0 : index
    %c0_8 = arith.constant 0 : index
    %c0_9 = arith.constant 0 : index
    %7 = vector.load %arg4[%c0_7, %c0_8, %c0_9] : memref<2x1x128xf32, #tpu.memory_space<vmem>>, vector<1x1x128xf32>
    %8 = vector.shape_cast %7 : vector<1x1x128xf32> to vector<1x128xf32>
    %9 = arith.mulf %0, %0 : vector<8x128xf32>
    %cst = arith.constant dense<0.000000e+00> : vector<8xf32>
    %10 = vector.multi_reduction <add>, %9, %cst [1] : vector<8x128xf32> to vector<8xf32>
    %11 = vector.shape_cast %10 : vector<8xf32> to vector<8x1xf32>
    %cst_10 = arith.constant 3.125000e-02 : f32
    %12 = vector.broadcast %cst_10 : f32 to vector<8x1xf32>
    %13 = arith.mulf %11, %12 : vector<8x1xf32>
    %cst_11 = arith.constant 9.99999997E-7 : f32
    %14 = vector.broadcast %cst_11 : f32 to vector<8x1xf32>
    %15 = arith.addf %13, %14 : vector<8x1xf32>
    %16 = math.rsqrt %15 : vector<8x1xf32>
    %17 = vector.broadcast %16 : vector<8x1xf32> to vector<8x128xf32>
    %18 = arith.mulf %0, %17 : vector<8x128xf32>
    %19 = vector.broadcast %8 : vector<1x128xf32> to vector<8x128xf32>
    %20 = arith.mulf %18, %19 : vector<8x128xf32>
    %21 = vector.shape_cast %20 : vector<8x128xf32> to vector<1x8x128xf32>
    %22 = vector.broadcast %21 : vector<1x8x128xf32> to vector<12x8x128xf32>
    %c0_12 = arith.constant 0 : index
    %c0_13 = arith.constant 0 : index
    %c0_14 = arith.constant 0 : index
    %c0_15 = arith.constant 0 : index
    %23 = vector.load %arg5[%c0_12, %c0_13, %c0_14, %c0_15] : memref<2x12x128x8xf32, #tpu.memory_space<vmem>>, vector<1x12x128x8xf32>
    %24 = vector.shape_cast %23 : vector<1x12x128x8xf32> to vector<12x128x8xf32>
    "tpu.trace_start"() <{level = 10 : i32, message = "hsd,hdk->hsk"}> : () -> ()
    %cst_16 = arith.constant dense<0.000000e+00> : vector<12x8x8xf32>
    %25 = tpu.matmul %22, %24, %cst_16 {dimension_numbers = #tpu.dot_dimension_numbers<[2], [1], [1], [2], [0, 0, 0, 1, 1, 2], [0], [0]>} : vector<12x8x128xf32>, vector<12x128x8xf32>, vector<12x8x8xf32> -> vector<12x8x8xf32>
    "tpu.trace_stop"() : () -> ()
    %26 = vector.extract_strided_slice %25 {offsets = [0, 0, 0], sizes = [4, 8, 8], strides = [1, 1, 1]} : vector<12x8x8xf32> to vector<4x8x8xf32>
    %27 = vector.extract_strided_slice %25 {offsets = [4, 0, 0], sizes = [4, 8, 8], strides = [1, 1, 1]} : vector<12x8x8xf32> to vector<4x8x8xf32>
    %28 = vector.extract_strided_slice %25 {offsets = [8, 0, 0], sizes = [4, 8, 8], strides = [1, 1, 1]} : vector<12x8x8xf32> to vector<4x8x8xf32>
    "tpu.trace_start"() <{level = 10 : i32, message = "hqd,hkd->hqk"}> : () -> ()
    %cst_17 = arith.constant dense<0.000000e+00> : vector<4x8x8xf32>
    %29 = tpu.matmul %26, %27, %cst_17 {dimension_numbers = #tpu.dot_dimension_numbers<[2], [2], [1], [1], [0, 0, 0, 1, 1, 1], [0], [0]>} : vector<4x8x8xf32>, vector<4x8x8xf32>, vector<4x8x8xf32> -> vector<4x8x8xf32>
    "tpu.trace_stop"() : () -> ()
    %30 = arith.addf %29, %6 : vector<4x8x8xf32>
    %cst_18 = arith.constant dense<0xFF800000> : vector<4x8xf32>
    %31 = vector.multi_reduction <maximumf>, %30, %cst_18 [2] : vector<4x8x8xf32> to vector<4x8xf32>
    %32 = vector.shape_cast %31 : vector<4x8xf32> to vector<4x8x1xf32>
    %33 = vector.broadcast %32 : vector<4x8x1xf32> to vector<4x8x8xf32>
    %34 = arith.subf %30, %33 : vector<4x8x8xf32>
    %35 = math.exp %34 : vector<4x8x8xf32>
    %cst_19 = arith.constant dense<0.000000e+00> : vector<4x8xf32>
    %36 = vector.multi_reduction <add>, %35, %cst_19 [2] : vector<4x8x8xf32> to vector<4x8xf32>
    %37 = vector.shape_cast %36 : vector<4x8xf32> to vector<4x8x1xf32>
    %38 = tpu.reciprocal %37 {approx = true} : vector<4x8x1xf32> -> vector<4x8x1xf32>
    %39 = vector.broadcast %38 : vector<4x8x1xf32> to vector<4x8x8xf32>
    %40 = arith.mulf %35, %39 : vector<4x8x8xf32>
    "tpu.trace_start"() <{level = 10 : i32, message = "hqk,hkd->hqd"}> : () -> ()
    %cst_20 = arith.constant dense<0.000000e+00> : vector<4x8x8xf32>
    %41 = tpu.matmul %40, %28, %cst_20 {dimension_numbers = #tpu.dot_dimension_numbers<[2], [1], [1], [2], [0, 0, 0, 1, 1, 2], [0], [0]>} : vector<4x8x8xf32>, vector<4x8x8xf32>, vector<4x8x8xf32> -> vector<4x8x8xf32>
    "tpu.trace_stop"() : () -> ()
    %c0_21 = arith.constant 0 : index
    %c0_22 = arith.constant 0 : index
    %c0_23 = arith.constant 0 : index
    %c0_24 = arith.constant 0 : index
    %42 = vector.load %arg6[%c0_21, %c0_22, %c0_23, %c0_24] : memref<2x4x8x128xf32, #tpu.memory_space<vmem>>, vector<1x4x8x128xf32>
    %43 = vector.shape_cast %42 : vector<1x4x8x128xf32> to vector<4x8x128xf32>
    "tpu.trace_start"() <{level = 10 : i32, message = "hsd,hdm->hsm"}> : () -> ()
    %cst_25 = arith.constant dense<0.000000e+00> : vector<4x8x128xf32>
    %44 = tpu.matmul %41, %43, %cst_25 {dimension_numbers = #tpu.dot_dimension_numbers<[2], [1], [1], [2], [0, 0, 0, 1, 1, 2], [0], [0]>} : vector<4x8x8xf32>, vector<4x8x128xf32>, vector<4x8x128xf32> -> vector<4x8x128xf32>
    "tpu.trace_stop"() : () -> ()
    %cst_26 = arith.constant dense<0.000000e+00> : vector<8x128xf32>
    %45 = vector.multi_reduction <add>, %44, %cst_26 [0] : vector<4x8x128xf32> to vector<8x128xf32>
    %46 = arith.addf %0, %45 : vector<8x128xf32>
    %c0_27 = arith.constant 0 : index
    %c0_28 = arith.constant 0 : index
    %c0_29 = arith.constant 0 : index
    %47 = vector.load %arg7[%c0_27, %c0_28, %c0_29] : memref<2x1x128xf32, #tpu.memory_space<vmem>>, vector<1x1x128xf32>
    %48 = vector.shape_cast %47 : vector<1x1x128xf32> to vector<1x128xf32>
    %49 = arith.mulf %46, %46 : vector<8x128xf32>
    %cst_30 = arith.constant dense<0.000000e+00> : vector<8xf32>
    %50 = vector.multi_reduction <add>, %49, %cst_30 [1] : vector<8x128xf32> to vector<8xf32>
    %51 = vector.shape_cast %50 : vector<8xf32> to vector<8x1xf32>
    %cst_31 = arith.constant 3.125000e-02 : f32
    %52 = vector.broadcast %cst_31 : f32 to vector<8x1xf32>
    %53 = arith.mulf %51, %52 : vector<8x1xf32>
    %cst_32 = arith.constant 9.99999997E-7 : f32
    %54 = vector.broadcast %cst_32 : f32 to vector<8x1xf32>
    %55 = arith.addf %53, %54 : vector<8x1xf32>
    %56 = math.rsqrt %55 : vector<8x1xf32>
    %57 = vector.broadcast %56 : vector<8x1xf32> to vector<8x128xf32>
    %58 = arith.mulf %46, %57 : vector<8x128xf32>
    %59 = vector.broadcast %48 : vector<1x128xf32> to vector<8x128xf32>
    %60 = arith.mulf %58, %59 : vector<8x128xf32>
    %c0_33 = arith.constant 0 : index
    %c0_34 = arith.constant 0 : index
    %c0_35 = arith.constant 0 : index
    %61 = vector.load %arg8[%c0_33, %c0_34, %c0_35] : memref<2x128x128xf32, #tpu.memory_space<vmem>>, vector<1x128x128xf32>
    %62 = vector.shape_cast %61 : vector<1x128x128xf32> to vector<128x128xf32>
    %cst_36 = arith.constant dense<0.000000e+00> : vector<8x128xf32>
    %63 = tpu.matmul %60, %62, %cst_36 {dimension_numbers = #tpu.dot_dimension_numbers<[1], [0], [0], [1], [0, 0, 1, 1], [], []>} : vector<8x128xf32>, vector<128x128xf32>, vector<8x128xf32> -> vector<8x128xf32>
    %cst_37 = arith.constant 0.000000e+00 : f32
    %64 = vector.broadcast %cst_37 : f32 to vector<8x128xf32>
    %65 = arith.maximumf %63, %64 : vector<8x128xf32>
    %c0_38 = arith.constant 0 : index
    %c0_39 = arith.constant 0 : index
    %c0_40 = arith.constant 0 : index
    %66 = vector.load %arg9[%c0_38, %c0_39, %c0_40] : memref<2x128x128xf32, #tpu.memory_space<vmem>>, vector<1x128x128xf32>
    %67 = vector.shape_cast %66 : vector<1x128x128xf32> to vector<128x128xf32>
    %cst_41 = arith.constant dense<0.000000e+00> : vector<8x128xf32>
    %68 = tpu.matmul %65, %67, %cst_41 {dimension_numbers = #tpu.dot_dimension_numbers<[1], [0], [0], [1], [0, 0, 1, 1], [], []>} : vector<8x128xf32>, vector<128x128xf32>, vector<8x128xf32> -> vector<8x128xf32>
    %69 = arith.addf %46, %68 : vector<8x128xf32>
    %c1 = arith.constant 1 : index
    %c0_42 = arith.constant 0 : index
    %c0_43 = arith.constant 0 : index
    %70 = vector.load %arg4[%c1, %c0_42, %c0_43] : memref<2x1x128xf32, #tpu.memory_space<vmem>>, vector<1x1x128xf32>
    %71 = vector.shape_cast %70 : vector<1x1x128xf32> to vector<1x128xf32>
    %72 = arith.mulf %69, %69 : vector<8x128xf32>
    %cst_44 = arith.constant dense<0.000000e+00> : vector<8xf32>
    %73 = vector.multi_reduction <add>, %72, %cst_44 [1] : vector<8x128xf32> to vector<8xf32>
    %74 = vector.shape_cast %73 : vector<8xf32> to vector<8x1xf32>
    %cst_45 = arith.constant 3.125000e-02 : f32
    %75 = vector.broadcast %cst_45 : f32 to vector<8x1xf32>
    %76 = arith.mulf %74, %75 : vector<8x1xf32>
    %cst_46 = arith.constant 9.99999997E-7 : f32
    %77 = vector.broadcast %cst_46 : f32 to vector<8x1xf32>
    %78 = arith.addf %76, %77 : vector<8x1xf32>
    %79 = math.rsqrt %78 : vector<8x1xf32>
    %80 = vector.broadcast %79 : vector<8x1xf32> to vector<8x128xf32>
    %81 = arith.mulf %69, %80 : vector<8x128xf32>
    %82 = vector.broadcast %71 : vector<1x128xf32> to vector<8x128xf32>
    %83 = arith.mulf %81, %82 : vector<8x128xf32>
    %84 = vector.shape_cast %83 : vector<8x128xf32> to vector<1x8x128xf32>
    %85 = vector.broadcast %84 : vector<1x8x128xf32> to vector<12x8x128xf32>
    %c1_47 = arith.constant 1 : index
    %c0_48 = arith.constant 0 : index
    %c0_49 = arith.constant 0 : index
    %c0_50 = arith.constant 0 : index
    %86 = vector.load %arg5[%c1_47, %c0_48, %c0_49, %c0_50] : memref<2x12x128x8xf32, #tpu.memory_space<vmem>>, vector<1x12x128x8xf32>
    %87 = vector.shape_cast %86 : vector<1x12x128x8xf32> to vector<12x128x8xf32>
    "tpu.trace_start"() <{level = 10 : i32, message = "hsd,hdk->hsk"}> : () -> ()
    %cst_51 = arith.constant dense<0.000000e+00> : vector<12x8x8xf32>
    %88 = tpu.matmul %85, %87, %cst_51 {dimension_numbers = #tpu.dot_dimension_numbers<[2], [1], [1], [2], [0, 0, 0, 1, 1, 2], [0], [0]>} : vector<12x8x128xf32>, vector<12x128x8xf32>, vector<12x8x8xf32> -> vector<12x8x8xf32>
    "tpu.trace_stop"() : () -> ()
    %89 = vector.extract_strided_slice %88 {offsets = [0, 0, 0], sizes = [4, 8, 8], strides = [1, 1, 1]} : vector<12x8x8xf32> to vector<4x8x8xf32>
    %90 = vector.extract_strided_slice %88 {offsets = [4, 0, 0], sizes = [4, 8, 8], strides = [1, 1, 1]} : vector<12x8x8xf32> to vector<4x8x8xf32>
    %91 = vector.extract_strided_slice %88 {offsets = [8, 0, 0], sizes = [4, 8, 8], strides = [1, 1, 1]} : vector<12x8x8xf32> to vector<4x8x8xf32>
    "tpu.trace_start"() <{level = 10 : i32, message = "hqd,hkd->hqk"}> : () -> ()
    %cst_52 = arith.constant dense<0.000000e+00> : vector<4x8x8xf32>
    %92 = tpu.matmul %89, %90, %cst_52 {dimension_numbers = #tpu.dot_dimension_numbers<[2], [2], [1], [1], [0, 0, 0, 1, 1, 1], [0], [0]>} : vector<4x8x8xf32>, vector<4x8x8xf32>, vector<4x8x8xf32> -> vector<4x8x8xf32>
    "tpu.trace_stop"() : () -> ()
    %93 = arith.addf %92, %6 : vector<4x8x8xf32>
    %cst_53 = arith.constant dense<0xFF800000> : vector<4x8xf32>
    %94 = vector.multi_reduction <maximumf>, %93, %cst_53 [2] : vector<4x8x8xf32> to vector<4x8xf32>
    %95 = vector.shape_cast %94 : vector<4x8xf32> to vector<4x8x1xf32>
    %96 = vector.broadcast %95 : vector<4x8x1xf32> to vector<4x8x8xf32>
    %97 = arith.subf %93, %96 : vector<4x8x8xf32>
    %98 = math.exp %97 : vector<4x8x8xf32>
    %cst_54 = arith.constant dense<0.000000e+00> : vector<4x8xf32>
    %99 = vector.multi_reduction <add>, %98, %cst_54 [2] : vector<4x8x8xf32> to vector<4x8xf32>
    %100 = vector.shape_cast %99 : vector<4x8xf32> to vector<4x8x1xf32>
    %101 = tpu.reciprocal %100 {approx = true} : vector<4x8x1xf32> -> vector<4x8x1xf32>
    %102 = vector.broadcast %101 : vector<4x8x1xf32> to vector<4x8x8xf32>
    %103 = arith.mulf %98, %102 : vector<4x8x8xf32>
    "tpu.trace_start"() <{level = 10 : i32, message = "hqk,hkd->hqd"}> : () -> ()
    %cst_55 = arith.constant dense<0.000000e+00> : vector<4x8x8xf32>
    %104 = tpu.matmul %103, %91, %cst_55 {dimension_numbers = #tpu.dot_dimension_numbers<[2], [1], [1], [2], [0, 0, 0, 1, 1, 2], [0], [0]>} : vector<4x8x8xf32>, vector<4x8x8xf32>, vector<4x8x8xf32> -> vector<4x8x8xf32>
    "tpu.trace_stop"() : () -> ()
    %c1_56 = arith.constant 1 : index
    %c0_57 = arith.constant 0 : index
    %c0_58 = arith.constant 0 : index
    %c0_59 = arith.constant 0 : index
    %105 = vector.load %arg6[%c1_56, %c0_57, %c0_58, %c0_59] : memref<2x4x8x128xf32, #tpu.memory_space<vmem>>, vector<1x4x8x128xf32>
    %106 = vector.shape_cast %105 : vector<1x4x8x128xf32> to vector<4x8x128xf32>
    "tpu.trace_start"() <{level = 10 : i32, message = "hsd,hdm->hsm"}> : () -> ()
    %cst_60 = arith.constant dense<0.000000e+00> : vector<4x8x128xf32>
    %107 = tpu.matmul %104, %106, %cst_60 {dimension_numbers = #tpu.dot_dimension_numbers<[2], [1], [1], [2], [0, 0, 0, 1, 1, 2], [0], [0]>} : vector<4x8x8xf32>, vector<4x8x128xf32>, vector<4x8x128xf32> -> vector<4x8x128xf32>
    "tpu.trace_stop"() : () -> ()
    %cst_61 = arith.constant dense<0.000000e+00> : vector<8x128xf32>
    %108 = vector.multi_reduction <add>, %107, %cst_61 [0] : vector<4x8x128xf32> to vector<8x128xf32>
    %109 = arith.addf %69, %108 : vector<8x128xf32>
    %c1_62 = arith.constant 1 : index
    %c0_63 = arith.constant 0 : index
    %c0_64 = arith.constant 0 : index
    %110 = vector.load %arg7[%c1_62, %c0_63, %c0_64] : memref<2x1x128xf32, #tpu.memory_space<vmem>>, vector<1x1x128xf32>
    %111 = vector.shape_cast %110 : vector<1x1x128xf32> to vector<1x128xf32>
    %112 = arith.mulf %109, %109 : vector<8x128xf32>
    %cst_65 = arith.constant dense<0.000000e+00> : vector<8xf32>
    %113 = vector.multi_reduction <add>, %112, %cst_65 [1] : vector<8x128xf32> to vector<8xf32>
    %114 = vector.shape_cast %113 : vector<8xf32> to vector<8x1xf32>
    %cst_66 = arith.constant 3.125000e-02 : f32
    %115 = vector.broadcast %cst_66 : f32 to vector<8x1xf32>
    %116 = arith.mulf %114, %115 : vector<8x1xf32>
    %cst_67 = arith.constant 9.99999997E-7 : f32
    %117 = vector.broadcast %cst_67 : f32 to vector<8x1xf32>
    %118 = arith.addf %116, %117 : vector<8x1xf32>
    %119 = math.rsqrt %118 : vector<8x1xf32>
    %120 = vector.broadcast %119 : vector<8x1xf32> to vector<8x128xf32>
    %121 = arith.mulf %109, %120 : vector<8x128xf32>
    %122 = vector.broadcast %111 : vector<1x128xf32> to vector<8x128xf32>
    %123 = arith.mulf %121, %122 : vector<8x128xf32>
    %c1_68 = arith.constant 1 : index
    %c0_69 = arith.constant 0 : index
    %c0_70 = arith.constant 0 : index
    %124 = vector.load %arg8[%c1_68, %c0_69, %c0_70] : memref<2x128x128xf32, #tpu.memory_space<vmem>>, vector<1x128x128xf32>
    %125 = vector.shape_cast %124 : vector<1x128x128xf32> to vector<128x128xf32>
    %cst_71 = arith.constant dense<0.000000e+00> : vector<8x128xf32>
    %126 = tpu.matmul %123, %125, %cst_71 {dimension_numbers = #tpu.dot_dimension_numbers<[1], [0], [0], [1], [0, 0, 1, 1], [], []>} : vector<8x128xf32>, vector<128x128xf32>, vector<8x128xf32> -> vector<8x128xf32>
    %cst_72 = arith.constant 0.000000e+00 : f32
    %127 = vector.broadcast %cst_72 : f32 to vector<8x128xf32>
    %128 = arith.maximumf %126, %127 : vector<8x128xf32>
    %c1_73 = arith.constant 1 : index
    %c0_74 = arith.constant 0 : index
    %c0_75 = arith.constant 0 : index
    %129 = vector.load %arg9[%c1_73, %c0_74, %c0_75] : memref<2x128x128xf32, #tpu.memory_space<vmem>>, vector<1x128x128xf32>
    %130 = vector.shape_cast %129 : vector<1x128x128xf32> to vector<128x128xf32>
    %cst_76 = arith.constant dense<0.000000e+00> : vector<8x128xf32>
    %131 = tpu.matmul %128, %130, %cst_76 {dimension_numbers = #tpu.dot_dimension_numbers<[1], [0], [0], [1], [0, 0, 1, 1], [], []>} : vector<8x128xf32>, vector<128x128xf32>, vector<8x128xf32> -> vector<8x128xf32>
    %132 = arith.addf %109, %131 : vector<8x128xf32>
    %c0_77 = arith.constant 0 : index
    %c0_78 = arith.constant 0 : index
    %133 = vector.load %arg10[%c0_77, %c0_78] : memref<1x128xf32, #tpu.memory_space<vmem>>, vector<1x128xf32>
    %134 = arith.mulf %132, %132 : vector<8x128xf32>
    %cst_79 = arith.constant dense<0.000000e+00> : vector<8xf32>
    %135 = vector.multi_reduction <add>, %134, %cst_79 [1] : vector<8x128xf32> to vector<8xf32>
    %136 = vector.shape_cast %135 : vector<8xf32> to vector<8x1xf32>
    %cst_80 = arith.constant 3.125000e-02 : f32
    %137 = vector.broadcast %cst_80 : f32 to vector<8x1xf32>
    %138 = arith.mulf %136, %137 : vector<8x1xf32>
    %cst_81 = arith.constant 9.99999997E-7 : f32
    %139 = vector.broadcast %cst_81 : f32 to vector<8x1xf32>
    %140 = arith.addf %138, %139 : vector<8x1xf32>
    %141 = math.rsqrt %140 : vector<8x1xf32>
    %142 = vector.broadcast %141 : vector<8x1xf32> to vector<8x128xf32>
    %143 = arith.mulf %132, %142 : vector<8x128xf32>
    %144 = vector.broadcast %133 : vector<1x128xf32> to vector<8x128xf32>
    %145 = arith.mulf %143, %144 : vector<8x128xf32>
    %c0_82 = arith.constant 0 : index
    %c0_83 = arith.constant 0 : index
    %146 = vector.load %arg11[%c0_82, %c0_83] : memref<8x128xf32, #tpu.memory_space<vmem>>, vector<8x128xf32>
    tpu.vector_store %arg11[%c0_82, %c0_83], %145 {strides = array<i32>} : memref<8x128xf32, #tpu.memory_space<vmem>>, vector<8x128xf32>,
    return
  }
  func.func @transform_0(%arg0: i32) -> (i32, i32) {
    %c0_i32 = arith.constant 0 : i32
    %c0_i32_0 = arith.constant 0 : i32
    return %arg0, %c0_i32 : i32, i32
  }
  func.func @transform_1(%arg0: i32) -> (i32, i32, i32) {
    %c0_i32 = arith.constant 0 : i32
    %c0_i32_0 = arith.constant 0 : i32
    %c0_i32_1 = arith.constant 0 : i32
    return %arg0, %c0_i32, %c0_i32_0 : i32, i32, i32
  }
  func.func @transform_2(%arg0: i32) -> (i32, i32, i32) {
    %c0_i32 = arith.constant 0 : i32
    %c0_i32_0 = arith.constant 0 : i32
    %c0_i32_1 = arith.constant 0 : i32
    %c0_i32_2 = arith.constant 0 : i32
    return %c0_i32, %c0_i32_0, %c0_i32_1 : i32, i32, i32
  }
  func.func @transform_3(%arg0: i32) -> (i32, i32, i32) {
    %c0_i32 = arith.constant 0 : i32
    %c0_i32_0 = arith.constant 0 : i32
    %c0_i32_1 = arith.constant 0 : i32
    %c0_i32_2 = arith.constant 0 : i32
    return %c0_i32, %c0_i32_0, %c0_i32_1 : i32, i32, i32
  }
  func.func @transform_4(%arg0: i32) -> (i32, i32, i32, i32) {
    %c0_i32 = arith.constant 0 : i32
    %c0_i32_0 = arith.constant 0 : i32
    %c0_i32_1 = arith.constant 0 : i32
    %c0_i32_2 = arith.constant 0 : i32
    %c0_i32_3 = arith.constant 0 : i32
    return %c0_i32, %c0_i32_0, %c0_i32_1, %c0_i32_2 : i32, i32, i32, i32
  }
  func.func @transform_5(%arg0: i32) -> (i32, i32, i32, i32) {
    %c0_i32 = arith.constant 0 : i32
    %c0_i32_0 = arith.constant 0 : i32
    %c0_i32_1 = arith.constant 0 : i32
    %c0_i32_2 = arith.constant 0 : i32
    %c0_i32_3 = arith.constant 0 : i32
    return %c0_i32, %c0_i32_0, %c0_i32_1, %c0_i32_2 : i32, i32, i32, i32
  }
  func.func @transform_6(%arg0: i32) -> (i32, i32, i32) {
    %c0_i32 = arith.constant 0 : i32
    %c0_i32_0 = arith.constant 0 : i32
    %c0_i32_1 = arith.constant 0 : i32
    %c0_i32_2 = arith.constant 0 : i32
    return %c0_i32, %c0_i32_0, %c0_i32_1 : i32, i32, i32
  }
  func.func @transform_7(%arg0: i32) -> (i32, i32, i32) {
    %c0_i32 = arith.constant 0 : i32
    %c0_i32_0 = arith.constant 0 : i32
    %c0_i32_1 = arith.constant 0 : i32
    %c0_i32_2 = arith.constant 0 : i32
    return %c0_i32, %c0_i32_0, %c0_i32_1 : i32, i32, i32
  }
  func.func @transform_8(%arg0: i32) -> (i32, i32, i32) {
    %c0_i32 = arith.constant 0 : i32
    %c0_i32_0 = arith.constant 0 : i32
    %c0_i32_1 = arith.constant 0 : i32
    %c0_i32_2 = arith.constant 0 : i32
    return %c0_i32, %c0_i32_0, %c0_i32_1 : i32, i32, i32
  }
  func.func @transform_9(%arg0: i32) -> (i32, i32) {
    %c0_i32 = arith.constant 0 : i32
    %c0_i32_0 = arith.constant 0 : i32
    %c0_i32_1 = arith.constant 0 : i32
    return %c0_i32, %c0_i32_0 : i32, i32
  }
  func.func @transform_10(%arg0: i32) -> (i32, i32) {
    %c0_i32 = arith.constant 0 : i32
    %c0_i32_0 = arith.constant 0 : i32
    return %arg0, %c0_i32 : i32, i32
  }
}

</mosaic_0001>

<llo_original>
// kernel: t5_encoder.1
$region0: #{t5_encoder.1}
  #allocation0 [shape = 'u32[]', space=smem, size = 0x4, offset = 0x4, fixed_abs, tag = 'smem constant byte address 0x4 - core index']
  #allocation1 [shape = 'u32[144,128]{1,0:T(1,128)}', space=vmem, size = 0x12000, scoped, tag = 'internal scratch']
  %s0 = inlined_call_operand.vmem [shape: f32[16,128], index: 0, kind: input, shape index: {}]
  %s1 = inlined_call_operand.vmem [shape: f32[2,1,8], index: 1, kind: input, shape index: {}]
  %s2 = inlined_call_operand.vmem [shape: f32[4,8,8], index: 2, kind: input, shape index: {}]
  %s3 = inlined_call_operand.vmem [shape: f32[2,1,128], index: 3, kind: input, shape index: {}]
  %s4 = inlined_call_operand.vmem [shape: f32[2,12,128,8], index: 4, kind: input, shape index: {}]
  %s5 = inlined_call_operand.vmem [shape: f32[2,4,8,128], index: 5, kind: input, shape index: {}]
  %s6 = inlined_call_operand.vmem [shape: f32[2,1,128], index: 6, kind: input, shape index: {}]
  %s7 = inlined_call_operand.vmem [shape: f32[2,128,128], index: 7, kind: input, shape index: {}]
  %s8 = inlined_call_operand.vmem [shape: f32[2,128,128], index: 8, kind: input, shape index: {}]
  %s9 = inlined_call_operand.vmem [shape: f32[1,128], index: 9, kind: input, shape index: {}]
  %s10 = inlined_call_operand.vmem [shape: f32[16,128], index: 10, kind: output, shape index: {}]
  %s11 = sld [smem:[#allocation0]]
  $region73: #{t5_encoder.1} parent=0
    _
  %s13 = ssub.s32 1, %s11
  %s14 = scalar_select 0, %s13, %s11
  loop: start=0, step=1, limit=4
  $region2: #{t5_encoder.1} parent=0 // loop_pre_header
    _
  $region3: #{t5_encoder.1} parent=0 // loop_header
    %s16 = sphi 0, %s20
    %p17 = scmp.ge.s32.totalorder %s16, 4
    %s26 = sphi 0, %s28
    %s29 = sphi 0, %s26
    %s30 = sphi 0, %s29
    %s46 = sphi 0, %s30
    %s52 = sphi 0, %s54
    %s55 = sphi 0, %s52
    %s56 = sphi 0, %s55
    %s72 = sphi 0, %s56
    %s76 = sphi 0, %s76
    %s78 = sphi 0, %s76
    %s79 = sphi 0, %s78
    %s93 = sphi 0, %s79
    %s97 = sphi 0, %s97
    %s99 = sphi 0, %s97
    %s100 = sphi 0, %s99
    %s114 = sphi 0, %s100
    %s118 = sphi 0, %s118
    %s120 = sphi 0, %s118
    %s121 = sphi 0, %s120
    %s135 = sphi 0, %s121
    %s139 = sphi 0, %s139
    %s141 = sphi 0, %s139
    %s142 = sphi 0, %s141
    %s156 = sphi 0, %s142
    %s160 = sphi 0, %s160
    %s162 = sphi 0, %s160
    %s163 = sphi 0, %s162
    %s177 = sphi 0, %s163
    %s181 = sphi 0, %s181
    %s183 = sphi 0, %s181
    %s184 = sphi 0, %s183
    %s198 = sphi 0, %s184
    %s202 = sphi 0, %s202
    %s204 = sphi 0, %s202
    %s205 = sphi 0, %s204
    %s219 = sphi 0, %s205
    %s223 = sphi 0, %s223
    %s225 = sphi 0, %s223
    %s226 = sphi 0, %s225
    %s240 = sphi 0, %s226
    %s246 = sphi 0, %s248
    %s249 = sphi 0, %s246
    %s250 = sphi 0, %s249
    %s266 = sphi 0, %s250
  $region4: #{t5_encoder.1} parent=0 // loop_header_branch
    %19 = sbr.rel (%p17) target = $region8
  $region5: #{t5_encoder.1} parent=0 // loop_body
    %s21 = ssub.s32 %s16, 1
    %s22 = ssub.s32 %s16, 2
    %s23 = sadd.s32 %s16, 1
    %s24 = ssub.s32 %s16, %s23
    %p25 = scmp.eq.s32.totalorder %s24, 0
    %s27 = sadd.s32 %s26, 1
    %s28 = scalar_select %p25, %s26, %s27
    %p31 = pneg %p25
    %p32 = scmp.eq.s32.totalorder %s16, 1
    %p33 = por %p31, %p32
    %p34 = scmp.ne.s32.totalorder %s26, %s29
    %p35 = scmp.eq.s32.totalorder %s16, 0
    %p36 = por %p34, %p35
    %p37 = scmp.ne.s32.totalorder %s26, %s29
    %p38 = scmp.eq.s32.totalorder %s21, 1
    %p39 = por %p37, %p38
    %p40 = scmp.ne.s32.totalorder %s29, %s30
    %p41 = scmp.eq.s32.totalorder %s21, 0
    %p42 = por %p40, %p41
    %p43 = scmp.ne.s32.totalorder %s29, %s30
    %p44 = scmp.eq.s32.totalorder %s22, 1
    %p45 = por %p43, %p44
    %p47 = scmp.ne.s32.totalorder %s30, %s46
    %p48 = scmp.eq.s32.totalorder %s22, 0
    %p49 = por %p47, %p48
    %s50 = ssub.s32 %s16, %s23
    %p51 = scmp.eq.s32.totalorder %s50, 0
    %s53 = sadd.s32 %s52, 1
    %s54 = scalar_select %p51, %s52, %s53
    %p57 = pneg %p51
    %p58 = scmp.eq.s32.totalorder %s16, 1
    %p59 = por %p57, %p58
    %p60 = scmp.ne.s32.totalorder %s52, %s55
    %p61 = scmp.eq.s32.totalorder %s16, 0
    %p62 = por %p60, %p61
    %p63 = scmp.ne.s32.totalorder %s52, %s55
    %p64 = scmp.eq.s32.totalorder %s21, 1
    %p65 = por %p63, %p64
    %p66 = scmp.ne.s32.totalorder %s55, %s56
    %p67 = scmp.eq.s32.totalorder %s21, 0
    %p68 = por %p66, %p67
    %p69 = scmp.ne.s32.totalorder %s55, %s56
    %p70 = scmp.eq.s32.totalorder %s22, 1
    %p71 = por %p69, %p70
    %p73 = scmp.ne.s32.totalorder %s56, %s72
    %p74 = scmp.eq.s32.totalorder %s22, 0
    %p75 = por %p73, %p74
    %s77 = sadd.s32 %s76, 1
    %p80 = scmp.eq.s32.totalorder %s16, 1
    %p81 = scmp.ne.s32.totalorder %s76, %s78
    %p82 = scmp.eq.s32.totalorder %s16, 0
    %p83 = por %p81, %p82
    %p84 = scmp.ne.s32.totalorder %s76, %s78
    %p85 = scmp.eq.s32.totalorder %s21, 1
    %p86 = por %p84, %p85
    %p87 = scmp.ne.s32.totalorder %s78, %s79
    %p88 = scmp.eq.s32.totalorder %s21, 0
    %p89 = por %p87, %p88
    %p90 = scmp.ne.s32.totalorder %s78, %s79
    %p91 = scmp.eq.s32.totalorder %s22, 1
    %p92 = por %p90, %p91
    %p94 = scmp.ne.s32.totalorder %s79, %s93
    %p95 = scmp.eq.s32.totalorder %s22, 0
    %p96 = por %p94, %p95
    %s98 = sadd.s32 %s97, 1
    %p101 = scmp.eq.s32.totalorder %s16, 1
    %p102 = scmp.ne.s32.totalorder %s97, %s99
    %p103 = scmp.eq.s32.totalorder %s16, 0
    %p104 = por %p102, %p103
    %p105 = scmp.ne.s32.totalorder %s97, %s99
    %p106 = scmp.eq.s32.totalorder %s21, 1
    %p107 = por %p105, %p106
    %p108 = scmp.ne.s32.totalorder %s99, %s100
    %p109 = scmp.eq.s32.totalorder %s21, 0
    %p110 = por %p108, %p109
    %p111 = scmp.ne.s32.totalorder %s99, %s100
    %p112 = scmp.eq.s32.totalorder %s22, 1
    %p113 = por %p111, %p112
    %p115 = scmp.ne.s32.totalorder %s100, %s114
    %p116 = scmp.eq.s32.totalorder %s22, 0
    %p117 = por %p115, %p116
    %s119 = sadd.s32 %s118, 1
    %p122 = scmp.eq.s32.totalorder %s16, 1
    %p123 = scmp.ne.s32.totalorder %s118, %s120
    %p124 = scmp.eq.s32.totalorder %s16, 0
    %p125 = por %p123, %p124
    %p126 = scmp.ne.s32.totalorder %s118, %s120
    %p127 = scmp.eq.s32.totalorder %s21, 1
    %p128 = por %p126, %p127
    %p129 = scmp.ne.s32.totalorder %s120, %s121
    %p130 = scmp.eq.s32.totalorder %s21, 0
    %p131 = por %p129, %p130
    %p132 = scmp.ne.s32.totalorder %s120, %s121
    %p133 = scmp.eq.s32.totalorder %s22, 1
    %p134 = por %p132, %p133
    %p136 = scmp.ne.s32.totalorder %s121, %s135
    %p137 = scmp.eq.s32.totalorder %s22, 0
    %p138 = por %p136, %p137
    %s140 = sadd.s32 %s139, 1
    %p143 = scmp.eq.s32.totalorder %s16, 1
    %p144 = scmp.ne.s32.totalorder %s139, %s141
    %p145 = scmp.eq.s32.totalorder %s16, 0
    %p146 = por %p144, %p145
    %p147 = scmp.ne.s32.totalorder %s139, %s141
    %p148 = scmp.eq.s32.totalorder %s21, 1
    %p149 = por %p147, %p148
    %p150 = scmp.ne.s32.totalorder %s141, %s142
    %p151 = scmp.eq.s32.totalorder %s21, 0
    %p152 = por %p150, %p151
    %p153 = scmp.ne.s32.totalorder %s141, %s142
    %p154 = scmp.eq.s32.totalorder %s22, 1
    %p155 = por %p153, %p154
    %p157 = scmp.ne.s32.totalorder %s142, %s156
    %p158 = scmp.eq.s32.totalorder %s22, 0
    %p159 = por %p157, %p158
    %s161 = sadd.s32 %s160, 1
    %p164 = scmp.eq.s32.totalorder %s16, 1
    %p165 = scmp.ne.s32.totalorder %s160, %s162
    %p166 = scmp.eq.s32.totalorder %s16, 0
    %p167 = por %p165, %p166
    %p168 = scmp.ne.s32.totalorder %s160, %s162
    %p169 = scmp.eq.s32.totalorder %s21, 1
    %p170 = por %p168, %p169
    %p171 = scmp.ne.s32.totalorder %s162, %s163
    %p172 = scmp.eq.s32.totalorder %s21, 0
    %p173 = por %p171, %p172
    %p174 = scmp.ne.s32.totalorder %s162, %s163
    %p175 = scmp.eq.s32.totalorder %s22, 1
    %p176 = por %p174, %p175
    %p178 = scmp.ne.s32.totalorder %s163, %s177
    %p179 = scmp.eq.s32.totalorder %s22, 0
    %p180 = por %p178, %p179
    %s182 = sadd.s32 %s181, 1
    %p185 = scmp.eq.s32.totalorder %s16, 1
    %p186 = scmp.ne.s32.totalorder %s181, %s183
    %p187 = scmp.eq.s32.totalorder %s16, 0
    %p188 = por %p186, %p187
    %p189 = scmp.ne.s32.totalorder %s181, %s183
    %p190 = scmp.eq.s32.totalorder %s21, 1
    %p191 = por %p189, %p190
    %p192 = scmp.ne.s32.totalorder %s183, %s184
    %p193 = scmp.eq.s32.totalorder %s21, 0
    %p194 = por %p192, %p193
    %p195 = scmp.ne.s32.totalorder %s183, %s184
    %p196 = scmp.eq.s32.totalorder %s22, 1
    %p197 = por %p195, %p196
    %p199 = scmp.ne.s32.totalorder %s184, %s198
    %p200 = scmp.eq.s32.totalorder %s22, 0
    %p201 = por %p199, %p200
    %s203 = sadd.s32 %s202, 1
    %p206 = scmp.eq.s32.totalorder %s16, 1
    %p207 = scmp.ne.s32.totalorder %s202, %s204
    %p208 = scmp.eq.s32.totalorder %s16, 0
    %p209 = por %p207, %p208
    %p210 = scmp.ne.s32.totalorder %s202, %s204
    %p211 = scmp.eq.s32.totalorder %s21, 1
    %p212 = por %p210, %p211
    %p213 = scmp.ne.s32.totalorder %s204, %s205
    %p214 = scmp.eq.s32.totalorder %s21, 0
    %p215 = por %p213, %p214
    %p216 = scmp.ne.s32.totalorder %s204, %s205
    %p217 = scmp.eq.s32.totalorder %s22, 1
    %p218 = por %p216, %p217
    %p220 = scmp.ne.s32.totalorder %s205, %s219
    %p221 = scmp.eq.s32.totalorder %s22, 0
    %p222 = por %p220, %p221
    %s224 = sadd.s32 %s223, 1
    %p227 = scmp.eq.s32.totalorder %s16, 1
    %p228 = scmp.ne.s32.totalorder %s223, %s225
    %p229 = scmp.eq.s32.totalorder %s16, 0
    %p230 = por %p228, %p229
    %p231 = scmp.ne.s32.totalorder %s223, %s225
    %p232 = scmp.eq.s32.totalorder %s21, 1
    %p233 = por %p231, %p232
    %p234 = scmp.ne.s32.totalorder %s225, %s226
    %p235 = scmp.eq.s32.totalorder %s21, 0
    %p236 = por %p234, %p235
    %p237 = scmp.ne.s32.totalorder %s225, %s226
    %p238 = scmp.eq.s32.totalorder %s22, 1
    %p239 = por %p237, %p238
    %p241 = scmp.ne.s32.totalorder %s226, %s240
    %p242 = scmp.eq.s32.totalorder %s22, 0
    %p243 = por %p241, %p242
    %s244 = ssub.s32 %s16, %s23
    %p245 = scmp.eq.s32.totalorder %s244, 0
    %s247 = sadd.s32 %s246, 1
    %s248 = scalar_select %p245, %s246, %s247
    %p251 = pneg %p245
    %p252 = scmp.eq.s32.totalorder %s16, 1
    %p253 = por %p251, %p252
    %p254 = scmp.ne.s32.totalorder %s246, %s249
    %p255 = scmp.eq.s32.totalorder %s16, 0
    %p256 = por %p254, %p255
    %p257 = scmp.ne.s32.totalorder %s246, %s249
    %p258 = scmp.eq.s32.totalorder %s21, 1
    %p259 = por %p257, %p258
    %p260 = scmp.ne.s32.totalorder %s249, %s250
    %p261 = scmp.eq.s32.totalorder %s21, 0
    %p262 = por %p260, %p261
    %p263 = scmp.ne.s32.totalorder %s249, %s250
    %p264 = scmp.eq.s32.totalorder %s22, 1
    %p265 = por %p263, %p264
    %p267 = scmp.ne.s32.totalorder %s250, %s266
    %p268 = scmp.eq.s32.totalorder %s22, 0
    %p269 = por %p267, %p268
    %p270 = scmp.le.s32.totalorder 1, %s16
    %p271 = scmp.lt.s32.totalorder %s16, 3
    %p272 = pnand %p270, %p271
    %p273 = pneg %p272
    // Predicated region
    $region9: #{t5_encoder.1} parent=5 // pred_check
      _
    $region10: #{t5_encoder.1} parent=5 // pred_check_branch
      %275 = sbr.rel (%p272) target = $region12
    $region11: #{t5_encoder.1} parent=5 // pred_region
      %s276 = ssub.s32 %s16, 1
      // Predicated region
      $region13: #{t5_encoder.1} parent=11 // pred_check
        %p277 = pneg %p89
      $region14: #{t5_encoder.1} parent=11 // pred_check_branch
        %279 = sbr.rel (%p277) target = $region16
      $region15: #{t5_encoder.1} parent=11 // pred_region
        _
      $region16: #{t5_encoder.1} parent=11 // pred_fallthru
        _
      // Predicated region
      $region17: #{t5_encoder.1} parent=11 // pred_check
        %p280 = pneg %p110
      $region18: #{t5_encoder.1} parent=11 // pred_check_branch
        %282 = sbr.rel (%p280) target = $region20
      $region19: #{t5_encoder.1} parent=11 // pred_region
        _
      $region20: #{t5_encoder.1} parent=11 // pred_fallthru
        _
      // Predicated region
      $region21: #{t5_encoder.1} parent=11 // pred_check
        %p283 = pneg %p131
      $region22: #{t5_encoder.1} parent=11 // pred_check_branch
        %285 = sbr.rel (%p283) target = $region24
      $region23: #{t5_encoder.1} parent=11 // pred_region
        _
      $region24: #{t5_encoder.1} parent=11 // pred_fallthru
        _
      // Predicated region
      $region25: #{t5_encoder.1} parent=11 // pred_check
        %p286 = pneg %p152
      $region26: #{t5_encoder.1} parent=11 // pred_check_branch
        %288 = sbr.rel (%p286) target = $region28
      $region27: #{t5_encoder.1} parent=11 // pred_region
        _
      $region28: #{t5_encoder.1} parent=11 // pred_fallthru
        _
      // Predicated region
      $region29: #{t5_encoder.1} parent=11 // pred_check
        %p289 = pneg %p173
      $region30: #{t5_encoder.1} parent=11 // pred_check_branch
        %291 = sbr.rel (%p289) target = $region32
      $region31: #{t5_encoder.1} parent=11 // pred_region
        _
      $region32: #{t5_encoder.1} parent=11 // pred_fallthru
        _
      // Predicated region
      $region33: #{t5_encoder.1} parent=11 // pred_check
        %p292 = pneg %p194
      $region34: #{t5_encoder.1} parent=11 // pred_check_branch
        %294 = sbr.rel (%p292) target = $region36
      $region35: #{t5_encoder.1} parent=11 // pred_region
        _
      $region36: #{t5_encoder.1} parent=11 // pred_fallthru
        _
      // Predicated region
      $region37: #{t5_encoder.1} parent=11 // pred_check
        %p295 = pneg %p215
      $region38: #{t5_encoder.1} parent=11 // pred_check_branch
        %297 = sbr.rel (%p295) target = $region40
      $region39: #{t5_encoder.1} parent=11 // pred_region
        _
      $region40: #{t5_encoder.1} parent=11 // pred_fallthru
        _
      // Predicated region
      $region41: #{t5_encoder.1} parent=11 // pred_check
        %p298 = pneg %p236
      $region42: #{t5_encoder.1} parent=11 // pred_check_branch
        %300 = sbr.rel (%p298) target = $region44
      $region43: #{t5_encoder.1} parent=11 // pred_region
        _
      $region44: #{t5_encoder.1} parent=11 // pred_fallthru
        _
    $region12: #{t5_encoder.1} parent=5 // pred_fallthru
      _
    %p301 = scmp.lt.s32.totalorder %s16, 2
    // Predicated region
    $region45: #{t5_encoder.1} parent=5 // pred_check
      %p302 = pneg %p301
    $region46: #{t5_encoder.1} parent=5 // pred_check_branch
      %304 = sbr.rel (%p302) target = $region48
    $region47: #{t5_encoder.1} parent=5 // pred_region
      // Predicated region
      $region49: #{t5_encoder.1} parent=47 // pred_check
        %p305 = pneg %p36
      $region50: #{t5_encoder.1} parent=47 // pred_check_branch
        %307 = sbr.rel (%p305) target = $region52
      $region51: #{t5_encoder.1} parent=47 // pred_region
        %p308 = scmp.lt.s32.totalorder %s16, 1
        %s309 = scalar_select %p308, %s16, 1
        %s310 = smul.addr %s309, 8
        %s311 = scalar_lea.vmem %s0, %s310
      $region52: #{t5_encoder.1} parent=47 // pred_fallthru
        _
      // Predicated region
      $region53: #{t5_encoder.1} parent=47 // pred_check
        %p312 = pneg %p62
      $region54: #{t5_encoder.1} parent=47 // pred_check_branch
        %314 = sbr.rel (%p312) target = $region56
      $region55: #{t5_encoder.1} parent=47 // pred_region
        %p315 = scmp.lt.s32.totalorder %s16, 1
        %s316 = scalar_select %p315, %s16, 1
        %s317 = scalar_lea.vmem %s1, %s316
      $region56: #{t5_encoder.1} parent=47 // pred_fallthru
        _
    $region48: #{t5_encoder.1} parent=5 // pred_fallthru
      _
    %p318 = scmp.le.s32.totalorder 1, %s16
    %p319 = scmp.lt.s32.totalorder %s16, 3
    %p320 = pnand %p318, %p319
    %p321 = pneg %p320
    // Predicated region
    $region57: #{t5_encoder.1} parent=5 // pred_check
      _
    $region58: #{t5_encoder.1} parent=5 // pred_check_branch
      %323 = sbr.rel (%p320) target = $region60
    $region59: #{t5_encoder.1} parent=5 // pred_region
      %s324 = ssub.s32 %s16, 1
      %p325 = scmp.lt.s32.totalorder %s21, 1
      %s326 = scalar_select %p325, %s21, 1
      %s327 = smul.addr %s326, 8
      %s328 = scalar_lea.vmem %s0, %s327
      %p329 = pneg %p42
      %p330 = pneg %p39
      %p331 = scmp.lt.s32.totalorder %s21, 1
      %s332 = scalar_select %p331, %s21, 1
      %s333 = scalar_lea.vmem %s1, %s332
      %p334 = pneg %p68
      %p335 = pneg %p65
      %p336 = pneg %p89
      %p337 = pneg %p86
      %p338 = pneg %p110
      %p339 = pneg %p107
      %p340 = pneg %p131
      %p341 = pneg %p128
      %p342 = pneg %p152
      %p343 = pneg %p149
      %p344 = pneg %p173
      %p345 = pneg %p170
      %p346 = pneg %p194
      %p347 = pneg %p191
      %p348 = pneg %p215
      %p349 = pneg %p212
      %p350 = pneg %p236
      %p351 = pneg %p233
      %p352 = pneg %p262
      %p353 = pneg %p259
      %p354 = scmp.lt.s32.totalorder %s21, 1
      %s355 = scalar_select %p354, %s21, 1
      %s356 = smul.addr %s355, 8
      %s357 = scalar_lea.vmem %s10, %s356
      %p358 = scmp.lt.s32.totalorder %s21, 1
      %s359 = scalar_select %p358, %s21, 1
      %s360 = smul.addr %s359, 8
      %s361 = scalar_lea.vmem %s0, %s360
      %p362 = scmp.lt.s32.totalorder %s21, 1
      %s363 = scalar_select %p362, %s21, 1
      %s364 = scalar_lea.vmem %s1, %s363
      %p365 = scmp.lt.s32.totalorder %s21, 1
      %s366 = scalar_select %p365, %s21, 1
      %s367 = smul.addr %s366, 8
      %s368 = scalar_lea.vmem %s10, %s367
      %v369 = vld [vmem:[%s361] sm:$0xff]
      %v370 = vld [vmem:[%s2] sm:$0xff]
      %v371 = vld [vmem:[%s2 + $0x8] sm:$0xff]
      %v372 = vld [vmem:[%s2 + $0x10] sm:$0xff]
      %v373 = vld [vmem:[%s2 + $0x18] sm:$0xff]
      %v374 = vld [vmem:[%s364] sm:$0x1]
      %v376 = vlaneseq
      %v377 = vshrl.u32 %v376, 7
      %v378 = vsub.s32 0, %v377
      %v379 = vrot.slane %v374, %v378
      %v381 = vadd.f32 %v370, %v379
      %v382 = vadd.f32 %v371, %v379
      %v383 = vadd.f32 %v372, %v379
      %v384 = vadd.f32 %v373, %v379
      %v385 = vld [vmem:[%s3] sm:$0x1]
      %v386 = vmul.f32 %v369, %v369
      %387 = vadd.xlane.f32.xlu0 %v386
      %v388 = vpop.xlane.xlu0 %387
      %v389 = vmul.f32 %v388, 0.03125
      %v390 = vadd.f32 %v389, 1e-06
      %v391 = vrsqrt.pop %v390
      %v392 = vmul.f32 %v369, %v391
      %v394 = vlaneseq
      %v395 = vshrl.u32 %v394, 7
      %v396 = vsub.s32 0, %v395
      %v397 = vrot.slane %v385, %v396
      %v399 = vmul.f32 %v392, %v397
      %v400 = vld [vmem:[%s4] sm:$0xff]
      %v401 = vld [vmem:[%s4 + $0x8] sm:$0xff]
      %v402 = vld [vmem:[%s4 + $0x10] sm:$0xff]
      %v403 = vld [vmem:[%s4 + $0x18] sm:$0xff]
      %v404 = vld [vmem:[%s4 + $0x20] sm:$0xff]
      %v405 = vld [vmem:[%s4 + $0x28] sm:$0xff]
      %v406 = vld [vmem:[%s4 + $0x30] sm:$0xff]
      %v407 = vld [vmem:[%s4 + $0x38] sm:$0xff]
      %v408 = vld [vmem:[%s4 + $0x40] sm:$0xff]
      %v409 = vld [vmem:[%s4 + $0x48] sm:$0xff]
      %v410 = vld [vmem:[%s4 + $0x50] sm:$0xff]
      %v411 = vld [vmem:[%s4 + $0x58] sm:$0xff]
      %v412 = vld [vmem:[%s4 + $0x60] sm:$0xff]
      %v413 = vld [vmem:[%s4 + $0x68] sm:$0xff]
      %v414 = vld [vmem:[%s4 + $0x70] sm:$0xff]
      %v415 = vld [vmem:[%s4 + $0x78] sm:$0xff]
      %v416 = vld [vmem:[%s4 + $0x80] sm:$0xff]
      %v417 = vld [vmem:[%s4 + $0x88] sm:$0xff]
      %v418 = vld [vmem:[%s4 + $0x90] sm:$0xff]
      %v419 = vld [vmem:[%s4 + $0x98] sm:$0xff]
      %v420 = vld [vmem:[%s4 + $0xa0] sm:$0xff]
      %v421 = vld [vmem:[%s4 + $0xa8] sm:$0xff]
      %v422 = vld [vmem:[%s4 + $0xb0] sm:$0xff]
      %v423 = vld [vmem:[%s4 + $0xb8] sm:$0xff]
      %v424 = vld [vmem:[%s4 + $0xc0] sm:$0xff]
      %v425 = vld [vmem:[%s4 + $0xc8] sm:$0xff]
      %v426 = vld [vmem:[%s4 + $0xd0] sm:$0xff]
      %v427 = vld [vmem:[%s4 + $0xd8] sm:$0xff]
      %v428 = vld [vmem:[%s4 + $0xe0] sm:$0xff]
      %v429 = vld [vmem:[%s4 + $0xe8] sm:$0xff]
      %v430 = vld [vmem:[%s4 + $0xf0] sm:$0xff]
      %v431 = vld [vmem:[%s4 + $0xf8] sm:$0xff]
      %v432 = vld [vmem:[%s4 + $0x100] sm:$0xff]
      %v433 = vld [vmem:[%s4 + $0x108] sm:$0xff]
      %v434 = vld [vmem:[%s4 + $0x110] sm:$0xff]
      %v435 = vld [vmem:[%s4 + $0x118] sm:$0xff]
      %v436 = vld [vmem:[%s4 + $0x120] sm:$0xff]
      %v437 = vld [vmem:[%s4 + $0x128] sm:$0xff]
      %v438 = vld [vmem:[%s4 + $0x130] sm:$0xff]
      %v439 = vld [vmem:[%s4 + $0x138] sm:$0xff]
      %v440 = vld [vmem:[%s4 + $0x140] sm:$0xff]
      %v441 = vld [vmem:[%s4 + $0x148] sm:$0xff]
      %v442 = vld [vmem:[%s4 + $0x150] sm:$0xff]
      %v443 = vld [vmem:[%s4 + $0x158] sm:$0xff]
      %v444 = vld [vmem:[%s4 + $0x160] sm:$0xff]
      %v445 = vld [vmem:[%s4 + $0x168] sm:$0xff]
      %v446 = vld [vmem:[%s4 + $0x170] sm:$0xff]
      %v447 = vld [vmem:[%s4 + $0x178] sm:$0xff]
      %v448 = vld [vmem:[%s4 + $0x180] sm:$0xff]
      %v449 = vld [vmem:[%s4 + $0x188] sm:$0xff]
      %v450 = vld [vmem:[%s4 + $0x190] sm:$0xff]
      %v451 = vld [vmem:[%s4 + $0x198] sm:$0xff]
      %v452 = vld [vmem:[%s4 + $0x1a0] sm:$0xff]
      %v453 = vld [vmem:[%s4 + $0x1a8] sm:$0xff]
      %v454 = vld [vmem:[%s4 + $0x1b0] sm:$0xff]
      %v455 = vld [vmem:[%s4 + $0x1b8] sm:$0xff]
      %v456 = vld [vmem:[%s4 + $0x1c0] sm:$0xff]
      %v457 = vld [vmem:[%s4 + $0x1c8] sm:$0xff]
      %v458 = vld [vmem:[%s4 + $0x1d0] sm:$0xff]
      %v459 = vld [vmem:[%s4 + $0x1d8] sm:$0xff]
      %v460 = vld [vmem:[%s4 + $0x1e0] sm:$0xff]
      %v461 = vld [vmem:[%s4 + $0x1e8] sm:$0xff]
      %v462 = vld [vmem:[%s4 + $0x1f0] sm:$0xff]
      %v463 = vld [vmem:[%s4 + $0x1f8] sm:$0xff]
      %v464 = vld [vmem:[%s4 + $0x200] sm:$0xff]
      %v465 = vld [vmem:[%s4 + $0x208] sm:$0xff]
      %v466 = vld [vmem:[%s4 + $0x210] sm:$0xff]
      %v467 = vld [vmem:[%s4 + $0x218] sm:$0xff]
      %v468 = vld [vmem:[%s4 + $0x220] sm:$0xff]
      %v469 = vld [vmem:[%s4 + $0x228] sm:$0xff]
      %v470 = vld [vmem:[%s4 + $0x230] sm:$0xff]
      %v471 = vld [vmem:[%s4 + $0x238] sm:$0xff]
      %v472 = vld [vmem:[%s4 + $0x240] sm:$0xff]
      %v473 = vld [vmem:[%s4 + $0x248] sm:$0xff]
      %v474 = vld [vmem:[%s4 + $0x250] sm:$0xff]
      %v475 = vld [vmem:[%s4 + $0x258] sm:$0xff]
      %v476 = vld [vmem:[%s4 + $0x260] sm:$0xff]
      %v477 = vld [vmem:[%s4 + $0x268] sm:$0xff]
      %v478 = vld [vmem:[%s4 + $0x270] sm:$0xff]
      %v479 = vld [vmem:[%s4 + $0x278] sm:$0xff]
      %v480 = vld [vmem:[%s4 + $0x280] sm:$0xff]
      %v481 = vld [vmem:[%s4 + $0x288] sm:$0xff]
      %v482 = vld [vmem:[%s4 + $0x290] sm:$0xff]
      %v483 = vld [vmem:[%s4 + $0x298] sm:$0xff]
      %v484 = vld [vmem:[%s4 + $0x2a0] sm:$0xff]
      %v485 = vld [vmem:[%s4 + $0x2a8] sm:$0xff]
      %v486 = vld [vmem:[%s4 + $0x2b0] sm:$0xff]
      %v487 = vld [vmem:[%s4 + $0x2b8] sm:$0xff]
      %v488 = vld [vmem:[%s4 + $0x2c0] sm:$0xff]
      %v489 = vld [vmem:[%s4 + $0x2c8] sm:$0xff]
      %v490 = vld [vmem:[%s4 + $0x2d0] sm:$0xff]
      %v491 = vld [vmem:[%s4 + $0x2d8] sm:$0xff]
      %v492 = vld [vmem:[%s4 + $0x2e0] sm:$0xff]
      %v493 = vld [vmem:[%s4 + $0x2e8] sm:$0xff]
      %v494 = vld [vmem:[%s4 + $0x2f0] sm:$0xff]
      %v495 = vld [vmem:[%s4 + $0x2f8] sm:$0xff]
      %v496 = vld [vmem:[%s4 + $0x300] sm:$0xff]
      %v497 = vld [vmem:[%s4 + $0x308] sm:$0xff]
      %v498 = vld [vmem:[%s4 + $0x310] sm:$0xff]
      %v499 = vld [vmem:[%s4 + $0x318] sm:$0xff]
      %v500 = vld [vmem:[%s4 + $0x320] sm:$0xff]
      %v501 = vld [vmem:[%s4 + $0x328] sm:$0xff]
      %v502 = vld [vmem:[%s4 + $0x330] sm:$0xff]
      %v503 = vld [vmem:[%s4 + $0x338] sm:$0xff]
      %v504 = vld [vmem:[%s4 + $0x340] sm:$0xff]
      %v505 = vld [vmem:[%s4 + $0x348] sm:$0xff]
      %v506 = vld [vmem:[%s4 + $0x350] sm:$0xff]
      %v507 = vld [vmem:[%s4 + $0x358] sm:$0xff]
      %v508 = vld [vmem:[%s4 + $0x360] sm:$0xff]
      %v509 = vld [vmem:[%s4 + $0x368] sm:$0xff]
      %v510 = vld [vmem:[%s4 + $0x370] sm:$0xff]
      %v511 = vld [vmem:[%s4 + $0x378] sm:$0xff]
      %v512 = vld [vmem:[%s4 + $0x380] sm:$0xff]
      %v513 = vld [vmem:[%s4 + $0x388] sm:$0xff]
      %v514 = vld [vmem:[%s4 + $0x390] sm:$0xff]
      %v515 = vld [vmem:[%s4 + $0x398] sm:$0xff]
      %v516 = vld [vmem:[%s4 + $0x3a0] sm:$0xff]
      %v517 = vld [vmem:[%s4 + $0x3a8] sm:$0xff]
      %v518 = vld [vmem:[%s4 + $0x3b0] sm:$0xff]
      %v519 = vld [vmem:[%s4 + $0x3b8] sm:$0xff]
      %v520 = vld [vmem:[%s4 + $0x3c0] sm:$0xff]
      %v521 = vld [vmem:[%s4 + $0x3c8] sm:$0xff]
      %v522 = vld [vmem:[%s4 + $0x3d0] sm:$0xff]
      %v523 = vld [vmem:[%s4 + $0x3d8] sm:$0xff]
      %v524 = vld [vmem:[%s4 + $0x3e0] sm:$0xff]
      %v525 = vld [vmem:[%s4 + $0x3e8] sm:$0xff]
      %v526 = vld [vmem:[%s4 + $0x3f0] sm:$0xff]
      %v527 = vld [vmem:[%s4 + $0x3f8] sm:$0xff]
      %v528 = vld [vmem:[%s4 + $0x400] sm:$0xff]
      %v529 = vld [vmem:[%s4 + $0x408] sm:$0xff]
      %v530 = vld [vmem:[%s4 + $0x410] sm:$0xff]
      %v531 = vld [vmem:[%s4 + $0x418] sm:$0xff]
      %v532 = vld [vmem:[%s4 + $0x420] sm:$0xff]
      %v533 = vld [vmem:[%s4 + $0x428] sm:$0xff]
      %v534 = vld [vmem:[%s4 + $0x430] sm:$0xff]
      %v535 = vld [vmem:[%s4 + $0x438] sm:$0xff]
      %v536 = vld [vmem:[%s4 + $0x440] sm:$0xff]
      %v537 = vld [vmem:[%s4 + $0x448] sm:$0xff]
      %v538 = vld [vmem:[%s4 + $0x450] sm:$0xff]
      %v539 = vld [vmem:[%s4 + $0x458] sm:$0xff]
      %v540 = vld [vmem:[%s4 + $0x460] sm:$0xff]
      %v541 = vld [vmem:[%s4 + $0x468] sm:$0xff]
      %v542 = vld [vmem:[%s4 + $0x470] sm:$0xff]
      %v543 = vld [vmem:[%s4 + $0x478] sm:$0xff]
      %v544 = vld [vmem:[%s4 + $0x480] sm:$0xff]
      %v545 = vld [vmem:[%s4 + $0x488] sm:$0xff]
      %v546 = vld [vmem:[%s4 + $0x490] sm:$0xff]
      %v547 = vld [vmem:[%s4 + $0x498] sm:$0xff]
      %v548 = vld [vmem:[%s4 + $0x4a0] sm:$0xff]
      %v549 = vld [vmem:[%s4 + $0x4a8] sm:$0xff]
      %v550 = vld [vmem:[%s4 + $0x4b0] sm:$0xff]
      %v551 = vld [vmem:[%s4 + $0x4b8] sm:$0xff]
      %v552 = vld [vmem:[%s4 + $0x4c0] sm:$0xff]
      %v553 = vld [vmem:[%s4 + $0x4c8] sm:$0xff]
      %v554 = vld [vmem:[%s4 + $0x4d0] sm:$0xff]
      %v555 = vld [vmem:[%s4 + $0x4d8] sm:$0xff]
      %v556 = vld [vmem:[%s4 + $0x4e0] sm:$0xff]
      %v557 = vld [vmem:[%s4 + $0x4e8] sm:$0xff]
      %v558 = vld [vmem:[%s4 + $0x4f0] sm:$0xff]
      %v559 = vld [vmem:[%s4 + $0x4f8] sm:$0xff]
      %v560 = vld [vmem:[%s4 + $0x500] sm:$0xff]
      %v561 = vld [vmem:[%s4 + $0x508] sm:$0xff]
      %v562 = vld [vmem:[%s4 + $0x510] sm:$0xff]
      %v563 = vld [vmem:[%s4 + $0x518] sm:$0xff]
      %v564 = vld [vmem:[%s4 + $0x520] sm:$0xff]
      %v565 = vld [vmem:[%s4 + $0x528] sm:$0xff]
      %v566 = vld [vmem:[%s4 + $0x530] sm:$0xff]
      %v567 = vld [vmem:[%s4 + $0x538] sm:$0xff]
      %v568 = vld [vmem:[%s4 + $0x540] sm:$0xff]
      %v569 = vld [vmem:[%s4 + $0x548] sm:$0xff]
      %v570 = vld [vmem:[%s4 + $0x550] sm:$0xff]
      %v571 = vld [vmem:[%s4 + $0x558] sm:$0xff]
      %v572 = vld [vmem:[%s4 + $0x560] sm:$0xff]
      %v573 = vld [vmem:[%s4 + $0x568] sm:$0xff]
      %v574 = vld [vmem:[%s4 + $0x570] sm:$0xff]
      %v575 = vld [vmem:[%s4 + $0x578] sm:$0xff]
      %v576 = vld [vmem:[%s4 + $0x580] sm:$0xff]
      %v577 = vld [vmem:[%s4 + $0x588] sm:$0xff]
      %v578 = vld [vmem:[%s4 + $0x590] sm:$0xff]
      %v579 = vld [vmem:[%s4 + $0x598] sm:$0xff]
      %v580 = vld [vmem:[%s4 + $0x5a0] sm:$0xff]
      %v581 = vld [vmem:[%s4 + $0x5a8] sm:$0xff]
      %v582 = vld [vmem:[%s4 + $0x5b0] sm:$0xff]
      %v583 = vld [vmem:[%s4 + $0x5b8] sm:$0xff]
      %v584 = vld [vmem:[%s4 + $0x5c0] sm:$0xff]
      %v585 = vld [vmem:[%s4 + $0x5c8] sm:$0xff]
      %v586 = vld [vmem:[%s4 + $0x5d0] sm:$0xff]
      %v587 = vld [vmem:[%s4 + $0x5d8] sm:$0xff]
      %v588 = vld [vmem:[%s4 + $0x5e0] sm:$0xff]
      %v589 = vld [vmem:[%s4 + $0x5e8] sm:$0xff]
      %v590 = vld [vmem:[%s4 + $0x5f0] sm:$0xff]
      %v591 = vld [vmem:[%s4 + $0x5f8] sm:$0xff]
      %592 = vmatprep.subr.mxu0 0.0
      %593 = vmatpush1.msra.mxu0 %v400
      %594 = vmatprep.subr.mxu0 0.0
      %595 = vmatpush1.msra.mxu0 %v401
      %596 = vmatprep.subr.mxu0 0.0
      %597 = vmatpush1.msra.mxu0 %v402
      %598 = vmatprep.subr.mxu0 0.0
      %599 = vmatpush1.msra.mxu0 %v403
      %600 = vmatprep.subr.mxu0 0.0
      %601 = vmatpush1.msra.mxu0 %v404
      %602 = vmatprep.subr.mxu0 0.0
      %603 = vmatpush1.msra.mxu0 %v405
      %604 = vmatprep.subr.mxu0 0.0
      %605 = vmatpush1.msra.mxu0 %v406
      %606 = vmatprep.subr.mxu0 0.0
      %607 = vmatpush1.msra.mxu0 %v407
      %608 = vmatprep.subr.mxu0 0.0
      %609 = vmatpush1.msra.mxu0 %v408
      %610 = vmatprep.subr.mxu0 0.0
      %611 = vmatpush1.msra.mxu0 %v409
      %612 = vmatprep.subr.mxu0 0.0
      %613 = vmatpush1.msra.mxu0 %v410
      %614 = vmatprep.subr.mxu0 0.0
      %615 = vmatpush1.msra.mxu0 %v411
      %616 = vmatprep.subr.mxu0 0.0
      %617 = vmatpush1.msra.mxu0 %v412
      %618 = vmatprep.subr.mxu0 0.0
      %619 = vmatpush1.msra.mxu0 %v413
      %620 = vmatprep.subr.mxu0 0.0
      %621 = vmatpush1.msra.mxu0 %v414
      %622 = vmatprep.subr.mxu0 0.0
      %623 = vmatpush1.msra.mxu0 %v415
      %624 = vmatprep.subr.mxu0 0.0
      %625 = vmatpush1.msra.mxu0 0.0
      %626 = vmatprep.subr.mxu0 0.0
      %627 = vmatpush1.msra.mxu0 0.0
      %628 = vmatprep.subr.mxu0 0.0
      %629 = vmatpush1.msra.mxu0 0.0
      %630 = vmatprep.subr.mxu0 0.0
      %631 = vmatpush1.msra.mxu0 0.0
      %632 = vmatprep.subr.mxu0 0.0
      %633 = vmatpush1.msra.mxu0 0.0
      %634 = vmatprep.subr.mxu0 0.0
      %635 = vmatpush1.msra.mxu0 0.0
      %636 = vmatprep.subr.mxu0 0.0
      %637 = vmatpush1.msra.mxu0 0.0
      %638 = vmatprep.subr.mxu0 0.0
      %639 = vmatpush1.msra.mxu0 0.0
      %640 = vmatprep.subr.mxu0 0.0
      %641 = vmatpush1.msra.mxu0 0.0
      %642 = vmatprep.subr.mxu0 0.0
      %643 = vmatpush1.msra.mxu0 0.0
      %644 = vmatprep.subr.mxu0 0.0
      %645 = vmatpush1.msra.mxu0 0.0
      %646 = vmatprep.subr.mxu0 0.0
      %647 = vmatpush1.msra.mxu0 0.0
      %648 = vmatprep.subr.mxu0 0.0
      %649 = vmatpush1.msra.mxu0 0.0
      %650 = vmatprep.subr.mxu0 0.0
      %651 = vmatpush1.msra.mxu0 0.0
      %652 = vmatprep.subr.mxu0 0.0
      %653 = vmatpush1.msra.mxu0 0.0
      %654 = vmatprep.subr.mxu0 0.0
      %655 = vmatpush1.msra.mxu0 0.0
      %656 = vmatprep.mubr.f32.mxu0 0.0
      %657 = vmatmul.mubr.f32.gmra.mrb[0].mxu0 %v399
      %v658 = vpop.f32.mrb[0].mxu0
      %v659 = vadd.f32 0.0, %v658
      %v660 = vpop.f32.mrb[0].mxu0
      %661 = vdwg.mxu0
      %662 = vmatprep.subr.mxu0 0.0
      %663 = vmatpush1.msra.mxu0 %v416
      %664 = vmatprep.subr.mxu0 0.0
      %665 = vmatpush1.msra.mxu0 %v417
      %666 = vmatprep.subr.mxu0 0.0
      %667 = vmatpush1.msra.mxu0 %v418
      %668 = vmatprep.subr.mxu0 0.0
      %669 = vmatpush1.msra.mxu0 %v419
      %670 = vmatprep.subr.mxu0 0.0
      %671 = vmatpush1.msra.mxu0 %v420
      %672 = vmatprep.subr.mxu0 0.0
      %673 = vmatpush1.msra.mxu0 %v421
      %674 = vmatprep.subr.mxu0 0.0
      %675 = vmatpush1.msra.mxu0 %v422
      %676 = vmatprep.subr.mxu0 0.0
      %677 = vmatpush1.msra.mxu0 %v423
      %678 = vmatprep.subr.mxu0 0.0
      %679 = vmatpush1.msra.mxu0 %v424
      %680 = vmatprep.subr.mxu0 0.0
      %681 = vmatpush1.msra.mxu0 %v425
      %682 = vmatprep.subr.mxu0 0.0
      %683 = vmatpush1.msra.mxu0 %v426
      %684 = vmatprep.subr.mxu0 0.0
      %685 = vmatpush1.msra.mxu0 %v427
      %686 = vmatprep.subr.mxu0 0.0
      %687 = vmatpush1.msra.mxu0 %v428
      %688 = vmatprep.subr.mxu0 0.0
      %689 = vmatpush1.msra.mxu0 %v429
      %690 = vmatprep.subr.mxu0 0.0
      %691 = vmatpush1.msra.mxu0 %v430
      %692 = vmatprep.subr.mxu0 0.0
      %693 = vmatpush1.msra.mxu0 %v431
      %694 = vmatprep.subr.mxu0 0.0
      %695 = vmatpush1.msra.mxu0 0.0
      %696 = vmatprep.subr.mxu0 0.0
      %697 = vmatpush1.msra.mxu0 0.0
      %698 = vmatprep.subr.mxu0 0.0
      %699 = vmatpush1.msra.mxu0 0.0
      %700 = vmatprep.subr.mxu0 0.0
      %701 = vmatpush1.msra.mxu0 0.0
      %702 = vmatprep.subr.mxu0 0.0
      %703 = vmatpush1.msra.mxu0 0.0
      %704 = vmatprep.subr.mxu0 0.0
      %705 = vmatpush1.msra.mxu0 0.0
      %706 = vmatprep.subr.mxu0 0.0
      %707 = vmatpush1.msra.mxu0 0.0
      %708 = vmatprep.subr.mxu0 0.0
      %709 = vmatpush1.msra.mxu0 0.0
      %710 = vmatprep.subr.mxu0 0.0
      %711 = vmatpush1.msra.mxu0 0.0
      %712 = vmatprep.subr.mxu0 0.0
      %713 = vmatpush1.msra.mxu0 0.0
      %714 = vmatprep.subr.mxu0 0.0
      %715 = vmatpush1.msra.mxu0 0.0
      %716 = vmatprep.subr.mxu0 0.0
      %717 = vmatpush1.msra.mxu0 0.0
      %718 = vmatprep.subr.mxu0 0.0
      %719 = vmatpush1.msra.mxu0 0.0
      %720 = vmatprep.subr.mxu0 0.0
      %721 = vmatpush1.msra.mxu0 0.0
      %722 = vmatprep.subr.mxu0 0.0
      %723 = vmatpush1.msra.mxu0 0.0
      %724 = vmatprep.subr.mxu0 0.0
      %725 = vmatpush1.msra.mxu0 0.0
      %726 = vmatprep.mubr.f32.mxu0 0.0
      %727 = vmatmul.mubr.f32.gmra.mrb[0].mxu0 %v399
      %v728 = vpop.f32.mrb[0].mxu0
      %v729 = vadd.f32 0.0, %v728
      %v730 = vpop.f32.mrb[0].mxu0
      %731 = vdwg.mxu0
      %732 = vmatprep.subr.mxu0 0.0
      %733 = vmatpush1.msra.mxu0 %v432
      %734 = vmatprep.subr.mxu0 0.0
      %735 = vmatpush1.msra.mxu0 %v433
      %736 = vmatprep.subr.mxu0 0.0
      %737 = vmatpush1.msra.mxu0 %v434
      %738 = vmatprep.subr.mxu0 0.0
      %739 = vmatpush1.msra.mxu0 %v435
      %740 = vmatprep.subr.mxu0 0.0
      %741 = vmatpush1.msra.mxu0 %v436
      %742 = vmatprep.subr.mxu0 0.0
      %743 = vmatpush1.msra.mxu0 %v437
      %744 = vmatprep.subr.mxu0 0.0
      %745 = vmatpush1.msra.mxu0 %v438
      %746 = vmatprep.subr.mxu0 0.0
      %747 = vmatpush1.msra.mxu0 %v439
      %748 = vmatprep.subr.mxu0 0.0
      %749 = vmatpush1.msra.mxu0 %v440
      %750 = vmatprep.subr.mxu0 0.0
      %751 = vmatpush1.msra.mxu0 %v441
      %752 = vmatprep.subr.mxu0 0.0
      %753 = vmatpush1.msra.mxu0 %v442
      %754 = vmatprep.subr.mxu0 0.0
      %755 = vmatpush1.msra.mxu0 %v443
      %756 = vmatprep.subr.mxu0 0.0
      %757 = vmatpush1.msra.mxu0 %v444
      %758 = vmatprep.subr.mxu0 0.0
      %759 = vmatpush1.msra.mxu0 %v445
      %760 = vmatprep.subr.mxu0 0.0
      %761 = vmatpush1.msra.mxu0 %v446
      %762 = vmatprep.subr.mxu0 0.0
      %763 = vmatpush1.msra.mxu0 %v447
      %764 = vmatprep.subr.mxu0 0.0
      %765 = vmatpush1.msra.mxu0 0.0
      %766 = vmatprep.subr.mxu0 0.0
      %767 = vmatpush1.msra.mxu0 0.0
      %768 = vmatprep.subr.mxu0 0.0
      %769 = vmatpush1.msra.mxu0 0.0
      %770 = vmatprep.subr.mxu0 0.0
      %771 = vmatpush1.msra.mxu0 0.0
      %772 = vmatprep.subr.mxu0 0.0
      %773 = vmatpush1.msra.mxu0 0.0
      %774 = vmatprep.subr.mxu0 0.0
      %775 = vmatpush1.msra.mxu0 0.0
      %776 = vmatprep.subr.mxu0 0.0
      %777 = vmatpush1.msra.mxu0 0.0
      %778 = vmatprep.subr.mxu0 0.0
      %779 = vmatpush1.msra.mxu0 0.0
      %780 = vmatprep.subr.mxu0 0.0
      %781 = vmatpush1.msra.mxu0 0.0
      %782 = vmatprep.subr.mxu0 0.0
      %783 = vmatpush1.msra.mxu0 0.0
      %784 = vmatprep.subr.mxu0 0.0
      %785 = vmatpush1.msra.mxu0 0.0
      %786 = vmatprep.subr.mxu0 0.0
      %787 = vmatpush1.msra.mxu0 0.0
      %788 = vmatprep.subr.mxu0 0.0
      %789 = vmatpush1.msra.mxu0 0.0
      %790 = vmatprep.subr.mxu0 0.0
      %791 = vmatpush1.msra.mxu0 0.0
      %792 = vmatprep.subr.mxu0 0.0
      %793 = vmatpush1.msra.mxu0 0.0
      %794 = vmatprep.subr.mxu0 0.0
      %795 = vmatpush1.msra.mxu0 0.0
      %796 = vmatprep.mubr.f32.mxu0 0.0
      %797 = vmatmul.mubr.f32.gmra.mrb[0].mxu0 %v399
      %v798 = vpop.f32.mrb[0].mxu0
      %v799 = vadd.f32 0.0, %v798
      %v800 = vpop.f32.mrb[0].mxu0
      %801 = vdwg.mxu0
      %802 = vmatprep.subr.mxu0 0.0
      %803 = vmatpush1.msra.mxu0 %v448
      %804 = vmatprep.subr.mxu0 0.0
      %805 = vmatpush1.msra.mxu0 %v449
      %806 = vmatprep.subr.mxu0 0.0
      %807 = vmatpush1.msra.mxu0 %v450
      %808 = vmatprep.subr.mxu0 0.0
      %809 = vmatpush1.msra.mxu0 %v451
      %810 = vmatprep.subr.mxu0 0.0
      %811 = vmatpush1.msra.mxu0 %v452
      %812 = vmatprep.subr.mxu0 0.0
      %813 = vmatpush1.msra.mxu0 %v453
      %814 = vmatprep.subr.mxu0 0.0
      %815 = vmatpush1.msra.mxu0 %v454
      %816 = vmatprep.subr.mxu0 0.0
      %817 = vmatpush1.msra.mxu0 %v455
      %818 = vmatprep.subr.mxu0 0.0
      %819 = vmatpush1.msra.mxu0 %v456
      %820 = vmatprep.subr.mxu0 0.0
      %821 = vmatpush1.msra.mxu0 %v457
      %822 = vmatprep.subr.mxu0 0.0
      %823 = vmatpush1.msra.mxu0 %v458
      %824 = vmatprep.subr.mxu0 0.0
      %825 = vmatpush1.msra.mxu0 %v459
      %826 = vmatprep.subr.mxu0 0.0
      %827 = vmatpush1.msra.mxu0 %v460
      %828 = vmatprep.subr.mxu0 0.0
      %829 = vmatpush1.msra.mxu0 %v461
      %830 = vmatprep.subr.mxu0 0.0
      %831 = vmatpush1.msra.mxu0 %v462
      %832 = vmatprep.subr.mxu0 0.0
      %833 = vmatpush1.msra.mxu0 %v463
      %834 = vmatprep.subr.mxu0 0.0
      %835 = vmatpush1.msra.mxu0 0.0
      %836 = vmatprep.subr.mxu0 0.0
      %837 = vmatpush1.msra.mxu0 0.0
      %838 = vmatprep.subr.mxu0 0.0
      %839 = vmatpush1.msra.mxu0 0.0
      %840 = vmatprep.subr.mxu0 0.0
      %841 = vmatpush1.msra.mxu0 0.0
      %842 = vmatprep.subr.mxu0 0.0
      %843 = vmatpush1.msra.mxu0 0.0
      %844 = vmatprep.subr.mxu0 0.0
      %845 = vmatpush1.msra.mxu0 0.0
      %846 = vmatprep.subr.mxu0 0.0
      %847 = vmatpush1.msra.mxu0 0.0
      %848 = vmatprep.subr.mxu0 0.0
      %849 = vmatpush1.msra.mxu0 0.0
      %850 = vmatprep.subr.mxu0 0.0
      %851 = vmatpush1.msra.mxu0 0.0
      %852 = vmatprep.subr.mxu0 0.0
      %853 = vmatpush1.msra.mxu0 0.0
      %854 = vmatprep.subr.mxu0 0.0
      %855 = vmatpush1.msra.mxu0 0.0
      %856 = vmatprep.subr.mxu0 0.0
      %857 = vmatpush1.msra.mxu0 0.0
      %858 = vmatprep.subr.mxu0 0.0
      %859 = vmatpush1.msra.mxu0 0.0
      %860 = vmatprep.subr.mxu0 0.0
      %861 = vmatpush1.msra.mxu0 0.0
      %862 = vmatprep.subr.mxu0 0.0
      %863 = vmatpush1.msra.mxu0 0.0
      %864 = vmatprep.subr.mxu0 0.0
      %865 = vmatpush1.msra.mxu0 0.0
      %866 = vmatprep.mubr.f32.mxu0 0.0
      %867 = vmatmul.mubr.f32.gmra.mrb[0].mxu0 %v399
      %v868 = vpop.f32.mrb[0].mxu0
      %v869 = vadd.f32 0.0, %v868
      %v870 = vpop.f32.mrb[0].mxu0
      %871 = vdwg.mxu0
      %872 = vmatprep.subr.mxu0 0.0
      %873 = vmatpush1.msra.mxu0 %v464
      %874 = vmatprep.subr.mxu0 0.0
      %875 = vmatpush1.msra.mxu0 %v465
      %876 = vmatprep.subr.mxu0 0.0
      %877 = vmatpush1.msra.mxu0 %v466
      %878 = vmatprep.subr.mxu0 0.0
      %879 = vmatpush1.msra.mxu0 %v467
      %880 = vmatprep.subr.mxu0 0.0
      %881 = vmatpush1.msra.mxu0 %v468
      %882 = vmatprep.subr.mxu0 0.0
      %883 = vmatpush1.msra.mxu0 %v469
      %884 = vmatprep.subr.mxu0 0.0
      %885 = vmatpush1.msra.mxu0 %v470
      %886 = vmatprep.subr.mxu0 0.0
      %887 = vmatpush1.msra.mxu0 %v471
      %888 = vmatprep.subr.mxu0 0.0
      %889 = vmatpush1.msra.mxu0 %v472
      %890 = vmatprep.subr.mxu0 0.0
      %891 = vmatpush1.msra.mxu0 %v473
      %892 = vmatprep.subr.mxu0 0.0
      %893 = vmatpush1.msra.mxu0 %v474
      %894 = vmatprep.subr.mxu0 0.0
      %895 = vmatpush1.msra.mxu0 %v475
      %896 = vmatprep.subr.mxu0 0.0
      %897 = vmatpush1.msra.mxu0 %v476
      %898 = vmatprep.subr.mxu0 0.0
      %899 = vmatpush1.msra.mxu0 %v477
      %900 = vmatprep.subr.mxu0 0.0
      %901 = vmatpush1.msra.mxu0 %v478
      %902 = vmatprep.subr.mxu0 0.0
      %903 = vmatpush1.msra.mxu0 %v479
      %904 = vmatprep.subr.mxu0 0.0
      %905 = vmatpush1.msra.mxu0 0.0
      %906 = vmatprep.subr.mxu0 0.0
      %907 = vmatpush1.msra.mxu0 0.0
      %908 = vmatprep.subr.mxu0 0.0
      %909 = vmatpush1.msra.mxu0 0.0
      %910 = vmatprep.subr.mxu0 0.0
      %911 = vmatpush1.msra.mxu0 0.0
      %912 = vmatprep.subr.mxu0 0.0
      %913 = vmatpush1.msra.mxu0 0.0
      %914 = vmatprep.subr.mxu0 0.0
      %915 = vmatpush1.msra.mxu0 0.0
      %916 = vmatprep.subr.mxu0 0.0
      %917 = vmatpush1.msra.mxu0 0.0
      %918 = vmatprep.subr.mxu0 0.0
      %919 = vmatpush1.msra.mxu0 0.0
      %920 = vmatprep.subr.mxu0 0.0
      %921 = vmatpush1.msra.mxu0 0.0
      %922 = vmatprep.subr.mxu0 0.0
      %923 = vmatpush1.msra.mxu0 0.0
      %924 = vmatprep.subr.mxu0 0.0
      %925 = vmatpush1.msra.mxu0 0.0
      %926 = vmatprep.subr.mxu0 0.0
      %927 = vmatpush1.msra.mxu0 0.0
      %928 = vmatprep.subr.mxu0 0.0
      %929 = vmatpush1.msra.mxu0 0.0
      %930 = vmatprep.subr.mxu0 0.0
      %931 = vmatpush1.msra.mxu0 0.0
      %932 = vmatprep.subr.mxu0 0.0
      %933 = vmatpush1.msra.mxu0 0.0
      %934 = vmatprep.subr.mxu0 0.0
      %935 = vmatpush1.msra.mxu0 0.0
      %936 = vmatprep.mubr.f32.mxu0 0.0
      %937 = vmatmul.mubr.f32.gmra.mrb[0].mxu0 %v399
      %v938 = vpop.f32.mrb[0].mxu0
      %v939 = vadd.f32 0.0, %v938
      %v940 = vpop.f32.mrb[0].mxu0
      %941 = vdwg.mxu0
      %942 = vmatprep.subr.mxu0 0.0
      %943 = vmatpush1.msra.mxu0 %v480
      %944 = vmatprep.subr.mxu0 0.0
      %945 = vmatpush1.msra.mxu0 %v481
      %946 = vmatprep.subr.mxu0 0.0
      %947 = vmatpush1.msra.mxu0 %v482
      %948 = vmatprep.subr.mxu0 0.0
      %949 = vmatpush1.msra.mxu0 %v483
      %950 = vmatprep.subr.mxu0 0.0
      %951 = vmatpush1.msra.mxu0 %v484
      %952 = vmatprep.subr.mxu0 0.0
      %953 = vmatpush1.msra.mxu0 %v485
      %954 = vmatprep.subr.mxu0 0.0
      %955 = vmatpush1.msra.mxu0 %v486
      %956 = vmatprep.subr.mxu0 0.0
      %957 = vmatpush1.msra.mxu0 %v487
      %958 = vmatprep.subr.mxu0 0.0
      %959 = vmatpush1.msra.mxu0 %v488
      %960 = vmatprep.subr.mxu0 0.0
      %961 = vmatpush1.msra.mxu0 %v489
      %962 = vmatprep.subr.mxu0 0.0
      %963 = vmatpush1.msra.mxu0 %v490
      %964 = vmatprep.subr.mxu0 0.0
      %965 = vmatpush1.msra.mxu0 %v491
      %966 = vmatprep.subr.mxu0 0.0
      %967 = vmatpush1.msra.mxu0 %v492
      %968 = vmatprep.subr.mxu0 0.0
      %969 = vmatpush1.msra.mxu0 %v493
      %970 = vmatprep.subr.mxu0 0.0
      %971 = vmatpush1.msra.mxu0 %v494
      %972 = vmatprep.subr.mxu0 0.0
      %973 = vmatpush1.msra.mxu0 %v495
      %974 = vmatprep.subr.mxu0 0.0
      %975 = vmatpush1.msra.mxu0 0.0
      %976 = vmatprep.subr.mxu0 0.0
      %977 = vmatpush1.msra.mxu0 0.0
      %978 = vmatprep.subr.mxu0 0.0
      %979 = vmatpush1.msra.mxu0 0.0
      %980 = vmatprep.subr.mxu0 0.0
      %981 = vmatpush1.msra.mxu0 0.0
      %982 = vmatprep.subr.mxu0 0.0
      %983 = vmatpush1.msra.mxu0 0.0
      %984 = vmatprep.subr.mxu0 0.0
      %985 = vmatpush1.msra.mxu0 0.0
      %986 = vmatprep.subr.mxu0 0.0
      %987 = vmatpush1.msra.mxu0 0.0
      %988 = vmatprep.subr.mxu0 0.0
      %989 = vmatpush1.msra.mxu0 0.0
      %990 = vmatprep.subr.mxu0 0.0
      %991 = vmatpush1.msra.mxu0 0.0
      %992 = vmatprep.subr.mxu0 0.0
      %993 = vmatpush1.msra.mxu0 0.0
      %994 = vmatprep.subr.mxu0 0.0
      %995 = vmatpush1.msra.mxu0 0.0
      %996 = vmatprep.subr.mxu0 0.0
      %997 = vmatpush1.msra.mxu0 0.0
      %998 = vmatprep.subr.mxu0 0.0
      %999 = vmatpush1.msra.mxu0 0.0
      %1000 = vmatprep.subr.mxu0 0.0
      %1001 = vmatpush1.msra.mxu0 0.0
      %1002 = vmatprep.subr.mxu0 0.0
      %1003 = vmatpush1.msra.mxu0 0.0
      %1004 = vmatprep.subr.mxu0 0.0
      %1005 = vmatpush1.msra.mxu0 0.0
      %1006 = vmatprep.mubr.f32.mxu0 0.0
      %1007 = vmatmul.mubr.f32.gmra.mrb[0].mxu0 %v399
      %v1008 = vpop.f32.mrb[0].mxu0
      %v1009 = vadd.f32 0.0, %v1008
      %v1010 = vpop.f32.mrb[0].mxu0
      %1011 = vdwg.mxu0
      %1012 = vmatprep.subr.mxu0 0.0
      %1013 = vmatpush1.msra.mxu0 %v496
      %1014 = vmatprep.subr.mxu0 0.0
      %1015 = vmatpush1.msra.mxu0 %v497
      %1016 = vmatprep.subr.mxu0 0.0
      %1017 = vmatpush1.msra.mxu0 %v498
      %1018 = vmatprep.subr.mxu0 0.0
      %1019 = vmatpush1.msra.mxu0 %v499
      %1020 = vmatprep.subr.mxu0 0.0
      %1021 = vmatpush1.msra.mxu0 %v500
      %1022 = vmatprep.subr.mxu0 0.0
      %1023 = vmatpush1.msra.mxu0 %v501
      %1024 = vmatprep.subr.mxu0 0.0
      %1025 = vmatpush1.msra.mxu0 %v502
      %1026 = vmatprep.subr.mxu0 0.0
      %1027 = vmatpush1.msra.mxu0 %v503
      %1028 = vmatprep.subr.mxu0 0.0
      %1029 = vmatpush1.msra.mxu0 %v504
      %1030 = vmatprep.subr.mxu0 0.0
      %1031 = vmatpush1.msra.mxu0 %v505
      %1032 = vmatprep.subr.mxu0 0.0
      %1033 = vmatpush1.msra.mxu0 %v506
      %1034 = vmatprep.subr.mxu0 0.0
      %1035 = vmatpush1.msra.mxu0 %v507
      %1036 = vmatprep.subr.mxu0 0.0
      %1037 = vmatpush1.msra.mxu0 %v508
      %1038 = vmatprep.subr.mxu0 0.0
      %1039 = vmatpush1.msra.mxu0 %v509
      %1040 = vmatprep.subr.mxu0 0.0
      %1041 = vmatpush1.msra.mxu0 %v510
      %1042 = vmatprep.subr.mxu0 0.0
      %1043 = vmatpush1.msra.mxu0 %v511
      %1044 = vmatprep.subr.mxu0 0.0
      %1045 = vmatpush1.msra.mxu0 0.0
      %1046 = vmatprep.subr.mxu0 0.0
      %1047 = vmatpush1.msra.mxu0 0.0
      %1048 = vmatprep.subr.mxu0 0.0
      %1049 = vmatpush1.msra.mxu0 0.0
      %1050 = vmatprep.subr.mxu0 0.0
      %1051 = vmatpush1.msra.mxu0 0.0
      %1052 = vmatprep.subr.mxu0 0.0
      %1053 = vmatpush1.msra.mxu0 0.0
      %1054 = vmatprep.subr.mxu0 0.0
      %1055 = vmatpush1.msra.mxu0 0.0
      %1056 = vmatprep.subr.mxu0 0.0
      %1057 = vmatpush1.msra.mxu0 0.0
      %1058 = vmatprep.subr.mxu0 0.0
      %1059 = vmatpush1.msra.mxu0 0.0
      %1060 = vmatprep.subr.mxu0 0.0
      %1061 = vmatpush1.msra.mxu0 0.0
      %1062 = vmatprep.subr.mxu0 0.0
      %1063 = vmatpush1.msra.mxu0 0.0
      %1064 = vmatprep.subr.mxu0 0.0
      %1065 = vmatpush1.msra.mxu0 0.0
      %1066 = vmatprep.subr.mxu0 0.0
      %1067 = vmatpush1.msra.mxu0 0.0
      %1068 = vmatprep.subr.mxu0 0.0
      %1069 = vmatpush1.msra.mxu0 0.0
      %1070 = vmatprep.subr.mxu0 0.0
      %1071 = vmatpush1.msra.mxu0 0.0
      %1072 = vmatprep.subr.mxu0 0.0
      %1073 = vmatpush1.msra.mxu0 0.0
      %1074 = vmatprep.subr.mxu0 0.0
      %1075 = vmatpush1.msra.mxu0 0.0
      %1076 = vmatprep.mubr.f32.mxu0 0.0
      %1077 = vmatmul.mubr.f32.gmra.mrb[0].mxu0 %v399
      %v1078 = vpop.f32.mrb[0].mxu0
      %v1079 = vadd.f32 0.0, %v1078
      %v1080 = vpop.f32.mrb[0].mxu0
      %1081 = vdwg.mxu0
      %1082 = vmatprep.subr.mxu0 0.0
      %1083 = vmatpush1.msra.mxu0 %v512
      %1084 = vmatprep.subr.mxu0 0.0
      %1085 = vmatpush1.msra.mxu0 %v513
      %1086 = vmatprep.subr.mxu0 0.0
      %1087 = vmatpush1.msra.mxu0 %v514
      %1088 = vmatprep.subr.mxu0 0.0
      %1089 = vmatpush1.msra.mxu0 %v515
      %1090 = vmatprep.subr.mxu0 0.0
      %1091 = vmatpush1.msra.mxu0 %v516
      %1092 = vmatprep.subr.mxu0 0.0
      %1093 = vmatpush1.msra.mxu0 %v517
      %1094 = vmatprep.subr.mxu0 0.0
      %1095 = vmatpush1.msra.mxu0 %v518
      %1096 = vmatprep.subr.mxu0 0.0
      %1097 = vmatpush1.msra.mxu0 %v519
      %1098 = vmatprep.subr.mxu0 0.0
      %1099 = vmatpush1.msra.mxu0 %v520
      %1100 = vmatprep.subr.mxu0 0.0
      %1101 = vmatpush1.msra.mxu0 %v521
      %1102 = vmatprep.subr.mxu0 0.0
      %1103 = vmatpush1.msra.mxu0 %v522
      %1104 = vmatprep.subr.mxu0 0.0
      %1105 = vmatpush1.msra.mxu0 %v523
      %1106 = vmatprep.subr.mxu0 0.0
      %1107 = vmatpush1.msra.mxu0 %v524
      %1108 = vmatprep.subr.mxu0 0.0
      %1109 = vmatpush1.msra.mxu0 %v525
      %1110 = vmatprep.subr.mxu0 0.0
      %1111 = vmatpush1.msra.mxu0 %v526
      %1112 = vmatprep.subr.mxu0 0.0
      %1113 = vmatpush1.msra.mxu0 %v527
      %1114 = vmatprep.subr.mxu0 0.0
      %1115 = vmatpush1.msra.mxu0 0.0
      %1116 = vmatprep.subr.mxu0 0.0
      %1117 = vmatpush1.msra.mxu0 0.0
      %1118 = vmatprep.subr.mxu0 0.0
      %1119 = vmatpush1.msra.mxu0 0.0
      %1120 = vmatprep.subr.mxu0 0.0
      %1121 = vmatpush1.msra.mxu0 0.0
      %1122 = vmatprep.subr.mxu0 0.0
      %1123 = vmatpush1.msra.mxu0 0.0
      %1124 = vmatprep.subr.mxu0 0.0
      %1125 = vmatpush1.msra.mxu0 0.0
      %1126 = vmatprep.subr.mxu0 0.0
      %1127 = vmatpush1.msra.mxu0 0.0
      %1128 = vmatprep.subr.mxu0 0.0
      %1129 = vmatpush1.msra.mxu0 0.0
      %1130 = vmatprep.subr.mxu0 0.0
      %1131 = vmatpush1.msra.mxu0 0.0
      %1132 = vmatprep.subr.mxu0 0.0
      %1133 = vmatpush1.msra.mxu0 0.0
      %1134 = vmatprep.subr.mxu0 0.0
      %1135 = vmatpush1.msra.mxu0 0.0
      %1136 = vmatprep.subr.mxu0 0.0
      %1137 = vmatpush1.msra.mxu0 0.0
      %1138 = vmatprep.subr.mxu0 0.0
      %1139 = vmatpush1.msra.mxu0 0.0
      %1140 = vmatprep.subr.mxu0 0.0
      %1141 = vmatpush1.msra.mxu0 0.0
      %1142 = vmatprep.subr.mxu0 0.0
      %1143 = vmatpush1.msra.mxu0 0.0
      %1144 = vmatprep.subr.mxu0 0.0
      %1145 = vmatpush1.msra.mxu0 0.0
      %1146 = vmatprep.mubr.f32.mxu0 0.0
      %1147 = vmatmul.mubr.f32.gmra.mrb[0].mxu0 %v399
      %v1148 = vpop.f32.mrb[0].mxu0
      %v1149 = vadd.f32 0.0, %v1148
      %v1150 = vpop.f32.mrb[0].mxu0
      %1151 = vdwg.mxu0
      %1152 = vmatprep.subr.mxu0 0.0
      %1153 = vmatpush1.msra.mxu0 %v528
      %1154 = vmatprep.subr.mxu0 0.0
      %1155 = vmatpush1.msra.mxu0 %v529
      %1156 = vmatprep.subr.mxu0 0.0
      %1157 = vmatpush1.msra.mxu0 %v530
      %1158 = vmatprep.subr.mxu0 0.0
      %1159 = vmatpush1.msra.mxu0 %v531
      %1160 = vmatprep.subr.mxu0 0.0
      %1161 = vmatpush1.msra.mxu0 %v532
      %1162 = vmatprep.subr.mxu0 0.0
      %1163 = vmatpush1.msra.mxu0 %v533
      %1164 = vmatprep.subr.mxu0 0.0
      %1165 = vmatpush1.msra.mxu0 %v534
      %1166 = vmatprep.subr.mxu0 0.0
      %1167 = vmatpush1.msra.mxu0 %v535
      %1168 = vmatprep.subr.mxu0 0.0
      %1169 = vmatpush1.msra.mxu0 %v536
      %1170 = vmatprep.subr.mxu0 0.0
      %1171 = vmatpush1.msra.mxu0 %v537
      %1172 = vmatprep.subr.mxu0 0.0
      %1173 = vmatpush1.msra.mxu0 %v538
      %1174 = vmatprep.subr.mxu0 0.0
      %1175 = vmatpush1.msra.mxu0 %v539
      %1176 = vmatprep.subr.mxu0 0.0
      %1177 = vmatpush1.msra.mxu0 %v540
      %1178 = vmatprep.subr.mxu0 0.0
      %1179 = vmatpush1.msra.mxu0 %v541
      %1180 = vmatprep.subr.mxu0 0.0
      %1181 = vmatpush1.msra.mxu0 %v542
      %1182 = vmatprep.subr.mxu0 0.0
      %1183 = vmatpush1.msra.mxu0 %v543
      %1184 = vmatprep.subr.mxu0 0.0
      %1185 = vmatpush1.msra.mxu0 0.0
      %1186 = vmatprep.subr.mxu0 0.0
      %1187 = vmatpush1.msra.mxu0 0.0
      %1188 = vmatprep.subr.mxu0 0.0
      %1189 = vmatpush1.msra.mxu0 0.0
      %1190 = vmatprep.subr.mxu0 0.0
      %1191 = vmatpush1.msra.mxu0 0.0
      %1192 = vmatprep.subr.mxu0 0.0
      %1193 = vmatpush1.msra.mxu0 0.0
      %1194 = vmatprep.subr.mxu0 0.0
      %1195 = vmatpush1.msra.mxu0 0.0
      %1196 = vmatprep.subr.mxu0 0.0
      %1197 = vmatpush1.msra.mxu0 0.0
      %1198 = vmatprep.subr.mxu0 0.0
      %1199 = vmatpush1.msra.mxu0 0.0
      %1200 = vmatprep.subr.mxu0 0.0
      %1201 = vmatpush1.msra.mxu0 0.0
      %1202 = vmatprep.subr.mxu0 0.0
      %1203 = vmatpush1.msra.mxu0 0.0
      %1204 = vmatprep.subr.mxu0 0.0
      %1205 = vmatpush1.msra.mxu0 0.0
      %1206 = vmatprep.subr.mxu0 0.0
      %1207 = vmatpush1.msra.mxu0 0.0
      %1208 = vmatprep.subr.mxu0 0.0
      %1209 = vmatpush1.msra.mxu0 0.0
      %1210 = vmatprep.subr.mxu0 0.0
      %1211 = vmatpush1.msra.mxu0 0.0
      %1212 = vmatprep.subr.mxu0 0.0
      %1213 = vmatpush1.msra.mxu0 0.0
      %1214 = vmatprep.subr.mxu0 0.0
      %1215 = vmatpush1.msra.mxu0 0.0
      %1216 = vmatprep.mubr.f32.mxu0 0.0
      %1217 = vmatmul.mubr.f32.gmra.mrb[0].mxu0 %v399
      %v1218 = vpop.f32.mrb[0].mxu0
      %v1219 = vadd.f32 0.0, %v1218
      %v1220 = vpop.f32.mrb[0].mxu0
      %1221 = vdwg.mxu0
      %1222 = vmatprep.subr.mxu0 0.0
      %1223 = vmatpush1.msra.mxu0 %v544
      %1224 = vmatprep.subr.mxu0 0.0
      %1225 = vmatpush1.msra.mxu0 %v545
      %1226 = vmatprep.subr.mxu0 0.0
      %1227 = vmatpush1.msra.mxu0 %v546
      %1228 = vmatprep.subr.mxu0 0.0
      %1229 = vmatpush1.msra.mxu0 %v547
      %1230 = vmatprep.subr.mxu0 0.0
      %1231 = vmatpush1.msra.mxu0 %v548
      %1232 = vmatprep.subr.mxu0 0.0
      %1233 = vmatpush1.msra.mxu0 %v549
      %1234 = vmatprep.subr.mxu0 0.0
      %1235 = vmatpush1.msra.mxu0 %v550
      %1236 = vmatprep.subr.mxu0 0.0
      %1237 = vmatpush1.msra.mxu0 %v551
      %1238 = vmatprep.subr.mxu0 0.0
      %1239 = vmatpush1.msra.mxu0 %v552
      %1240 = vmatprep.subr.mxu0 0.0
      %1241 = vmatpush1.msra.mxu0 %v553
      %1242 = vmatprep.subr.mxu0 0.0
      %1243 = vmatpush1.msra.mxu0 %v554
      %1244 = vmatprep.subr.mxu0 0.0
      %1245 = vmatpush1.msra.mxu0 %v555
      %1246 = vmatprep.subr.mxu0 0.0
      %1247 = vmatpush1.msra.mxu0 %v556
      %1248 = vmatprep.subr.mxu0 0.0
      %1249 = vmatpush1.msra.mxu0 %v557
      %1250 = vmatprep.subr.mxu0 0.0
      %1251 = vmatpush1.msra.mxu0 %v558
      %1252 = vmatprep.subr.mxu0 0.0
      %1253 = vmatpush1.msra.mxu0 %v559
      %1254 = vmatprep.subr.mxu0 0.0
      %1255 = vmatpush1.msra.mxu0 0.0
      %1256 = vmatprep.subr.mxu0 0.0
      %1257 = vmatpush1.msra.mxu0 0.0
      %1258 = vmatprep.subr.mxu0 0.0
      %1259 = vmatpush1.msra.mxu0 0.0
      %1260 = vmatprep.subr.mxu0 0.0
      %1261 = vmatpush1.msra.mxu0 0.0
      %1262 = vmatprep.subr.mxu0 0.0
      %1263 = vmatpush1.msra.mxu0 0.0
      %1264 = vmatprep.subr.mxu0 0.0
      %1265 = vmatpush1.msra.mxu0 0.0
      %1266 = vmatprep.subr.mxu0 0.0
      %1267 = vmatpush1.msra.mxu0 0.0
      %1268 = vmatprep.subr.mxu0 0.0
      %1269 = vmatpush1.msra.mxu0 0.0
      %1270 = vmatprep.subr.mxu0 0.0
      %1271 = vmatpush1.msra.mxu0 0.0
      %1272 = vmatprep.subr.mxu0 0.0
      %1273 = vmatpush1.msra.mxu0 0.0
      %1274 = vmatprep.subr.mxu0 0.0
      %1275 = vmatpush1.msra.mxu0 0.0
      %1276 = vmatprep.subr.mxu0 0.0
      %1277 = vmatpush1.msra.mxu0 0.0
      %1278 = vmatprep.subr.mxu0 0.0
      %1279 = vmatpush1.msra.mxu0 0.0
      %1280 = vmatprep.subr.mxu0 0.0
      %1281 = vmatpush1.msra.mxu0 0.0
      %1282 = vmatprep.subr.mxu0 0.0
      %1283 = vmatpush1.msra.mxu0 0.0
      %1284 = vmatprep.subr.mxu0 0.0
      %1285 = vmatpush1.msra.mxu0 0.0
      %1286 = vmatprep.mubr.f32.mxu0 0.0
      %1287 = vmatmul.mubr.f32.gmra.mrb[0].mxu0 %v399
      %v1288 = vpop.f32.mrb[0].mxu0
      %v1289 = vadd.f32 0.0, %v1288
      %v1290 = vpop.f32.mrb[0].mxu0
      %1291 = vdwg.mxu0
      %1292 = vmatprep.subr.mxu0 0.0
      %1293 = vmatpush1.msra.mxu0 %v560
      %1294 = vmatprep.subr.mxu0 0.0
      %1295 = vmatpush1.msra.mxu0 %v561
      %1296 = vmatprep.subr.mxu0 0.0
      %1297 = vmatpush1.msra.mxu0 %v562
      %1298 = vmatprep.subr.mxu0 0.0
      %1299 = vmatpush1.msra.mxu0 %v563
      %1300 = vmatprep.subr.mxu0 0.0
      %1301 = vmatpush1.msra.mxu0 %v564
      %1302 = vmatprep.subr.mxu0 0.0
      %1303 = vmatpush1.msra.mxu0 %v565
      %1304 = vmatprep.subr.mxu0 0.0
      %1305 = vmatpush1.msra.mxu0 %v566
      %1306 = vmatprep.subr.mxu0 0.0
      %1307 = vmatpush1.msra.mxu0 %v567
      %1308 = vmatprep.subr.mxu0 0.0
      %1309 = vmatpush1.msra.mxu0 %v568
      %1310 = vmatprep.subr.mxu0 0.0
      %1311 = vmatpush1.msra.mxu0 %v569
      %1312 = vmatprep.subr.mxu0 0.0
      %1313 = vmatpush1.msra.mxu0 %v570
      %1314 = vmatprep.subr.mxu0 0.0
      %1315 = vmatpush1.msra.mxu0 %v571
      %1316 = vmatprep.subr.mxu0 0.0
      %1317 = vmatpush1.msra.mxu0 %v572
      %1318 = vmatprep.subr.mxu0 0.0
      %1319 = vmatpush1.msra.mxu0 %v573
      %1320 = vmatprep.subr.mxu0 0.0
      %1321 = vmatpush1.msra.mxu0 %v574
      %1322 = vmatprep.subr.mxu0 0.0
      %1323 = vmatpush1.msra.mxu0 %v575
      %1324 = vmatprep.subr.mxu0 0.0
      %1325 = vmatpush1.msra.mxu0 0.0
      %1326 = vmatprep.subr.mxu0 0.0
      %1327 = vmatpush1.msra.mxu0 0.0
      %1328 = vmatprep.subr.mxu0 0.0
      %1329 = vmatpush1.msra.mxu0 0.0
      %1330 = vmatprep.subr.mxu0 0.0
      %1331 = vmatpush1.msra.mxu0 0.0
      %1332 = vmatprep.subr.mxu0 0.0
      %1333 = vmatpush1.msra.mxu0 0.0
      %1334 = vmatprep.subr.mxu0 0.0
      %1335 = vmatpush1.msra.mxu0 0.0
      %1336 = vmatprep.subr.mxu0 0.0
      %1337 = vmatpush1.msra.mxu0 0.0
      %1338 = vmatprep.subr.mxu0 0.0
      %1339 = vmatpush1.msra.mxu0 0.0
      %1340 = vmatprep.subr.mxu0 0.0
      %1341 = vmatpush1.msra.mxu0 0.0
      %1342 = vmatprep.subr.mxu0 0.0
      %1343 = vmatpush1.msra.mxu0 0.0
      %1344 = vmatprep.subr.mxu0 0.0
      %1345 = vmatpush1.msra.mxu0 0.0
      %1346 = vmatprep.subr.mxu0 0.0
      %1347 = vmatpush1.msra.mxu0 0.0
      %1348 = vmatprep.subr.mxu0 0.0
      %1349 = vmatpush1.msra.mxu0 0.0
      %1350 = vmatprep.subr.mxu0 0.0
      %1351 = vmatpush1.msra.mxu0 0.0
      %1352 = vmatprep.subr.mxu0 0.0
      %1353 = vmatpush1.msra.mxu0 0.0
      %1354 = vmatprep.subr.mxu0 0.0
      %1355 = vmatpush1.msra.mxu0 0.0
      %1356 = vmatprep.mubr.f32.mxu0 0.0
      %1357 = vmatmul.mubr.f32.gmra.mrb[0].mxu0 %v399
      %v1358 = vpop.f32.mrb[0].mxu0
      %v1359 = vadd.f32 0.0, %v1358
      %v1360 = vpop.f32.mrb[0].mxu0
      %1361 = vdwg.mxu0
      %1362 = vmatprep.subr.mxu0 0.0
      %1363 = vmatpush1.msra.mxu0 %v576
      %1364 = vmatprep.subr.mxu0 0.0
      %1365 = vmatpush1.msra.mxu0 %v577
      %1366 = vmatprep.subr.mxu0 0.0
      %1367 = vmatpush1.msra.mxu0 %v578
      %1368 = vmatprep.subr.mxu0 0.0
      %1369 = vmatpush1.msra.mxu0 %v579
      %1370 = vmatprep.subr.mxu0 0.0
      %1371 = vmatpush1.msra.mxu0 %v580
      %1372 = vmatprep.subr.mxu0 0.0
      %1373 = vmatpush1.msra.mxu0 %v581
      %1374 = vmatprep.subr.mxu0 0.0
      %1375 = vmatpush1.msra.mxu0 %v582
      %1376 = vmatprep.subr.mxu0 0.0
      %1377 = vmatpush1.msra.mxu0 %v583
      %1378 = vmatprep.subr.mxu0 0.0
      %1379 = vmatpush1.msra.mxu0 %v584
      %1380 = vmatprep.subr.mxu0 0.0
      %1381 = vmatpush1.msra.mxu0 %v585
      %1382 = vmatprep.subr.mxu0 0.0
      %1383 = vmatpush1.msra.mxu0 %v586
      %1384 = vmatprep.subr.mxu0 0.0
      %1385 = vmatpush1.msra.mxu0 %v587
      %1386 = vmatprep.subr.mxu0 0.0
      %1387 = vmatpush1.msra.mxu0 %v588
      %1388 = vmatprep.subr.mxu0 0.0
      %1389 = vmatpush1.msra.mxu0 %v589
      %1390 = vmatprep.subr.mxu0 0.0
      %1391 = vmatpush1.msra.mxu0 %v590
      %1392 = vmatprep.subr.mxu0 0.0
      %1393 = vmatpush1.msra.mxu0 %v591
      %1394 = vmatprep.subr.mxu0 0.0
      %1395 = vmatpush1.msra.mxu0 0.0
      %1396 = vmatprep.subr.mxu0 0.0
      %1397 = vmatpush1.msra.mxu0 0.0
      %1398 = vmatprep.subr.mxu0 0.0
      %1399 = vmatpush1.msra.mxu0 0.0
      %1400 = vmatprep.subr.mxu0 0.0
      %1401 = vmatpush1.msra.mxu0 0.0
      %1402 = vmatprep.subr.mxu0 0.0
      %1403 = vmatpush1.msra.mxu0 0.0
      %1404 = vmatprep.subr.mxu0 0.0
      %1405 = vmatpush1.msra.mxu0 0.0
      %1406 = vmatprep.subr.mxu0 0.0
      %1407 = vmatpush1.msra.mxu0 0.0
      %1408 = vmatprep.subr.mxu0 0.0
      %1409 = vmatpush1.msra.mxu0 0.0
      %1410 = vmatprep.subr.mxu0 0.0
      %1411 = vmatpush1.msra.mxu0 0.0
      %1412 = vmatprep.subr.mxu0 0.0
      %1413 = vmatpush1.msra.mxu0 0.0
      %1414 = vmatprep.subr.mxu0 0.0
      %1415 = vmatpush1.msra.mxu0 0.0
      %1416 = vmatprep.subr.mxu0 0.0
      %1417 = vmatpush1.msra.mxu0 0.0
      %1418 = vmatprep.subr.mxu0 0.0
      %1419 = vmatpush1.msra.mxu0 0.0
      %1420 = vmatprep.subr.mxu0 0.0
      %1421 = vmatpush1.msra.mxu0 0.0
      %1422 = vmatprep.subr.mxu0 0.0
      %1423 = vmatpush1.msra.mxu0 0.0
      %1424 = vmatprep.subr.mxu0 0.0
      %1425 = vmatpush1.msra.mxu0 0.0
      %1426 = vmatprep.mubr.f32.mxu0 0.0
      %1427 = vmatmul.mubr.f32.gmra.mrb[0].mxu0 %v399
      %v1428 = vpop.f32.mrb[0].mxu0
      %v1429 = vadd.f32 0.0, %v1428
      %v1430 = vpop.f32.mrb[0].mxu0
      %1431 = vdwg.mxu0
      %vm1432 = vcmask 64512
      %v1434 = vsel %vm1432, %v659, 0
      %v1437 = vsel %vm1432, %v939, 0
      %1439 = vmatprep.subr.mxu0 0.0
      %1440 = vmatpush1.xpose.msra.mxu0 %v1437
      %1441 = vmatprep.subr.mxu0 0.0
      %1442 = vmatpush1.xpose.msra.mxu0 0.0
      %1443 = vmatprep.subr.mxu0 0.0
      %1444 = vmatpush1.xpose.msra.mxu0 0.0
      %1445 = vmatprep.subr.mxu0 0.0
      %1446 = vmatpush1.xpose.msra.mxu0 0.0
      %1447 = vmatprep.subr.mxu0 0.0
      %1448 = vmatpush1.xpose.msra.mxu0 0.0
      %1449 = vmatprep.subr.mxu0 0.0
      %1450 = vmatpush1.xpose.msra.mxu0 0.0
      %1451 = vmatprep.subr.mxu0 0.0
      %1452 = vmatpush1.xpose.msra.mxu0 0.0
      %1453 = vmatprep.subr.mxu0 0.0
      %1454 = vmatpush1.xpose.msra.mxu0 0.0
      %1455 = vmatprep.subr.mxu0 0.0
      %1456 = vmatpush1.xpose.msra.mxu0 0.0
      %1457 = vmatprep.subr.mxu0 0.0
      %1458 = vmatpush1.xpose.msra.mxu0 0.0
      %1459 = vmatprep.subr.mxu0 0.0
      %1460 = vmatpush1.xpose.msra.mxu0 0.0
      %1461 = vmatprep.subr.mxu0 0.0
      %1462 = vmatpush1.xpose.msra.mxu0 0.0
      %1463 = vmatprep.subr.mxu0 0.0
      %1464 = vmatpush1.xpose.msra.mxu0 0.0
      %1465 = vmatprep.subr.mxu0 0.0
      %1466 = vmatpush1.xpose.msra.mxu0 0.0
      %1467 = vmatprep.subr.mxu0 0.0
      %1468 = vmatpush1.xpose.msra.mxu0 0.0
      %1469 = vmatprep.subr.mxu0 0.0
      %1470 = vmatpush1.xpose.msra.mxu0 0.0
      %1471 = vmatprep.subr.mxu0 0.0
      %1472 = vmatpush1.xpose.msra.mxu0 0.0
      %1473 = vmatprep.subr.mxu0 0.0
      %1474 = vmatpush1.xpose.msra.mxu0 0.0
      %1475 = vmatprep.subr.mxu0 0.0
      %1476 = vmatpush1.xpose.msra.mxu0 0.0
      %1477 = vmatprep.subr.mxu0 0.0
      %1478 = vmatpush1.xpose.msra.mxu0 0.0
      %1479 = vmatprep.subr.mxu0 0.0
      %1480 = vmatpush1.xpose.msra.mxu0 0.0
      %1481 = vmatprep.subr.mxu0 0.0
      %1482 = vmatpush1.xpose.msra.mxu0 0.0
      %1483 = vmatprep.subr.mxu0 0.0
      %1484 = vmatpush1.xpose.msra.mxu0 0.0
      %1485 = vmatprep.subr.mxu0 0.0
      %1486 = vmatpush1.xpose.msra.mxu0 0.0
      %1487 = vmatprep.subr.mxu0 0.0
      %1488 = vmatpush1.xpose.msra.mxu0 0.0
      %1489 = vmatprep.subr.mxu0 0.0
      %1490 = vmatpush1.xpose.msra.mxu0 0.0
      %1491 = vmatprep.subr.mxu0 0.0
      %1492 = vmatpush1.xpose.msra.mxu0 0.0
      %1493 = vmatprep.subr.mxu0 0.0
      %1494 = vmatpush1.xpose.msra.mxu0 0.0
      %1495 = vmatprep.subr.mxu0 0.0
      %1496 = vmatpush1.xpose.msra.mxu0 0.0
      %1497 = vmatprep.subr.mxu0 0.0
      %1498 = vmatpush1.xpose.msra.mxu0 0.0
      %1499 = vmatprep.subr.mxu0 0.0
      %1500 = vmatpush1.xpose.msra.mxu0 0.0
      %1501 = vmatprep.subr.mxu0 0.0
      %1502 = vmatpush1.xpose.msra.mxu0 0.0
      %1503 = vmatprep.mubr.f32.mxu0 0.0
      %1504 = vmatmul.mubr.f32.gmra.mrb[0].mxu0 %v1434
      %v1505 = vpop.f32.mrb[0].mxu0
      %v1506 = vadd.f32 %v381, %v1505
      %v1507 = vpop.f32.mrb[0].mxu0
      %1508 = vdwg.mxu0
      %v1510 = vsel %vm1432, %v729, 0
      %v1513 = vsel %vm1432, %v1009, 0
      %1515 = vmatprep.subr.mxu0 0.0
      %1516 = vmatpush1.xpose.msra.mxu0 %v1513
      %1517 = vmatprep.subr.mxu0 0.0
      %1518 = vmatpush1.xpose.msra.mxu0 0.0
      %1519 = vmatprep.subr.mxu0 0.0
      %1520 = vmatpush1.xpose.msra.mxu0 0.0
      %1521 = vmatprep.subr.mxu0 0.0
      %1522 = vmatpush1.xpose.msra.mxu0 0.0
      %1523 = vmatprep.subr.mxu0 0.0
      %1524 = vmatpush1.xpose.msra.mxu0 0.0
      %1525 = vmatprep.subr.mxu0 0.0
      %1526 = vmatpush1.xpose.msra.mxu0 0.0
      %1527 = vmatprep.subr.mxu0 0.0
      %1528 = vmatpush1.xpose.msra.mxu0 0.0
      %1529 = vmatprep.subr.mxu0 0.0
      %1530 = vmatpush1.xpose.msra.mxu0 0.0
      %1531 = vmatprep.subr.mxu0 0.0
      %1532 = vmatpush1.xpose.msra.mxu0 0.0
      %1533 = vmatprep.subr.mxu0 0.0
      %1534 = vmatpush1.xpose.msra.mxu0 0.0
      %1535 = vmatprep.subr.mxu0 0.0
      %1536 = vmatpush1.xpose.msra.mxu0 0.0
      %1537 = vmatprep.subr.mxu0 0.0
      %1538 = vmatpush1.xpose.msra.mxu0 0.0
      %1539 = vmatprep.subr.mxu0 0.0
      %1540 = vmatpush1.xpose.msra.mxu0 0.0
      %1541 = vmatprep.subr.mxu0 0.0
      %1542 = vmatpush1.xpose.msra.mxu0 0.0
      %1543 = vmatprep.subr.mxu0 0.0
      %1544 = vmatpush1.xpose.msra.mxu0 0.0
      %1545 = vmatprep.subr.mxu0 0.0
      %1546 = vmatpush1.xpose.msra.mxu0 0.0
      %1547 = vmatprep.subr.mxu0 0.0
      %1548 = vmatpush1.xpose.msra.mxu0 0.0
      %1549 = vmatprep.subr.mxu0 0.0
      %1550 = vmatpush1.xpose.msra.mxu0 0.0
      %1551 = vmatprep.subr.mxu0 0.0
      %1552 = vmatpush1.xpose.msra.mxu0 0.0
      %1553 = vmatprep.subr.mxu0 0.0
      %1554 = vmatpush1.xpose.msra.mxu0 0.0
      %1555 = vmatprep.subr.mxu0 0.0
      %1556 = vmatpush1.xpose.msra.mxu0 0.0
      %1557 = vmatprep.subr.mxu0 0.0
      %1558 = vmatpush1.xpose.msra.mxu0 0.0
      %1559 = vmatprep.subr.mxu0 0.0
      %1560 = vmatpush1.xpose.msra.mxu0 0.0
      %1561 = vmatprep.subr.mxu0 0.0
      %1562 = vmatpush1.xpose.msra.mxu0 0.0
      %1563 = vmatprep.subr.mxu0 0.0
      %1564 = vmatpush1.xpose.msra.mxu0 0.0
      %1565 = vmatprep.subr.mxu0 0.0
      %1566 = vmatpush1.xpose.msra.mxu0 0.0
      %1567 = vmatprep.subr.mxu0 0.0
      %1568 = vmatpush1.xpose.msra.mxu0 0.0
      %1569 = vmatprep.subr.mxu0 0.0
      %1570 = vmatpush1.xpose.msra.mxu0 0.0
      %1571 = vmatprep.subr.mxu0 0.0
      %1572 = vmatpush1.xpose.msra.mxu0 0.0
      %1573 = vmatprep.subr.mxu0 0.0
      %1574 = vmatpush1.xpose.msra.mxu0 0.0
      %1575 = vmatprep.subr.mxu0 0.0
      %1576 = vmatpush1.xpose.msra.mxu0 0.0
      %1577 = vmatprep.subr.mxu0 0.0
      %1578 = vmatpush1.xpose.msra.mxu0 0.0
      %1579 = vmatprep.mubr.f32.mxu0 0.0
      %1580 = vmatmul.mubr.f32.gmra.mrb[0].mxu0 %v1510
      %v1581 = vpop.f32.mrb[0].mxu0
      %v1582 = vadd.f32 %v382, %v1581
      %v1583 = vpop.f32.mrb[0].mxu0
      %1584 = vdwg.mxu0
      %v1586 = vsel %vm1432, %v799, 0
      %v1589 = vsel %vm1432, %v1079, 0
      %1591 = vmatprep.subr.mxu0 0.0
      %1592 = vmatpush1.xpose.msra.mxu0 %v1589
      %1593 = vmatprep.subr.mxu0 0.0
      %1594 = vmatpush1.xpose.msra.mxu0 0.0
      %1595 = vmatprep.subr.mxu0 0.0
      %1596 = vmatpush1.xpose.msra.mxu0 0.0
      %1597 = vmatprep.subr.mxu0 0.0
      %1598 = vmatpush1.xpose.msra.mxu0 0.0
      %1599 = vmatprep.subr.mxu0 0.0
      %1600 = vmatpush1.xpose.msra.mxu0 0.0
      %1601 = vmatprep.subr.mxu0 0.0
      %1602 = vmatpush1.xpose.msra.mxu0 0.0
      %1603 = vmatprep.subr.mxu0 0.0
      %1604 = vmatpush1.xpose.msra.mxu0 0.0
      %1605 = vmatprep.subr.mxu0 0.0
      %1606 = vmatpush1.xpose.msra.mxu0 0.0
      %1607 = vmatprep.subr.mxu0 0.0
      %1608 = vmatpush1.xpose.msra.mxu0 0.0
      %1609 = vmatprep.subr.mxu0 0.0
      %1610 = vmatpush1.xpose.msra.mxu0 0.0
      %1611 = vmatprep.subr.mxu0 0.0
      %1612 = vmatpush1.xpose.msra.mxu0 0.0
      %1613 = vmatprep.subr.mxu0 0.0
      %1614 = vmatpush1.xpose.msra.mxu0 0.0
      %1615 = vmatprep.subr.mxu0 0.0
      %1616 = vmatpush1.xpose.msra.mxu0 0.0
      %1617 = vmatprep.subr.mxu0 0.0
      %1618 = vmatpush1.xpose.msra.mxu0 0.0
      %1619 = vmatprep.subr.mxu0 0.0
      %1620 = vmatpush1.xpose.msra.mxu0 0.0
      %1621 = vmatprep.subr.mxu0 0.0
      %1622 = vmatpush1.xpose.msra.mxu0 0.0
      %1623 = vmatprep.subr.mxu0 0.0
      %1624 = vmatpush1.xpose.msra.mxu0 0.0
      %1625 = vmatprep.subr.mxu0 0.0
      %1626 = vmatpush1.xpose.msra.mxu0 0.0
      %1627 = vmatprep.subr.mxu0 0.0
      %1628 = vmatpush1.xpose.msra.mxu0 0.0
      %1629 = vmatprep.subr.mxu0 0.0
      %1630 = vmatpush1.xpose.msra.mxu0 0.0
      %1631 = vmatprep.subr.mxu0 0.0
      %1632 = vmatpush1.xpose.msra.mxu0 0.0
      %1633 = vmatprep.subr.mxu0 0.0
      %1634 = vmatpush1.xpose.msra.mxu0 0.0
      %1635 = vmatprep.subr.mxu0 0.0
      %1636 = vmatpush1.xpose.msra.mxu0 0.0
      %1637 = vmatprep.subr.mxu0 0.0
      %1638 = vmatpush1.xpose.msra.mxu0 0.0
      %1639 = vmatprep.subr.mxu0 0.0
      %1640 = vmatpush1.xpose.msra.mxu0 0.0
      %1641 = vmatprep.subr.mxu0 0.0
      %1642 = vmatpush1.xpose.msra.mxu0 0.0
      %1643 = vmatprep.subr.mxu0 0.0
      %1644 = vmatpush1.xpose.msra.mxu0 0.0
      %1645 = vmatprep.subr.mxu0 0.0
      %1646 = vmatpush1.xpose.msra.mxu0 0.0
      %1647 = vmatprep.subr.mxu0 0.0
      %1648 = vmatpush1.xpose.msra.mxu0 0.0
      %1649 = vmatprep.subr.mxu0 0.0
      %1650 = vmatpush1.xpose.msra.mxu0 0.0
      %1651 = vmatprep.subr.mxu0 0.0
      %1652 = vmatpush1.xpose.msra.mxu0 0.0
      %1653 = vmatprep.subr.mxu0 0.0
      %1654 = vmatpush1.xpose.msra.mxu0 0.0
      %1655 = vmatprep.mubr.f32.mxu0 0.0
      %1656 = vmatmul.mubr.f32.gmra.mrb[0].mxu0 %v1586
      %v1657 = vpop.f32.mrb[0].mxu0
      %v1658 = vadd.f32 %v383, %v1657
      %v1659 = vpop.f32.mrb[0].mxu0
      %1660 = vdwg.mxu0
      %v1662 = vsel %vm1432, %v869, 0
      %v1665 = vsel %vm1432, %v1149, 0
      %1667 = vmatprep.subr.mxu0 0.0
      %1668 = vmatpush1.xpose.msra.mxu0 %v1665
      %1669 = vmatprep.subr.mxu0 0.0
      %1670 = vmatpush1.xpose.msra.mxu0 0.0
      %1671 = vmatprep.subr.mxu0 0.0
      %1672 = vmatpush1.xpose.msra.mxu0 0.0
      %1673 = vmatprep.subr.mxu0 0.0
      %1674 = vmatpush1.xpose.msra.mxu0 0.0
      %1675 = vmatprep.subr.mxu0 0.0
      %1676 = vmatpush1.xpose.msra.mxu0 0.0
      %1677 = vmatprep.subr.mxu0 0.0
      %1678 = vmatpush1.xpose.msra.mxu0 0.0
      %1679 = vmatprep.subr.mxu0 0.0
      %1680 = vmatpush1.xpose.msra.mxu0 0.0
      %1681 = vmatprep.subr.mxu0 0.0
      %1682 = vmatpush1.xpose.msra.mxu0 0.0
      %1683 = vmatprep.subr.mxu0 0.0
      %1684 = vmatpush1.xpose.msra.mxu0 0.0
      %1685 = vmatprep.subr.mxu0 0.0
      %1686 = vmatpush1.xpose.msra.mxu0 0.0
      %1687 = vmatprep.subr.mxu0 0.0
      %1688 = vmatpush1.xpose.msra.mxu0 0.0
      %1689 = vmatprep.subr.mxu0 0.0
      %1690 = vmatpush1.xpose.msra.mxu0 0.0
      %1691 = vmatprep.subr.mxu0 0.0
      %1692 = vmatpush1.xpose.msra.mxu0 0.0
      %1693 = vmatprep.subr.mxu0 0.0
      %1694 = vmatpush1.xpose.msra.mxu0 0.0
      %1695 = vmatprep.subr.mxu0 0.0
      %1696 = vmatpush1.xpose.msra.mxu0 0.0
      %1697 = vmatprep.subr.mxu0 0.0
      %1698 = vmatpush1.xpose.msra.mxu0 0.0
      %1699 = vmatprep.subr.mxu0 0.0
      %1700 = vmatpush1.xpose.msra.mxu0 0.0
      %1701 = vmatprep.subr.mxu0 0.0
      %1702 = vmatpush1.xpose.msra.mxu0 0.0
      %1703 = vmatprep.subr.mxu0 0.0
      %1704 = vmatpush1.xpose.msra.mxu0 0.0
      %1705 = vmatprep.subr.mxu0 0.0
      %1706 = vmatpush1.xpose.msra.mxu0 0.0
      %1707 = vmatprep.subr.mxu0 0.0
      %1708 = vmatpush1.xpose.msra.mxu0 0.0
      %1709 = vmatprep.subr.mxu0 0.0
      %1710 = vmatpush1.xpose.msra.mxu0 0.0
      %1711 = vmatprep.subr.mxu0 0.0
      %1712 = vmatpush1.xpose.msra.mxu0 0.0
      %1713 = vmatprep.subr.mxu0 0.0
      %1714 = vmatpush1.xpose.msra.mxu0 0.0
      %1715 = vmatprep.subr.mxu0 0.0
      %1716 = vmatpush1.xpose.msra.mxu0 0.0
      %1717 = vmatprep.subr.mxu0 0.0
      %1718 = vmatpush1.xpose.msra.mxu0 0.0
      %1719 = vmatprep.subr.mxu0 0.0
      %1720 = vmatpush1.xpose.msra.mxu0 0.0
      %1721 = vmatprep.subr.mxu0 0.0
      %1722 = vmatpush1.xpose.msra.mxu0 0.0
      %1723 = vmatprep.subr.mxu0 0.0
      %1724 = vmatpush1.xpose.msra.mxu0 0.0
      %1725 = vmatprep.subr.mxu0 0.0
      %1726 = vmatpush1.xpose.msra.mxu0 0.0
      %1727 = vmatprep.subr.mxu0 0.0
      %1728 = vmatpush1.xpose.msra.mxu0 0.0
      %1729 = vmatprep.subr.mxu0 0.0
      %1730 = vmatpush1.xpose.msra.mxu0 0.0
      %1731 = vmatprep.mubr.f32.mxu0 0.0
      %1732 = vmatmul.mubr.f32.gmra.mrb[0].mxu0 %v1662
      %v1733 = vpop.f32.mrb[0].mxu0
      %v1734 = vadd.f32 %v384, %v1733
      %v1735 = vpop.f32.mrb[0].mxu0
      %1736 = vdwg.mxu0
      %v1737 = vsel %vm1432, %v1506, -inf
      %1738 = vmax.xlane.f32.xlu0 %v1737
      %v1739 = vpop.xlane.xlu0 %1738
      %v1740 = vsel %vm1432, %v1582, -inf
      %1741 = vmax.xlane.f32.xlu0 %v1740
      %v1742 = vpop.xlane.xlu0 %1741
      %v1743 = vsel %vm1432, %v1658, -inf
      %1744 = vmax.xlane.f32.xlu0 %v1743
      %v1745 = vpop.xlane.xlu0 %1744
      %v1746 = vsel %vm1432, %v1734, -inf
      %1747 = vmax.xlane.f32.xlu0 %v1746
      %v1748 = vpop.xlane.xlu0 %1747
      %v1749 = vsub.f32 %v1506, %v1739
      %v1750 = vsub.f32 %v1582, %v1742
      %v1751 = vsub.f32 %v1658, %v1745
      %v1752 = vsub.f32 %v1734, %v1748
      %v1753 = vmul.f32 %v1749, 1.442695
      %v1754 = vpow.pop %v1753
      %v1755 = vmul.f32 %v1750, 1.442695
      %v1756 = vpow.pop %v1755
      %v1757 = vmul.f32 %v1751, 1.442695
      %v1758 = vpow.pop %v1757
      %v1759 = vmul.f32 %v1752, 1.442695
      %v1760 = vpow.pop %v1759
      %v1761 = vsel %vm1432, %v1754, 0.0
      %1762 = vadd.xlane.f32.xlu0 %v1761
      %v1763 = vpop.xlane.xlu0 %1762
      %v1764 = vsel %vm1432, %v1756, 0.0
      %1765 = vadd.xlane.f32.xlu0 %v1764
      %v1766 = vpop.xlane.xlu0 %1765
      %v1767 = vsel %vm1432, %v1758, 0.0
      %1768 = vadd.xlane.f32.xlu0 %v1767
      %v1769 = vpop.xlane.xlu0 %1768
      %v1770 = vsel %vm1432, %v1760, 0.0
      %1771 = vadd.xlane.f32.xlu0 %v1770
      %v1772 = vpop.xlane.xlu0 %1771
      %v1773 = vrcp.pop %v1763
      %v1774 = vrcp.pop %v1766
      %v1775 = vrcp.pop %v1769
      %v1776 = vrcp.pop %v1772
      %v1777 = vmul.f32 %v1754, %v1773
      %v1778 = vmul.f32 %v1756, %v1774
      %v1779 = vmul.f32 %v1758, %v1775
      %v1780 = vmul.f32 %v1760, %v1776
      %v1782 = vsel %vm1432, %v1777, 0
      %1784 = vmatprep.subr.mxu0 0.0
      %1785 = vmatpush1.msra.mxu0 %v1219
      %1786 = vmatprep.subr.mxu0 0.0
      %1787 = vmatpush1.msra.mxu0 0.0
      %1788 = vmatprep.subr.mxu0 0.0
      %1789 = vmatpush1.msra.mxu0 0.0
      %1790 = vmatprep.subr.mxu0 0.0
      %1791 = vmatpush1.msra.mxu0 0.0
      %1792 = vmatprep.subr.mxu0 0.0
      %1793 = vmatpush1.msra.mxu0 0.0
      %1794 = vmatprep.subr.mxu0 0.0
      %1795 = vmatpush1.msra.mxu0 0.0
      %1796 = vmatprep.subr.mxu0 0.0
      %1797 = vmatpush1.msra.mxu0 0.0
      %1798 = vmatprep.subr.mxu0 0.0
      %1799 = vmatpush1.msra.mxu0 0.0
      %1800 = vmatprep.subr.mxu0 0.0
      %1801 = vmatpush1.msra.mxu0 0.0
      %1802 = vmatprep.subr.mxu0 0.0
      %1803 = vmatpush1.msra.mxu0 0.0
      %1804 = vmatprep.subr.mxu0 0.0
      %1805 = vmatpush1.msra.mxu0 0.0
      %1806 = vmatprep.subr.mxu0 0.0
      %1807 = vmatpush1.msra.mxu0 0.0
      %1808 = vmatprep.subr.mxu0 0.0
      %1809 = vmatpush1.msra.mxu0 0.0
      %1810 = vmatprep.subr.mxu0 0.0
      %1811 = vmatpush1.msra.mxu0 0.0
      %1812 = vmatprep.subr.mxu0 0.0
      %1813 = vmatpush1.msra.mxu0 0.0
      %1814 = vmatprep.subr.mxu0 0.0
      %1815 = vmatpush1.msra.mxu0 0.0
      %1816 = vmatprep.subr.mxu0 0.0
      %1817 = vmatpush1.msra.mxu0 0.0
      %1818 = vmatprep.subr.mxu0 0.0
      %1819 = vmatpush1.msra.mxu0 0.0
      %1820 = vmatprep.subr.mxu0 0.0
      %1821 = vmatpush1.msra.mxu0 0.0
      %1822 = vmatprep.subr.mxu0 0.0
      %1823 = vmatpush1.msra.mxu0 0.0
      %1824 = vmatprep.subr.mxu0 0.0
      %1825 = vmatpush1.msra.mxu0 0.0
      %1826 = vmatprep.subr.mxu0 0.0
      %1827 = vmatpush1.msra.mxu0 0.0
      %1828 = vmatprep.subr.mxu0 0.0
      %1829 = vmatpush1.msra.mxu0 0.0
      %1830 = vmatprep.subr.mxu0 0.0
      %1831 = vmatpush1.msra.mxu0 0.0
      %1832 = vmatprep.subr.mxu0 0.0
      %1833 = vmatpush1.msra.mxu0 0.0
      %1834 = vmatprep.subr.mxu0 0.0
      %1835 = vmatpush1.msra.mxu0 0.0
      %1836 = vmatprep.subr.mxu0 0.0
      %1837 = vmatpush1.msra.mxu0 0.0
      %1838 = vmatprep.subr.mxu0 0.0
      %1839 = vmatpush1.msra.mxu0 0.0
      %1840 = vmatprep.subr.mxu0 0.0
      %1841 = vmatpush1.msra.mxu0 0.0
      %1842 = vmatprep.subr.mxu0 0.0
      %1843 = vmatpush1.msra.mxu0 0.0
      %1844 = vmatprep.subr.mxu0 0.0
      %1845 = vmatpush1.msra.mxu0 0.0
      %1846 = vmatprep.subr.mxu0 0.0
      %1847 = vmatpush1.msra.mxu0 0.0
      %1848 = vmatprep.mubr.f32.mxu0 0.0
      %1849 = vmatmul.mubr.f32.gmra.mrb[0].mxu0 %v1782
      %v1850 = vpop.f32.mrb[0].mxu0
      %v1851 = vadd.f32 0.0, %v1850
      %v1852 = vpop.f32.mrb[0].mxu0
      %1853 = vdwg.mxu0
      %v1855 = vsel %vm1432, %v1778, 0
      %1857 = vmatprep.subr.mxu0 0.0
      %1858 = vmatpush1.msra.mxu0 %v1289
      %1859 = vmatprep.subr.mxu0 0.0
      %1860 = vmatpush1.msra.mxu0 0.0
      %1861 = vmatprep.subr.mxu0 0.0
      %1862 = vmatpush1.msra.mxu0 0.0
      %1863 = vmatprep.subr.mxu0 0.0
      %1864 = vmatpush1.msra.mxu0 0.0
      %1865 = vmatprep.subr.mxu0 0.0
      %1866 = vmatpush1.msra.mxu0 0.0
      %1867 = vmatprep.subr.mxu0 0.0
      %1868 = vmatpush1.msra.mxu0 0.0
      %1869 = vmatprep.subr.mxu0 0.0
      %1870 = vmatpush1.msra.mxu0 0.0
      %1871 = vmatprep.subr.mxu0 0.0
      %1872 = vmatpush1.msra.mxu0 0.0
      %1873 = vmatprep.subr.mxu0 0.0
      %1874 = vmatpush1.msra.mxu0 0.0
      %1875 = vmatprep.subr.mxu0 0.0
      %1876 = vmatpush1.msra.mxu0 0.0
      %1877 = vmatprep.subr.mxu0 0.0
      %1878 = vmatpush1.msra.mxu0 0.0
      %1879 = vmatprep.subr.mxu0 0.0
      %1880 = vmatpush1.msra.mxu0 0.0
      %1881 = vmatprep.subr.mxu0 0.0
      %1882 = vmatpush1.msra.mxu0 0.0
      %1883 = vmatprep.subr.mxu0 0.0
      %1884 = vmatpush1.msra.mxu0 0.0
      %1885 = vmatprep.subr.mxu0 0.0
      %1886 = vmatpush1.msra.mxu0 0.0
      %1887 = vmatprep.subr.mxu0 0.0
      %1888 = vmatpush1.msra.mxu0 0.0
      %1889 = vmatprep.subr.mxu0 0.0
      %1890 = vmatpush1.msra.mxu0 0.0
      %1891 = vmatprep.subr.mxu0 0.0
      %1892 = vmatpush1.msra.mxu0 0.0
      %1893 = vmatprep.subr.mxu0 0.0
      %1894 = vmatpush1.msra.mxu0 0.0
      %1895 = vmatprep.subr.mxu0 0.0
      %1896 = vmatpush1.msra.mxu0 0.0
      %1897 = vmatprep.subr.mxu0 0.0
      %1898 = vmatpush1.msra.mxu0 0.0
      %1899 = vmatprep.subr.mxu0 0.0
      %1900 = vmatpush1.msra.mxu0 0.0
      %1901 = vmatprep.subr.mxu0 0.0
      %1902 = vmatpush1.msra.mxu0 0.0
      %1903 = vmatprep.subr.mxu0 0.0
      %1904 = vmatpush1.msra.mxu0 0.0
      %1905 = vmatprep.subr.mxu0 0.0
      %1906 = vmatpush1.msra.mxu0 0.0
      %1907 = vmatprep.subr.mxu0 0.0
      %1908 = vmatpush1.msra.mxu0 0.0
      %1909 = vmatprep.subr.mxu0 0.0
      %1910 = vmatpush1.msra.mxu0 0.0
      %1911 = vmatprep.subr.mxu0 0.0
      %1912 = vmatpush1.msra.mxu0 0.0
      %1913 = vmatprep.subr.mxu0 0.0
      %1914 = vmatpush1.msra.mxu0 0.0
      %1915 = vmatprep.subr.mxu0 0.0
      %1916 = vmatpush1.msra.mxu0 0.0
      %1917 = vmatprep.subr.mxu0 0.0
      %1918 = vmatpush1.msra.mxu0 0.0
      %1919 = vmatprep.subr.mxu0 0.0
      %1920 = vmatpush1.msra.mxu0 0.0
      %1921 = vmatprep.mubr.f32.mxu0 0.0
      %1922 = vmatmul.mubr.f32.gmra.mrb[0].mxu0 %v1855
      %v1923 = vpop.f32.mrb[0].mxu0
      %v1924 = vadd.f32 0.0, %v1923
      %v1925 = vpop.f32.mrb[0].mxu0
      %1926 = vdwg.mxu0
      %v1928 = vsel %vm1432, %v1779, 0
      %1930 = vmatprep.subr.mxu0 0.0
      %1931 = vmatpush1.msra.mxu0 %v1359
      %1932 = vmatprep.subr.mxu0 0.0
      %1933 = vmatpush1.msra.mxu0 0.0
      %1934 = vmatprep.subr.mxu0 0.0
      %1935 = vmatpush1.msra.mxu0 0.0
      %1936 = vmatprep.subr.mxu0 0.0
      %1937 = vmatpush1.msra.mxu0 0.0
      %1938 = vmatprep.subr.mxu0 0.0
      %1939 = vmatpush1.msra.mxu0 0.0
      %1940 = vmatprep.subr.mxu0 0.0
      %1941 = vmatpush1.msra.mxu0 0.0
      %1942 = vmatprep.subr.mxu0 0.0
      %1943 = vmatpush1.msra.mxu0 0.0
      %1944 = vmatprep.subr.mxu0 0.0
      %1945 = vmatpush1.msra.mxu0 0.0
      %1946 = vmatprep.subr.mxu0 0.0
      %1947 = vmatpush1.msra.mxu0 0.0
      %1948 = vmatprep.subr.mxu0 0.0
      %1949 = vmatpush1.msra.mxu0 0.0
      %1950 = vmatprep.subr.mxu0 0.0
      %1951 = vmatpush1.msra.mxu0 0.0
      %1952 = vmatprep.subr.mxu0 0.0
      %1953 = vmatpush1.msra.mxu0 0.0
      %1954 = vmatprep.subr.mxu0 0.0
      %1955 = vmatpush1.msra.mxu0 0.0
      %1956 = vmatprep.subr.mxu0 0.0
      %1957 = vmatpush1.msra.mxu0 0.0
      %1958 = vmatprep.subr.mxu0 0.0
      %1959 = vmatpush1.msra.mxu0 0.0
      %1960 = vmatprep.subr.mxu0 0.0
      %1961 = vmatpush1.msra.mxu0 0.0
      %1962 = vmatprep.subr.mxu0 0.0
      %1963 = vmatpush1.msra.mxu0 0.0
      %1964 = vmatprep.subr.mxu0 0.0
      %1965 = vmatpush1.msra.mxu0 0.0
      %1966 = vmatprep.subr.mxu0 0.0
      %1967 = vmatpush1.msra.mxu0 0.0
      %1968 = vmatprep.subr.mxu0 0.0
      %1969 = vmatpush1.msra.mxu0 0.0
      %1970 = vmatprep.subr.mxu0 0.0
      %1971 = vmatpush1.msra.mxu0 0.0
      %1972 = vmatprep.subr.mxu0 0.0
      %1973 = vmatpush1.msra.mxu0 0.0
      %1974 = vmatprep.subr.mxu0 0.0
      %1975 = vmatpush1.msra.mxu0 0.0
      %1976 = vmatprep.subr.mxu0 0.0
      %1977 = vmatpush1.msra.mxu0 0.0
      %1978 = vmatprep.subr.mxu0 0.0
      %1979 = vmatpush1.msra.mxu0 0.0
      %1980 = vmatprep.subr.mxu0 0.0
      %1981 = vmatpush1.msra.mxu0 0.0
      %1982 = vmatprep.subr.mxu0 0.0
      %1983 = vmatpush1.msra.mxu0 0.0
      %1984 = vmatprep.subr.mxu0 0.0
      %1985 = vmatpush1.msra.mxu0 0.0
      %1986 = vmatprep.subr.mxu0 0.0
      %1987 = vmatpush1.msra.mxu0 0.0
      %1988 = vmatprep.subr.mxu0 0.0
      %1989 = vmatpush1.msra.mxu0 0.0
      %1990 = vmatprep.subr.mxu0 0.0
      %1991 = vmatpush1.msra.mxu0 0.0
      %1992 = vmatprep.subr.mxu0 0.0
      %1993 = vmatpush1.msra.mxu0 0.0
      %1994 = vmatprep.mubr.f32.mxu0 0.0
      %1995 = vmatmul.mubr.f32.gmra.mrb[0].mxu0 %v1928
      %v1996 = vpop.f32.mrb[0].mxu0
      %v1997 = vadd.f32 0.0, %v1996
      %v1998 = vpop.f32.mrb[0].mxu0
      %1999 = vdwg.mxu0
      %v2001 = vsel %vm1432, %v1780, 0
      %2003 = vmatprep.subr.mxu0 0.0
      %2004 = vmatpush1.msra.mxu0 %v1429
      %2005 = vmatprep.subr.mxu0 0.0
      %2006 = vmatpush1.msra.mxu0 0.0
      %2007 = vmatprep.subr.mxu0 0.0
      %2008 = vmatpush1.msra.mxu0 0.0
      %2009 = vmatprep.subr.mxu0 0.0
      %2010 = vmatpush1.msra.mxu0 0.0
      %2011 = vmatprep.subr.mxu0 0.0
      %2012 = vmatpush1.msra.mxu0 0.0
      %2013 = vmatprep.subr.mxu0 0.0
      %2014 = vmatpush1.msra.mxu0 0.0
      %2015 = vmatprep.subr.mxu0 0.0
      %2016 = vmatpush1.msra.mxu0 0.0
      %2017 = vmatprep.subr.mxu0 0.0
      %2018 = vmatpush1.msra.mxu0 0.0
      %2019 = vmatprep.subr.mxu0 0.0
      %2020 = vmatpush1.msra.mxu0 0.0
      %2021 = vmatprep.subr.mxu0 0.0
      %2022 = vmatpush1.msra.mxu0 0.0
      %2023 = vmatprep.subr.mxu0 0.0
      %2024 = vmatpush1.msra.mxu0 0.0
      %2025 = vmatprep.subr.mxu0 0.0
      %2026 = vmatpush1.msra.mxu0 0.0
      %2027 = vmatprep.subr.mxu0 0.0
      %2028 = vmatpush1.msra.mxu0 0.0
      %2029 = vmatprep.subr.mxu0 0.0
      %2030 = vmatpush1.msra.mxu0 0.0
      %2031 = vmatprep.subr.mxu0 0.0
      %2032 = vmatpush1.msra.mxu0 0.0
      %2033 = vmatprep.subr.mxu0 0.0
      %2034 = vmatpush1.msra.mxu0 0.0
      %2035 = vmatprep.subr.mxu0 0.0
      %2036 = vmatpush1.msra.mxu0 0.0
      %2037 = vmatprep.subr.mxu0 0.0
      %2038 = vmatpush1.msra.mxu0 0.0
      %2039 = vmatprep.subr.mxu0 0.0
      %2040 = vmatpush1.msra.mxu0 0.0
      %2041 = vmatprep.subr.mxu0 0.0
      %2042 = vmatpush1.msra.mxu0 0.0
      %2043 = vmatprep.subr.mxu0 0.0
      %2044 = vmatpush1.msra.mxu0 0.0
      %2045 = vmatprep.subr.mxu0 0.0
      %2046 = vmatpush1.msra.mxu0 0.0
      %2047 = vmatprep.subr.mxu0 0.0
      %2048 = vmatpush1.msra.mxu0 0.0
      %2049 = vmatprep.subr.mxu0 0.0
      %2050 = vmatpush1.msra.mxu0 0.0
      %2051 = vmatprep.subr.mxu0 0.0
      %2052 = vmatpush1.msra.mxu0 0.0
      %2053 = vmatprep.subr.mxu0 0.0
      %2054 = vmatpush1.msra.mxu0 0.0
      %2055 = vmatprep.subr.mxu0 0.0
      %2056 = vmatpush1.msra.mxu0 0.0
      %2057 = vmatprep.subr.mxu0 0.0
      %2058 = vmatpush1.msra.mxu0 0.0
      %2059 = vmatprep.subr.mxu0 0.0
      %2060 = vmatpush1.msra.mxu0 0.0
      %2061 = vmatprep.subr.mxu0 0.0
      %2062 = vmatpush1.msra.mxu0 0.0
      %2063 = vmatprep.subr.mxu0 0.0
      %2064 = vmatpush1.msra.mxu0 0.0
      %2065 = vmatprep.subr.mxu0 0.0
      %2066 = vmatpush1.msra.mxu0 0.0
      %2067 = vmatprep.mubr.f32.mxu0 0.0
      %2068 = vmatmul.mubr.f32.gmra.mrb[0].mxu0 %v2001
      %v2069 = vpop.f32.mrb[0].mxu0
      %v2070 = vadd.f32 0.0, %v2069
      %v2071 = vpop.f32.mrb[0].mxu0
      %2072 = vdwg.mxu0
      %v2073 = vld [vmem:[%s5] sm:$0xff]
      %v2074 = vld [vmem:[%s5 + $0x8] sm:$0xff]
      %v2075 = vld [vmem:[%s5 + $0x10] sm:$0xff]
      %v2076 = vld [vmem:[%s5 + $0x18] sm:$0xff]
      %v2078 = vsel %vm1432, %v1851, 0
      %2080 = vmatprep.subr.mxu0 0.0
      %2081 = vmatpush1.msra.mxu0 %v2073
      %2082 = vmatprep.subr.mxu0 0.0
      %2083 = vmatpush1.msra.mxu0 0.0
      %2084 = vmatprep.subr.mxu0 0.0
      %2085 = vmatpush1.msra.mxu0 0.0
      %2086 = vmatprep.subr.mxu0 0.0
      %2087 = vmatpush1.msra.mxu0 0.0
      %2088 = vmatprep.subr.mxu0 0.0
      %2089 = vmatpush1.msra.mxu0 0.0
      %2090 = vmatprep.subr.mxu0 0.0
      %2091 = vmatpush1.msra.mxu0 0.0
      %2092 = vmatprep.subr.mxu0 0.0
      %2093 = vmatpush1.msra.mxu0 0.0
      %2094 = vmatprep.subr.mxu0 0.0
      %2095 = vmatpush1.msra.mxu0 0.0
      %2096 = vmatprep.subr.mxu0 0.0
      %2097 = vmatpush1.msra.mxu0 0.0
      %2098 = vmatprep.subr.mxu0 0.0
      %2099 = vmatpush1.msra.mxu0 0.0
      %2100 = vmatprep.subr.mxu0 0.0
      %2101 = vmatpush1.msra.mxu0 0.0
      %2102 = vmatprep.subr.mxu0 0.0
      %2103 = vmatpush1.msra.mxu0 0.0
      %2104 = vmatprep.subr.mxu0 0.0
      %2105 = vmatpush1.msra.mxu0 0.0
      %2106 = vmatprep.subr.mxu0 0.0
      %2107 = vmatpush1.msra.mxu0 0.0
      %2108 = vmatprep.subr.mxu0 0.0
      %2109 = vmatpush1.msra.mxu0 0.0
      %2110 = vmatprep.subr.mxu0 0.0
      %2111 = vmatpush1.msra.mxu0 0.0
      %2112 = vmatprep.subr.mxu0 0.0
      %2113 = vmatpush1.msra.mxu0 0.0
      %2114 = vmatprep.subr.mxu0 0.0
      %2115 = vmatpush1.msra.mxu0 0.0
      %2116 = vmatprep.subr.mxu0 0.0
      %2117 = vmatpush1.msra.mxu0 0.0
      %2118 = vmatprep.subr.mxu0 0.0
      %2119 = vmatpush1.msra.mxu0 0.0
      %2120 = vmatprep.subr.mxu0 0.0
      %2121 = vmatpush1.msra.mxu0 0.0
      %2122 = vmatprep.subr.mxu0 0.0
      %2123 = vmatpush1.msra.mxu0 0.0
      %2124 = vmatprep.subr.mxu0 0.0
      %2125 = vmatpush1.msra.mxu0 0.0
      %2126 = vmatprep.subr.mxu0 0.0
      %2127 = vmatpush1.msra.mxu0 0.0
      %2128 = vmatprep.subr.mxu0 0.0
      %2129 = vmatpush1.msra.mxu0 0.0
      %2130 = vmatprep.subr.mxu0 0.0
      %2131 = vmatpush1.msra.mxu0 0.0
      %2132 = vmatprep.subr.mxu0 0.0
      %2133 = vmatpush1.msra.mxu0 0.0
      %2134 = vmatprep.subr.mxu0 0.0
      %2135 = vmatpush1.msra.mxu0 0.0
      %2136 = vmatprep.subr.mxu0 0.0
      %2137 = vmatpush1.msra.mxu0 0.0
      %2138 = vmatprep.subr.mxu0 0.0
      %2139 = vmatpush1.msra.mxu0 0.0
      %2140 = vmatprep.subr.mxu0 0.0
      %2141 = vmatpush1.msra.mxu0 0.0
      %2142 = vmatprep.subr.mxu0 0.0
      %2143 = vmatpush1.msra.mxu0 0.0
      %2144 = vmatprep.mubr.f32.mxu0 0.0
      %2145 = vmatmul.mubr.f32.gmra.mrb[0].mxu0 %v2078
      %v2146 = vpop.f32.mrb[0].mxu0
      %v2147 = vadd.f32 0.0, %v2146
      %v2148 = vpop.f32.mrb[0].mxu0
      %2149 = vdwg.mxu0
      %v2151 = vsel %vm1432, %v1924, 0
      %2153 = vmatprep.subr.mxu0 0.0
      %2154 = vmatpush1.msra.mxu0 %v2074
      %2155 = vmatprep.subr.mxu0 0.0
      %2156 = vmatpush1.msra.mxu0 0.0
      %2157 = vmatprep.subr.mxu0 0.0
      %2158 = vmatpush1.msra.mxu0 0.0
      %2159 = vmatprep.subr.mxu0 0.0
      %2160 = vmatpush1.msra.mxu0 0.0
      %2161 = vmatprep.subr.mxu0 0.0
      %2162 = vmatpush1.msra.mxu0 0.0
      %2163 = vmatprep.subr.mxu0 0.0
      %2164 = vmatpush1.msra.mxu0 0.0
      %2165 = vmatprep.subr.mxu0 0.0
      %2166 = vmatpush1.msra.mxu0 0.0
      %2167 = vmatprep.subr.mxu0 0.0
      %2168 = vmatpush1.msra.mxu0 0.0
      %2169 = vmatprep.subr.mxu0 0.0
      %2170 = vmatpush1.msra.mxu0 0.0
      %2171 = vmatprep.subr.mxu0 0.0
      %2172 = vmatpush1.msra.mxu0 0.0
      %2173 = vmatprep.subr.mxu0 0.0
      %2174 = vmatpush1.msra.mxu0 0.0
      %2175 = vmatprep.subr.mxu0 0.0
      %2176 = vmatpush1.msra.mxu0 0.0
      %2177 = vmatprep.subr.mxu0 0.0
      %2178 = vmatpush1.msra.mxu0 0.0
      %2179 = vmatprep.subr.mxu0 0.0
      %2180 = vmatpush1.msra.mxu0 0.0
      %2181 = vmatprep.subr.mxu0 0.0
      %2182 = vmatpush1.msra.mxu0 0.0
      %2183 = vmatprep.subr.mxu0 0.0
      %2184 = vmatpush1.msra.mxu0 0.0
      %2185 = vmatprep.subr.mxu0 0.0
      %2186 = vmatpush1.msra.mxu0 0.0
      %2187 = vmatprep.subr.mxu0 0.0
      %2188 = vmatpush1.msra.mxu0 0.0
      %2189 = vmatprep.subr.mxu0 0.0
      %2190 = vmatpush1.msra.mxu0 0.0
      %2191 = vmatprep.subr.mxu0 0.0
      %2192 = vmatpush1.msra.mxu0 0.0
      %2193 = vmatprep.subr.mxu0 0.0
      %2194 = vmatpush1.msra.mxu0 0.0
      %2195 = vmatprep.subr.mxu0 0.0
      %2196 = vmatpush1.msra.mxu0 0.0
      %2197 = vmatprep.subr.mxu0 0.0
      %2198 = vmatpush1.msra.mxu0 0.0
      %2199 = vmatprep.subr.mxu0 0.0
      %2200 = vmatpush1.msra.mxu0 0.0
      %2201 = vmatprep.subr.mxu0 0.0
      %2202 = vmatpush1.msra.mxu0 0.0
      %2203 = vmatprep.subr.mxu0 0.0
      %2204 = vmatpush1.msra.mxu0 0.0
      %2205 = vmatprep.subr.mxu0 0.0
      %2206 = vmatpush1.msra.mxu0 0.0
      %2207 = vmatprep.subr.mxu0 0.0
      %2208 = vmatpush1.msra.mxu0 0.0
      %2209 = vmatprep.subr.mxu0 0.0
      %2210 = vmatpush1.msra.mxu0 0.0
      %2211 = vmatprep.subr.mxu0 0.0
      %2212 = vmatpush1.msra.mxu0 0.0
      %2213 = vmatprep.subr.mxu0 0.0
      %2214 = vmatpush1.msra.mxu0 0.0
      %2215 = vmatprep.subr.mxu0 0.0
      %2216 = vmatpush1.msra.mxu0 0.0
      %2217 = vmatprep.mubr.f32.mxu0 0.0
      %2218 = vmatmul.mubr.f32.gmra.mrb[0].mxu0 %v2151
      %v2219 = vpop.f32.mrb[0].mxu0
      %v2220 = vadd.f32 0.0, %v2219
      %v2221 = vpop.f32.mrb[0].mxu0
      %2222 = vdwg.mxu0
      %v2224 = vsel %vm1432, %v1997, 0
      %2226 = vmatprep.subr.mxu0 0.0
      %2227 = vmatpush1.msra.mxu0 %v2075
      %2228 = vmatprep.subr.mxu0 0.0
      %2229 = vmatpush1.msra.mxu0 0.0
      %2230 = vmatprep.subr.mxu0 0.0
      %2231 = vmatpush1.msra.mxu0 0.0
      %2232 = vmatprep.subr.mxu0 0.0
      %2233 = vmatpush1.msra.mxu0 0.0
      %2234 = vmatprep.subr.mxu0 0.0
      %2235 = vmatpush1.msra.mxu0 0.0
      %2236 = vmatprep.subr.mxu0 0.0
      %2237 = vmatpush1.msra.mxu0 0.0
      %2238 = vmatprep.subr.mxu0 0.0
      %2239 = vmatpush1.msra.mxu0 0.0
      %2240 = vmatprep.subr.mxu0 0.0
      %2241 = vmatpush1.msra.mxu0 0.0
      %2242 = vmatprep.subr.mxu0 0.0
      %2243 = vmatpush1.msra.mxu0 0.0
      %2244 = vmatprep.subr.mxu0 0.0
      %2245 = vmatpush1.msra.mxu0 0.0
      %2246 = vmatprep.subr.mxu0 0.0
      %2247 = vmatpush1.msra.mxu0 0.0
      %2248 = vmatprep.subr.mxu0 0.0
      %2249 = vmatpush1.msra.mxu0 0.0
      %2250 = vmatprep.subr.mxu0 0.0
      %2251 = vmatpush1.msra.mxu0 0.0
      %2252 = vmatprep.subr.mxu0 0.0
      %2253 = vmatpush1.msra.mxu0 0.0
      %2254 = vmatprep.subr.mxu0 0.0
      %2255 = vmatpush1.msra.mxu0 0.0
      %2256 = vmatprep.subr.mxu0 0.0
      %2257 = vmatpush1.msra.mxu0 0.0
      %2258 = vmatprep.subr.mxu0 0.0
      %2259 = vmatpush1.msra.mxu0 0.0
      %2260 = vmatprep.subr.mxu0 0.0
      %2261 = vmatpush1.msra.mxu0 0.0
      %2262 = vmatprep.subr.mxu0 0.0
      %2263 = vmatpush1.msra.mxu0 0.0
      %2264 = vmatprep.subr.mxu0 0.0
      %2265 = vmatpush1.msra.mxu0 0.0
      %2266 = vmatprep.subr.mxu0 0.0
      %2267 = vmatpush1.msra.mxu0 0.0
      %2268 = vmatprep.subr.mxu0 0.0
      %2269 = vmatpush1.msra.mxu0 0.0
      %2270 = vmatprep.subr.mxu0 0.0
      %2271 = vmatpush1.msra.mxu0 0.0
      %2272 = vmatprep.subr.mxu0 0.0
      %2273 = vmatpush1.msra.mxu0 0.0
      %2274 = vmatprep.subr.mxu0 0.0
      %2275 = vmatpush1.msra.mxu0 0.0
      %2276 = vmatprep.subr.mxu0 0.0
      %2277 = vmatpush1.msra.mxu0 0.0
      %2278 = vmatprep.subr.mxu0 0.0
      %2279 = vmatpush1.msra.mxu0 0.0
      %2280 = vmatprep.subr.mxu0 0.0
      %2281 = vmatpush1.msra.mxu0 0.0
      %2282 = vmatprep.subr.mxu0 0.0
      %2283 = vmatpush1.msra.mxu0 0.0
      %2284 = vmatprep.subr.mxu0 0.0
      %2285 = vmatpush1.msra.mxu0 0.0
      %2286 = vmatprep.subr.mxu0 0.0
      %2287 = vmatpush1.msra.mxu0 0.0
      %2288 = vmatprep.subr.mxu0 0.0
      %2289 = vmatpush1.msra.mxu0 0.0
      %2290 = vmatprep.mubr.f32.mxu0 0.0
      %2291 = vmatmul.mubr.f32.gmra.mrb[0].mxu0 %v2224
      %v2292 = vpop.f32.mrb[0].mxu0
      %v2293 = vadd.f32 0.0, %v2292
      %v2294 = vpop.f32.mrb[0].mxu0
      %2295 = vdwg.mxu0
      %v2297 = vsel %vm1432, %v2070, 0
      %2299 = vmatprep.subr.mxu0 0.0
      %2300 = vmatpush1.msra.mxu0 %v2076
      %2301 = vmatprep.subr.mxu0 0.0
      %2302 = vmatpush1.msra.mxu0 0.0
      %2303 = vmatprep.subr.mxu0 0.0
      %2304 = vmatpush1.msra.mxu0 0.0
      %2305 = vmatprep.subr.mxu0 0.0
      %2306 = vmatpush1.msra.mxu0 0.0
      %2307 = vmatprep.subr.mxu0 0.0
      %2308 = vmatpush1.msra.mxu0 0.0
      %2309 = vmatprep.subr.mxu0 0.0
      %2310 = vmatpush1.msra.mxu0 0.0
      %2311 = vmatprep.subr.mxu0 0.0
      %2312 = vmatpush1.msra.mxu0 0.0
      %2313 = vmatprep.subr.mxu0 0.0
      %2314 = vmatpush1.msra.mxu0 0.0
      %2315 = vmatprep.subr.mxu0 0.0
      %2316 = vmatpush1.msra.mxu0 0.0
      %2317 = vmatprep.subr.mxu0 0.0
      %2318 = vmatpush1.msra.mxu0 0.0
      %2319 = vmatprep.subr.mxu0 0.0
      %2320 = vmatpush1.msra.mxu0 0.0
      %2321 = vmatprep.subr.mxu0 0.0
      %2322 = vmatpush1.msra.mxu0 0.0
      %2323 = vmatprep.subr.mxu0 0.0
      %2324 = vmatpush1.msra.mxu0 0.0
      %2325 = vmatprep.subr.mxu0 0.0
      %2326 = vmatpush1.msra.mxu0 0.0
      %2327 = vmatprep.subr.mxu0 0.0
      %2328 = vmatpush1.msra.mxu0 0.0
      %2329 = vmatprep.subr.mxu0 0.0
      %2330 = vmatpush1.msra.mxu0 0.0
      %2331 = vmatprep.subr.mxu0 0.0
      %2332 = vmatpush1.msra.mxu0 0.0
      %2333 = vmatprep.subr.mxu0 0.0
      %2334 = vmatpush1.msra.mxu0 0.0
      %2335 = vmatprep.subr.mxu0 0.0
      %2336 = vmatpush1.msra.mxu0 0.0
      %2337 = vmatprep.subr.mxu0 0.0
      %2338 = vmatpush1.msra.mxu0 0.0
      %2339 = vmatprep.subr.mxu0 0.0
      %2340 = vmatpush1.msra.mxu0 0.0
      %2341 = vmatprep.subr.mxu0 0.0
      %2342 = vmatpush1.msra.mxu0 0.0
      %2343 = vmatprep.subr.mxu0 0.0
      %2344 = vmatpush1.msra.mxu0 0.0
      %2345 = vmatprep.subr.mxu0 0.0
      %2346 = vmatpush1.msra.mxu0 0.0
      %2347 = vmatprep.subr.mxu0 0.0
      %2348 = vmatpush1.msra.mxu0 0.0
      %2349 = vmatprep.subr.mxu0 0.0
      %2350 = vmatpush1.msra.mxu0 0.0
      %2351 = vmatprep.subr.mxu0 0.0
      %2352 = vmatpush1.msra.mxu0 0.0
      %2353 = vmatprep.subr.mxu0 0.0
      %2354 = vmatpush1.msra.mxu0 0.0
      %2355 = vmatprep.subr.mxu0 0.0
      %2356 = vmatpush1.msra.mxu0 0.0
      %2357 = vmatprep.subr.mxu0 0.0
      %2358 = vmatpush1.msra.mxu0 0.0
      %2359 = vmatprep.subr.mxu0 0.0
      %2360 = vmatpush1.msra.mxu0 0.0
      %2361 = vmatprep.subr.mxu0 0.0
      %2362 = vmatpush1.msra.mxu0 0.0
      %2363 = vmatprep.mubr.f32.mxu0 0.0
      %2364 = vmatmul.mubr.f32.gmra.mrb[0].mxu0 %v2297
      %v2365 = vpop.f32.mrb[0].mxu0
      %v2366 = vadd.f32 0.0, %v2365
      %v2367 = vpop.f32.mrb[0].mxu0
      %2368 = vdwg.mxu0
      %v2369 = vadd.f32 %v2147, %v2220
      %v2370 = vadd.f32 %v2369, %v2293
      %v2371 = vadd.f32 %v2370, %v2366
      %v2372 = vadd.f32 %v369, %v2371
      %v2373 = vld [vmem:[%s6] sm:$0x1]
      %v2374 = vmul.f32 %v2372, %v2372
      %2375 = vadd.xlane.f32.xlu0 %v2374
      %v2376 = vpop.xlane.xlu0 %2375
      %v2377 = vmul.f32 %v2376, 0.03125
      %v2378 = vadd.f32 %v2377, 1e-06
      %v2379 = vrsqrt.pop %v2378
      %v2380 = vmul.f32 %v2372, %v2379
      %v2382 = vlaneseq
      %v2383 = vshrl.u32 %v2382, 7
      %v2384 = vsub.s32 0, %v2383
      %v2385 = vrot.slane %v2373, %v2384
      %v2387 = vmul.f32 %v2380, %v2385
      %v2388 = vld [vmem:[%s7] sm:$0xff]
      %v2389 = vld [vmem:[%s7 + $0x8] sm:$0xff]
      %v2390 = vld [vmem:[%s7 + $0x10] sm:$0xff]
      %v2391 = vld [vmem:[%s7 + $0x18] sm:$0xff]
      %v2392 = vld [vmem:[%s7 + $0x20] sm:$0xff]
      %v2393 = vld [vmem:[%s7 + $0x28] sm:$0xff]
      %v2394 = vld [vmem:[%s7 + $0x30] sm:$0xff]
      %v2395 = vld [vmem:[%s7 + $0x38] sm:$0xff]
      %v2396 = vld [vmem:[%s7 + $0x40] sm:$0xff]
      %v2397 = vld [vmem:[%s7 + $0x48] sm:$0xff]
      %v2398 = vld [vmem:[%s7 + $0x50] sm:$0xff]
      %v2399 = vld [vmem:[%s7 + $0x58] sm:$0xff]
      %v2400 = vld [vmem:[%s7 + $0x60] sm:$0xff]
      %v2401 = vld [vmem:[%s7 + $0x68] sm:$0xff]
      %v2402 = vld [vmem:[%s7 + $0x70] sm:$0xff]
      %v2403 = vld [vmem:[%s7 + $0x78] sm:$0xff]
      %2404 = vmatprep.subr.mxu0 0.0
      %2405 = vmatpush1.msra.mxu0 %v2388
      %2406 = vmatprep.subr.mxu0 0.0
      %2407 = vmatpush1.msra.mxu0 %v2389
      %2408 = vmatprep.subr.mxu0 0.0
      %2409 = vmatpush1.msra.mxu0 %v2390
      %2410 = vmatprep.subr.mxu0 0.0
      %2411 = vmatpush1.msra.mxu0 %v2391
      %2412 = vmatprep.subr.mxu0 0.0
      %2413 = vmatpush1.msra.mxu0 %v2392
      %2414 = vmatprep.subr.mxu0 0.0
      %2415 = vmatpush1.msra.mxu0 %v2393
      %2416 = vmatprep.subr.mxu0 0.0
      %2417 = vmatpush1.msra.mxu0 %v2394
      %2418 = vmatprep.subr.mxu0 0.0
      %2419 = vmatpush1.msra.mxu0 %v2395
      %2420 = vmatprep.subr.mxu0 0.0
      %2421 = vmatpush1.msra.mxu0 %v2396
      %2422 = vmatprep.subr.mxu0 0.0
      %2423 = vmatpush1.msra.mxu0 %v2397
      %2424 = vmatprep.subr.mxu0 0.0
      %2425 = vmatpush1.msra.mxu0 %v2398
      %2426 = vmatprep.subr.mxu0 0.0
      %2427 = vmatpush1.msra.mxu0 %v2399
      %2428 = vmatprep.subr.mxu0 0.0
      %2429 = vmatpush1.msra.mxu0 %v2400
      %2430 = vmatprep.subr.mxu0 0.0
      %2431 = vmatpush1.msra.mxu0 %v2401
      %2432 = vmatprep.subr.mxu0 0.0
      %2433 = vmatpush1.msra.mxu0 %v2402
      %2434 = vmatprep.subr.mxu0 0.0
      %2435 = vmatpush1.msra.mxu0 %v2403
      %2436 = vmatprep.subr.mxu0 0.0
      %2437 = vmatpush1.msra.mxu0 0.0
      %2438 = vmatprep.subr.mxu0 0.0
      %2439 = vmatpush1.msra.mxu0 0.0
      %2440 = vmatprep.subr.mxu0 0.0
      %2441 = vmatpush1.msra.mxu0 0.0
      %2442 = vmatprep.subr.mxu0 0.0
      %2443 = vmatpush1.msra.mxu0 0.0
      %2444 = vmatprep.subr.mxu0 0.0
      %2445 = vmatpush1.msra.mxu0 0.0
      %2446 = vmatprep.subr.mxu0 0.0
      %2447 = vmatpush1.msra.mxu0 0.0
      %2448 = vmatprep.subr.mxu0 0.0
      %2449 = vmatpush1.msra.mxu0 0.0
      %2450 = vmatprep.subr.mxu0 0.0
      %2451 = vmatpush1.msra.mxu0 0.0
      %2452 = vmatprep.subr.mxu0 0.0
      %2453 = vmatpush1.msra.mxu0 0.0
      %2454 = vmatprep.subr.mxu0 0.0
      %2455 = vmatpush1.msra.mxu0 0.0
      %2456 = vmatprep.subr.mxu0 0.0
      %2457 = vmatpush1.msra.mxu0 0.0
      %2458 = vmatprep.subr.mxu0 0.0
      %2459 = vmatpush1.msra.mxu0 0.0
      %2460 = vmatprep.subr.mxu0 0.0
      %2461 = vmatpush1.msra.mxu0 0.0
      %2462 = vmatprep.subr.mxu0 0.0
      %2463 = vmatpush1.msra.mxu0 0.0
      %2464 = vmatprep.subr.mxu0 0.0
      %2465 = vmatpush1.msra.mxu0 0.0
      %2466 = vmatprep.subr.mxu0 0.0
      %2467 = vmatpush1.msra.mxu0 0.0
      %2468 = vmatprep.mubr.f32.mxu0 0.0
      %2469 = vmatmul.mubr.f32.gmra.mrb[0].mxu0 %v2387
      %v2470 = vpop.f32.mrb[0].mxu0
      %v2471 = vadd.f32 0.0, %v2470
      %v2472 = vpop.f32.mrb[0].mxu0
      %2473 = vdwg.mxu0
      %v2474 = vmax.f32 %v2471, 0.0
      %v2475 = vld [vmem:[%s8] sm:$0xff]
      %v2476 = vld [vmem:[%s8 + $0x8] sm:$0xff]
      %v2477 = vld [vmem:[%s8 + $0x10] sm:$0xff]
      %v2478 = vld [vmem:[%s8 + $0x18] sm:$0xff]
      %v2479 = vld [vmem:[%s8 + $0x20] sm:$0xff]
      %v2480 = vld [vmem:[%s8 + $0x28] sm:$0xff]
      %v2481 = vld [vmem:[%s8 + $0x30] sm:$0xff]
      %v2482 = vld [vmem:[%s8 + $0x38] sm:$0xff]
      %v2483 = vld [vmem:[%s8 + $0x40] sm:$0xff]
      %v2484 = vld [vmem:[%s8 + $0x48] sm:$0xff]
      %v2485 = vld [vmem:[%s8 + $0x50] sm:$0xff]
      %v2486 = vld [vmem:[%s8 + $0x58] sm:$0xff]
      %v2487 = vld [vmem:[%s8 + $0x60] sm:$0xff]
      %v2488 = vld [vmem:[%s8 + $0x68] sm:$0xff]
      %v2489 = vld [vmem:[%s8 + $0x70] sm:$0xff]
      %v2490 = vld [vmem:[%s8 + $0x78] sm:$0xff]
      %2491 = vmatprep.subr.mxu0 0.0
      %2492 = vmatpush1.msra.mxu0 %v2475
      %2493 = vmatprep.subr.mxu0 0.0
      %2494 = vmatpush1.msra.mxu0 %v2476
      %2495 = vmatprep.subr.mxu0 0.0
      %2496 = vmatpush1.msra.mxu0 %v2477
      %2497 = vmatprep.subr.mxu0 0.0
      %2498 = vmatpush1.msra.mxu0 %v2478
      %2499 = vmatprep.subr.mxu0 0.0
      %2500 = vmatpush1.msra.mxu0 %v2479
      %2501 = vmatprep.subr.mxu0 0.0
      %2502 = vmatpush1.msra.mxu0 %v2480
      %2503 = vmatprep.subr.mxu0 0.0
      %2504 = vmatpush1.msra.mxu0 %v2481
      %2505 = vmatprep.subr.mxu0 0.0
      %2506 = vmatpush1.msra.mxu0 %v2482
      %2507 = vmatprep.subr.mxu0 0.0
      %2508 = vmatpush1.msra.mxu0 %v2483
      %2509 = vmatprep.subr.mxu0 0.0
      %2510 = vmatpush1.msra.mxu0 %v2484
      %2511 = vmatprep.subr.mxu0 0.0
      %2512 = vmatpush1.msra.mxu0 %v2485
      %2513 = vmatprep.subr.mxu0 0.0
      %2514 = vmatpush1.msra.mxu0 %v2486
      %2515 = vmatprep.subr.mxu0 0.0
      %2516 = vmatpush1.msra.mxu0 %v2487
      %2517 = vmatprep.subr.mxu0 0.0
      %2518 = vmatpush1.msra.mxu0 %v2488
      %2519 = vmatprep.subr.mxu0 0.0
      %2520 = vmatpush1.msra.mxu0 %v2489
      %2521 = vmatprep.subr.mxu0 0.0
      %2522 = vmatpush1.msra.mxu0 %v2490
      %2523 = vmatprep.subr.mxu0 0.0
      %2524 = vmatpush1.msra.mxu0 0.0
      %2525 = vmatprep.subr.mxu0 0.0
      %2526 = vmatpush1.msra.mxu0 0.0
      %2527 = vmatprep.subr.mxu0 0.0
      %2528 = vmatpush1.msra.mxu0 0.0
      %2529 = vmatprep.subr.mxu0 0.0
      %2530 = vmatpush1.msra.mxu0 0.0
      %2531 = vmatprep.subr.mxu0 0.0
      %2532 = vmatpush1.msra.mxu0 0.0
      %2533 = vmatprep.subr.mxu0 0.0
      %2534 = vmatpush1.msra.mxu0 0.0
      %2535 = vmatprep.subr.mxu0 0.0
      %2536 = vmatpush1.msra.mxu0 0.0
      %2537 = vmatprep.subr.mxu0 0.0
      %2538 = vmatpush1.msra.mxu0 0.0
      %2539 = vmatprep.subr.mxu0 0.0
      %2540 = vmatpush1.msra.mxu0 0.0
      %2541 = vmatprep.subr.mxu0 0.0
      %2542 = vmatpush1.msra.mxu0 0.0
      %2543 = vmatprep.subr.mxu0 0.0
      %2544 = vmatpush1.msra.mxu0 0.0
      %2545 = vmatprep.subr.mxu0 0.0
      %2546 = vmatpush1.msra.mxu0 0.0
      %2547 = vmatprep.subr.mxu0 0.0
      %2548 = vmatpush1.msra.mxu0 0.0
      %2549 = vmatprep.subr.mxu0 0.0
      %2550 = vmatpush1.msra.mxu0 0.0
      %2551 = vmatprep.subr.mxu0 0.0
      %2552 = vmatpush1.msra.mxu0 0.0
      %2553 = vmatprep.subr.mxu0 0.0
      %2554 = vmatpush1.msra.mxu0 0.0
      %2555 = vmatprep.mubr.f32.mxu0 0.0
      %2556 = vmatmul.mubr.f32.gmra.mrb[0].mxu0 %v2474
      %v2557 = vpop.f32.mrb[0].mxu0
      %v2558 = vadd.f32 0.0, %v2557
      %v2559 = vpop.f32.mrb[0].mxu0
      %2560 = vdwg.mxu0
      %v2561 = vadd.f32 %v2372, %v2558
      %s2562 = scalar_lea.vmem %s3, 1
      %v2563 = vld [vmem:[%s2562] sm:$0x1]
      %v2564 = vmul.f32 %v2561, %v2561
      %2565 = vadd.xlane.f32.xlu0 %v2564
      %v2566 = vpop.xlane.xlu0 %2565
      %v2567 = vmul.f32 %v2566, 0.03125
      %v2568 = vadd.f32 %v2567, 1e-06
      %v2569 = vrsqrt.pop %v2568
      %v2570 = vmul.f32 %v2561, %v2569
      %v2572 = vlaneseq
      %v2573 = vshrl.u32 %v2572, 7
      %v2574 = vsub.s32 0, %v2573
      %v2575 = vrot.slane %v2563, %v2574
      %v2577 = vmul.f32 %v2570, %v2575
      %s2578 = scalar_lea.vmem %s4, 1536
      %v2579 = vld [vmem:[%s2578] sm:$0xff]
      %v2580 = vld [vmem:[%s2578 + $0x8] sm:$0xff]
      %v2581 = vld [vmem:[%s2578 + $0x10] sm:$0xff]
      %v2582 = vld [vmem:[%s2578 + $0x18] sm:$0xff]
      %v2583 = vld [vmem:[%s2578 + $0x20] sm:$0xff]
      %v2584 = vld [vmem:[%s2578 + $0x28] sm:$0xff]
      %v2585 = vld [vmem:[%s2578 + $0x30] sm:$0xff]
      %v2586 = vld [vmem:[%s2578 + $0x38] sm:$0xff]
      %v2587 = vld [vmem:[%s2578 + $0x40] sm:$0xff]
      %v2588 = vld [vmem:[%s2578 + $0x48] sm:$0xff]
      %v2589 = vld [vmem:[%s2578 + $0x50] sm:$0xff]
      %v2590 = vld [vmem:[%s2578 + $0x58] sm:$0xff]
      %v2591 = vld [vmem:[%s2578 + $0x60] sm:$0xff]
      %v2592 = vld [vmem:[%s2578 + $0x68] sm:$0xff]
      %v2593 = vld [vmem:[%s2578 + $0x70] sm:$0xff]
      %v2594 = vld [vmem:[%s2578 + $0x78] sm:$0xff]
      %v2595 = vld [vmem:[%s2578 + $0x80] sm:$0xff]
      %v2596 = vld [vmem:[%s2578 + $0x88] sm:$0xff]
      %v2597 = vld [vmem:[%s2578 + $0x90] sm:$0xff]
      %v2598 = vld [vmem:[%s2578 + $0x98] sm:$0xff]
      %v2599 = vld [vmem:[%s2578 + $0xa0] sm:$0xff]
      %v2600 = vld [vmem:[%s2578 + $0xa8] sm:$0xff]
      %v2601 = vld [vmem:[%s2578 + $0xb0] sm:$0xff]
      %v2602 = vld [vmem:[%s2578 + $0xb8] sm:$0xff]
      %v2603 = vld [vmem:[%s2578 + $0xc0] sm:$0xff]
      %v2604 = vld [vmem:[%s2578 + $0xc8] sm:$0xff]
      %v2605 = vld [vmem:[%s2578 + $0xd0] sm:$0xff]
      %v2606 = vld [vmem:[%s2578 + $0xd8] sm:$0xff]
      %v2607 = vld [vmem:[%s2578 + $0xe0] sm:$0xff]
      %v2608 = vld [vmem:[%s2578 + $0xe8] sm:$0xff]
      %v2609 = vld [vmem:[%s2578 + $0xf0] sm:$0xff]
      %v2610 = vld [vmem:[%s2578 + $0xf8] sm:$0xff]
      %v2611 = vld [vmem:[%s2578 + $0x100] sm:$0xff]
      %v2612 = vld [vmem:[%s2578 + $0x108] sm:$0xff]
      %v2613 = vld [vmem:[%s2578 + $0x110] sm:$0xff]
      %v2614 = vld [vmem:[%s2578 + $0x118] sm:$0xff]
      %v2615 = vld [vmem:[%s2578 + $0x120] sm:$0xff]
      %v2616 = vld [vmem:[%s2578 + $0x128] sm:$0xff]
      %v2617 = vld [vmem:[%s2578 + $0x130] sm:$0xff]
      %v2618 = vld [vmem:[%s2578 + $0x138] sm:$0xff]
      %v2619 = vld [vmem:[%s2578 + $0x140] sm:$0xff]
      %v2620 = vld [vmem:[%s2578 + $0x148] sm:$0xff]
      %v2621 = vld [vmem:[%s2578 + $0x150] sm:$0xff]
      %v2622 = vld [vmem:[%s2578 + $0x158] sm:$0xff]
      %v2623 = vld [vmem:[%s2578 + $0x160] sm:$0xff]
      %v2624 = vld [vmem:[%s2578 + $0x168] sm:$0xff]
      %v2625 = vld [vmem:[%s2578 + $0x170] sm:$0xff]
      %v2626 = vld [vmem:[%s2578 + $0x178] sm:$0xff]
      %v2627 = vld [vmem:[%s2578 + $0x180] sm:$0xff]
      %v2628 = vld [vmem:[%s2578 + $0x188] sm:$0xff]
      %v2629 = vld [vmem:[%s2578 + $0x190] sm:$0xff]
      %v2630 = vld [vmem:[%s2578 + $0x198] sm:$0xff]
      %v2631 = vld [vmem:[%s2578 + $0x1a0] sm:$0xff]
      %v2632 = vld [vmem:[%s2578 + $0x1a8] sm:$0xff]
      %v2633 = vld [vmem:[%s2578 + $0x1b0] sm:$0xff]
      %v2634 = vld [vmem:[%s2578 + $0x1b8] sm:$0xff]
      %v2635 = vld [vmem:[%s2578 + $0x1c0] sm:$0xff]
      %v2636 = vld [vmem:[%s2578 + $0x1c8] sm:$0xff]
      %v2637 = vld [vmem:[%s2578 + $0x1d0] sm:$0xff]
      %v2638 = vld [vmem:[%s2578 + $0x1d8] sm:$0xff]
      %v2639 = vld [vmem:[%s2578 + $0x1e0] sm:$0xff]
      %v2640 = vld [vmem:[%s2578 + $0x1e8] sm:$0xff]
      %v2641 = vld [vmem:[%s2578 + $0x1f0] sm:$0xff]
      %v2642 = vld [vmem:[%s2578 + $0x1f8] sm:$0xff]
      %v2643 = vld [vmem:[%s2578 + $0x200] sm:$0xff]
      %v2644 = vld [vmem:[%s2578 + $0x208] sm:$0xff]
      %v2645 = vld [vmem:[%s2578 + $0x210] sm:$0xff]
      %v2646 = vld [vmem:[%s2578 + $0x218] sm:$0xff]
      %v2647 = vld [vmem:[%s2578 + $0x220] sm:$0xff]
      %v2648 = vld [vmem:[%s2578 + $0x228] sm:$0xff]
      %v2649 = vld [vmem:[%s2578 + $0x230] sm:$0xff]
      %v2650 = vld [vmem:[%s2578 + $0x238] sm:$0xff]
      %v2651 = vld [vmem:[%s2578 + $0x240] sm:$0xff]
      %v2652 = vld [vmem:[%s2578 + $0x248] sm:$0xff]
      %v2653 = vld [vmem:[%s2578 + $0x250] sm:$0xff]
      %v2654 = vld [vmem:[%s2578 + $0x258] sm:$0xff]
      %v2655 = vld [vmem:[%s2578 + $0x260] sm:$0xff]
      %v2656 = vld [vmem:[%s2578 + $0x268] sm:$0xff]
      %v2657 = vld [vmem:[%s2578 + $0x270] sm:$0xff]
      %v2658 = vld [vmem:[%s2578 + $0x278] sm:$0xff]
      %v2659 = vld [vmem:[%s2578 + $0x280] sm:$0xff]
      %v2660 = vld [vmem:[%s2578 + $0x288] sm:$0xff]
      %v2661 = vld [vmem:[%s2578 + $0x290] sm:$0xff]
      %v2662 = vld [vmem:[%s2578 + $0x298] sm:$0xff]
      %v2663 = vld [vmem:[%s2578 + $0x2a0] sm:$0xff]
      %v2664 = vld [vmem:[%s2578 + $0x2a8] sm:$0xff]
      %v2665 = vld [vmem:[%s2578 + $0x2b0] sm:$0xff]
      %v2666 = vld [vmem:[%s2578 + $0x2b8] sm:$0xff]
      %v2667 = vld [vmem:[%s2578 + $0x2c0] sm:$0xff]
      %v2668 = vld [vmem:[%s2578 + $0x2c8] sm:$0xff]
      %v2669 = vld [vmem:[%s2578 + $0x2d0] sm:$0xff]
      %v2670 = vld [vmem:[%s2578 + $0x2d8] sm:$0xff]
      %v2671 = vld [vmem:[%s2578 + $0x2e0] sm:$0xff]
      %v2672 = vld [vmem:[%s2578 + $0x2e8] sm:$0xff]
      %v2673 = vld [vmem:[%s2578 + $0x2f0] sm:$0xff]
      %v2674 = vld [vmem:[%s2578 + $0x2f8] sm:$0xff]
      %v2675 = vld [vmem:[%s2578 + $0x300] sm:$0xff]
      %v2676 = vld [vmem:[%s2578 + $0x308] sm:$0xff]
      %v2677 = vld [vmem:[%s2578 + $0x310] sm:$0xff]
      %v2678 = vld [vmem:[%s2578 + $0x318] sm:$0xff]
      %v2679 = vld [vmem:[%s2578 + $0x320] sm:$0xff]
      %v2680 = vld [vmem:[%s2578 + $0x328] sm:$0xff]
      %v2681 = vld [vmem:[%s2578 + $0x330] sm:$0xff]
      %v2682 = vld [vmem:[%s2578 + $0x338] sm:$0xff]
      %v2683 = vld [vmem:[%s2578 + $0x340] sm:$0xff]
      %v2684 = vld [vmem:[%s2578 + $0x348] sm:$0xff]
      %v2685 = vld [vmem:[%s2578 + $0x350] sm:$0xff]
      %v2686 = vld [vmem:[%s2578 + $0x358] sm:$0xff]
      %v2687 = vld [vmem:[%s2578 + $0x360] sm:$0xff]
      %v2688 = vld [vmem:[%s2578 + $0x368] sm:$0xff]
      %v2689 = vld [vmem:[%s2578 + $0x370] sm:$0xff]
      %v2690 = vld [vmem:[%s2578 + $0x378] sm:$0xff]
      %v2691 = vld [vmem:[%s2578 + $0x380] sm:$0xff]
      %v2692 = vld [vmem:[%s2578 + $0x388] sm:$0xff]
      %v2693 = vld [vmem:[%s2578 + $0x390] sm:$0xff]
      %v2694 = vld [vmem:[%s2578 + $0x398] sm:$0xff]
      %v2695 = vld [vmem:[%s2578 + $0x3a0] sm:$0xff]
      %v2696 = vld [vmem:[%s2578 + $0x3a8] sm:$0xff]
      %v2697 = vld [vmem:[%s2578 + $0x3b0] sm:$0xff]
      %v2698 = vld [vmem:[%s2578 + $0x3b8] sm:$0xff]
      %v2699 = vld [vmem:[%s2578 + $0x3c0] sm:$0xff]
      %v2700 = vld [vmem:[%s2578 + $0x3c8] sm:$0xff]
      %v2701 = vld [vmem:[%s2578 + $0x3d0] sm:$0xff]
      %v2702 = vld [vmem:[%s2578 + $0x3d8] sm:$0xff]
      %v2703 = vld [vmem:[%s2578 + $0x3e0] sm:$0xff]
      %v2704 = vld [vmem:[%s2578 + $0x3e8] sm:$0xff]
      %v2705 = vld [vmem:[%s2578 + $0x3f0] sm:$0xff]
      %v2706 = vld [vmem:[%s2578 + $0x3f8] sm:$0xff]
      %v2707 = vld [vmem:[%s2578 + $0x400] sm:$0xff]
      %v2708 = vld [vmem:[%s2578 + $0x408] sm:$0xff]
      %v2709 = vld [vmem:[%s2578 + $0x410] sm:$0xff]
      %v2710 = vld [vmem:[%s2578 + $0x418] sm:$0xff]
      %v2711 = vld [vmem:[%s2578 + $0x420] sm:$0xff]
      %v2712 = vld [vmem:[%s2578 + $0x428] sm:$0xff]
      %v2713 = vld [vmem:[%s2578 + $0x430] sm:$0xff]
      %v2714 = vld [vmem:[%s2578 + $0x438] sm:$0xff]
      %v2715 = vld [vmem:[%s2578 + $0x440] sm:$0xff]
      %v2716 = vld [vmem:[%s2578 + $0x448] sm:$0xff]
      %v2717 = vld [vmem:[%s2578 + $0x450] sm:$0xff]
      %v2718 = vld [vmem:[%s2578 + $0x458] sm:$0xff]
      %v2719 = vld [vmem:[%s2578 + $0x460] sm:$0xff]
      %v2720 = vld [vmem:[%s2578 + $0x468] sm:$0xff]
      %v2721 = vld [vmem:[%s2578 + $0x470] sm:$0xff]
      %v2722 = vld [vmem:[%s2578 + $0x478] sm:$0xff]
      %v2723 = vld [vmem:[%s2578 + $0x480] sm:$0xff]
      %v2724 = vld [vmem:[%s2578 + $0x488] sm:$0xff]
      %v2725 = vld [vmem:[%s2578 + $0x490] sm:$0xff]
      %v2726 = vld [vmem:[%s2578 + $0x498] sm:$0xff]
      %v2727 = vld [vmem:[%s2578 + $0x4a0] sm:$0xff]
      %v2728 = vld [vmem:[%s2578 + $0x4a8] sm:$0xff]
      %v2729 = vld [vmem:[%s2578 + $0x4b0] sm:$0xff]
      %v2730 = vld [vmem:[%s2578 + $0x4b8] sm:$0xff]
      %v2731 = vld [vmem:[%s2578 + $0x4c0] sm:$0xff]
      %v2732 = vld [vmem:[%s2578 + $0x4c8] sm:$0xff]
      %v2733 = vld [vmem:[%s2578 + $0x4d0] sm:$0xff]
      %v2734 = vld [vmem:[%s2578 + $0x4d8] sm:$0xff]
      %v2735 = vld [vmem:[%s2578 + $0x4e0] sm:$0xff]
      %v2736 = vld [vmem:[%s2578 + $0x4e8] sm:$0xff]
      %v2737 = vld [vmem:[%s2578 + $0x4f0] sm:$0xff]
      %v2738 = vld [vmem:[%s2578 + $0x4f8] sm:$0xff]
      %v2739 = vld [vmem:[%s2578 + $0x500] sm:$0xff]
      %v2740 = vld [vmem:[%s2578 + $0x508] sm:$0xff]
      %v2741 = vld [vmem:[%s2578 + $0x510] sm:$0xff]
      %v2742 = vld [vmem:[%s2578 + $0x518] sm:$0xff]
      %v2743 = vld [vmem:[%s2578 + $0x520] sm:$0xff]
      %v2744 = vld [vmem:[%s2578 + $0x528] sm:$0xff]
      %v2745 = vld [vmem:[%s2578 + $0x530] sm:$0xff]
      %v2746 = vld [vmem:[%s2578 + $0x538] sm:$0xff]
      %v2747 = vld [vmem:[%s2578 + $0x540] sm:$0xff]
      %v2748 = vld [vmem:[%s2578 + $0x548] sm:$0xff]
      %v2749 = vld [vmem:[%s2578 + $0x550] sm:$0xff]
      %v2750 = vld [vmem:[%s2578 + $0x558] sm:$0xff]
      %v2751 = vld [vmem:[%s2578 + $0x560] sm:$0xff]
      %v2752 = vld [vmem:[%s2578 + $0x568] sm:$0xff]
      %v2753 = vld [vmem:[%s2578 + $0x570] sm:$0xff]
      %v2754 = vld [vmem:[%s2578 + $0x578] sm:$0xff]
      %v2755 = vld [vmem:[%s2578 + $0x580] sm:$0xff]
      %v2756 = vld [vmem:[%s2578 + $0x588] sm:$0xff]
      %v2757 = vld [vmem:[%s2578 + $0x590] sm:$0xff]
      %v2758 = vld [vmem:[%s2578 + $0x598] sm:$0xff]
      %v2759 = vld [vmem:[%s2578 + $0x5a0] sm:$0xff]
      %v2760 = vld [vmem:[%s2578 + $0x5a8] sm:$0xff]
      %v2761 = vld [vmem:[%s2578 + $0x5b0] sm:$0xff]
      %v2762 = vld [vmem:[%s2578 + $0x5b8] sm:$0xff]
      %v2763 = vld [vmem:[%s2578 + $0x5c0] sm:$0xff]
      %v2764 = vld [vmem:[%s2578 + $0x5c8] sm:$0xff]
      %v2765 = vld [vmem:[%s2578 + $0x5d0] sm:$0xff]
      %v2766 = vld [vmem:[%s2578 + $0x5d8] sm:$0xff]
      %v2767 = vld [vmem:[%s2578 + $0x5e0] sm:$0xff]
      %v2768 = vld [vmem:[%s2578 + $0x5e8] sm:$0xff]
      %v2769 = vld [vmem:[%s2578 + $0x5f0] sm:$0xff]
      %v2770 = vld [vmem:[%s2578 + $0x5f8] sm:$0xff]
      %2771 = vmatprep.subr.mxu0 0.0
      %2772 = vmatpush1.msra.mxu0 %v2579
      %2773 = vmatprep.subr.mxu0 0.0
      %2774 = vmatpush1.msra.mxu0 %v2580
      %2775 = vmatprep.subr.mxu0 0.0
      %2776 = vmatpush1.msra.mxu0 %v2581
      %2777 = vmatprep.subr.mxu0 0.0
      %2778 = vmatpush1.msra.mxu0 %v2582
      %2779 = vmatprep.subr.mxu0 0.0
      %2780 = vmatpush1.msra.mxu0 %v2583
      %2781 = vmatprep.subr.mxu0 0.0
      %2782 = vmatpush1.msra.mxu0 %v2584
      %2783 = vmatprep.subr.mxu0 0.0
      %2784 = vmatpush1.msra.mxu0 %v2585
      %2785 = vmatprep.subr.mxu0 0.0
      %2786 = vmatpush1.msra.mxu0 %v2586
      %2787 = vmatprep.subr.mxu0 0.0
      %2788 = vmatpush1.msra.mxu0 %v2587
      %2789 = vmatprep.subr.mxu0 0.0
      %2790 = vmatpush1.msra.mxu0 %v2588
      %2791 = vmatprep.subr.mxu0 0.0
      %2792 = vmatpush1.msra.mxu0 %v2589
      %2793 = vmatprep.subr.mxu0 0.0
      %2794 = vmatpush1.msra.mxu0 %v2590
      %2795 = vmatprep.subr.mxu0 0.0
      %2796 = vmatpush1.msra.mxu0 %v2591
      %2797 = vmatprep.subr.mxu0 0.0
      %2798 = vmatpush1.msra.mxu0 %v2592
      %2799 = vmatprep.subr.mxu0 0.0
      %2800 = vmatpush1.msra.mxu0 %v2593
      %2801 = vmatprep.subr.mxu0 0.0
      %2802 = vmatpush1.msra.mxu0 %v2594
      %2803 = vmatprep.subr.mxu0 0.0
      %2804 = vmatpush1.msra.mxu0 0.0
      %2805 = vmatprep.subr.mxu0 0.0
      %2806 = vmatpush1.msra.mxu0 0.0
      %2807 = vmatprep.subr.mxu0 0.0
      %2808 = vmatpush1.msra.mxu0 0.0
      %2809 = vmatprep.subr.mxu0 0.0
      %2810 = vmatpush1.msra.mxu0 0.0
      %2811 = vmatprep.subr.mxu0 0.0
      %2812 = vmatpush1.msra.mxu0 0.0
      %2813 = vmatprep.subr.mxu0 0.0
      %2814 = vmatpush1.msra.mxu0 0.0
      %2815 = vmatprep.subr.mxu0 0.0
      %2816 = vmatpush1.msra.mxu0 0.0
      %2817 = vmatprep.subr.mxu0 0.0
      %2818 = vmatpush1.msra.mxu0 0.0
      %2819 = vmatprep.subr.mxu0 0.0
      %2820 = vmatpush1.msra.mxu0 0.0
      %2821 = vmatprep.subr.mxu0 0.0
      %2822 = vmatpush1.msra.mxu0 0.0
      %2823 = vmatprep.subr.mxu0 0.0
      %2824 = vmatpush1.msra.mxu0 0.0
      %2825 = vmatprep.subr.mxu0 0.0
      %2826 = vmatpush1.msra.mxu0 0.0
      %2827 = vmatprep.subr.mxu0 0.0
      %2828 = vmatpush1.msra.mxu0 0.0
      %2829 = vmatprep.subr.mxu0 0.0
      %2830 = vmatpush1.msra.mxu0 0.0
      %2831 = vmatprep.subr.mxu0 0.0
      %2832 = vmatpush1.msra.mxu0 0.0
      %2833 = vmatprep.subr.mxu0 0.0
      %2834 = vmatpush1.msra.mxu0 0.0
      %2835 = vmatprep.mubr.f32.mxu0 0.0
      %2836 = vmatmul.mubr.f32.gmra.mrb[0].mxu0 %v2577
      %v2837 = vpop.f32.mrb[0].mxu0
      %v2838 = vadd.f32 0.0, %v2837
      %v2839 = vpop.f32.mrb[0].mxu0
      %2840 = vdwg.mxu0
      %2841 = vmatprep.subr.mxu0 0.0
      %2842 = vmatpush1.msra.mxu0 %v2595
      %2843 = vmatprep.subr.mxu0 0.0
      %2844 = vmatpush1.msra.mxu0 %v2596
      %2845 = vmatprep.subr.mxu0 0.0
      %2846 = vmatpush1.msra.mxu0 %v2597
      %2847 = vmatprep.subr.mxu0 0.0
      %2848 = vmatpush1.msra.mxu0 %v2598
      %2849 = vmatprep.subr.mxu0 0.0
      %2850 = vmatpush1.msra.mxu0 %v2599
      %2851 = vmatprep.subr.mxu0 0.0
      %2852 = vmatpush1.msra.mxu0 %v2600
      %2853 = vmatprep.subr.mxu0 0.0
      %2854 = vmatpush1.msra.mxu0 %v2601
      %2855 = vmatprep.subr.mxu0 0.0
      %2856 = vmatpush1.msra.mxu0 %v2602
      %2857 = vmatprep.subr.mxu0 0.0
      %2858 = vmatpush1.msra.mxu0 %v2603
      %2859 = vmatprep.subr.mxu0 0.0
      %2860 = vmatpush1.msra.mxu0 %v2604
      %2861 = vmatprep.subr.mxu0 0.0
      %2862 = vmatpush1.msra.mxu0 %v2605
      %2863 = vmatprep.subr.mxu0 0.0
      %2864 = vmatpush1.msra.mxu0 %v2606
      %2865 = vmatprep.subr.mxu0 0.0
      %2866 = vmatpush1.msra.mxu0 %v2607
      %2867 = vmatprep.subr.mxu0 0.0
      %2868 = vmatpush1.msra.mxu0 %v2608
      %2869 = vmatprep.subr.mxu0 0.0
      %2870 = vmatpush1.msra.mxu0 %v2609
      %2871 = vmatprep.subr.mxu0 0.0
      %2872 = vmatpush1.msra.mxu0 %v2610
      %2873 = vmatprep.subr.mxu0 0.0
      %2874 = vmatpush1.msra.mxu0 0.0
      %2875 = vmatprep.subr.mxu0 0.0
      %2876 = vmatpush1.msra.mxu0 0.0
      %2877 = vmatprep.subr.mxu0 0.0
      %2878 = vmatpush1.msra.mxu0 0.0
      %2879 = vmatprep.subr.mxu0 0.0
      %2880 = vmatpush1.msra.mxu0 0.0
      %2881 = vmatprep.subr.mxu0 0.0
      %2882 = vmatpush1.msra.mxu0 0.0
      %2883 = vmatprep.subr.mxu0 0.0
      %2884 = vmatpush1.msra.mxu0 0.0
      %2885 = vmatprep.subr.mxu0 0.0
      %2886 = vmatpush1.msra.mxu0 0.0
      %2887 = vmatprep.subr.mxu0 0.0
      %2888 = vmatpush1.msra.mxu0 0.0
      %2889 = vmatprep.subr.mxu0 0.0
      %2890 = vmatpush1.msra.mxu0 0.0
      %2891 = vmatprep.subr.mxu0 0.0
      %2892 = vmatpush1.msra.mxu0 0.0
      %2893 = vmatprep.subr.mxu0 0.0
      %2894 = vmatpush1.msra.mxu0 0.0
      %2895 = vmatprep.subr.mxu0 0.0
      %2896 = vmatpush1.msra.mxu0 0.0
      %2897 = vmatprep.subr.mxu0 0.0
      %2898 = vmatpush1.msra.mxu0 0.0
      %2899 = vmatprep.subr.mxu0 0.0
      %2900 = vmatpush1.msra.mxu0 0.0
      %2901 = vmatprep.subr.mxu0 0.0
      %2902 = vmatpush1.msra.mxu0 0.0
      %2903 = vmatprep.subr.mxu0 0.0
      %2904 = vmatpush1.msra.mxu0 0.0
      %2905 = vmatprep.mubr.f32.mxu0 0.0
      %2906 = vmatmul.mubr.f32.gmra.mrb[0].mxu0 %v2577
      %v2907 = vpop.f32.mrb[0].mxu0
      %v2908 = vadd.f32 0.0, %v2907
      %v2909 = vpop.f32.mrb[0].mxu0
      %2910 = vdwg.mxu0
      %2911 = vmatprep.subr.mxu0 0.0
      %2912 = vmatpush1.msra.mxu0 %v2611
      %2913 = vmatprep.subr.mxu0 0.0
      %2914 = vmatpush1.msra.mxu0 %v2612
      %2915 = vmatprep.subr.mxu0 0.0
      %2916 = vmatpush1.msra.mxu0 %v2613
      %2917 = vmatprep.subr.mxu0 0.0
      %2918 = vmatpush1.msra.mxu0 %v2614
      %2919 = vmatprep.subr.mxu0 0.0
      %2920 = vmatpush1.msra.mxu0 %v2615
      %2921 = vmatprep.subr.mxu0 0.0
      %2922 = vmatpush1.msra.mxu0 %v2616
      %2923 = vmatprep.subr.mxu0 0.0
      %2924 = vmatpush1.msra.mxu0 %v2617
      %2925 = vmatprep.subr.mxu0 0.0
      %2926 = vmatpush1.msra.mxu0 %v2618
      %2927 = vmatprep.subr.mxu0 0.0
      %2928 = vmatpush1.msra.mxu0 %v2619
      %2929 = vmatprep.subr.mxu0 0.0
      %2930 = vmatpush1.msra.mxu0 %v2620
      %2931 = vmatprep.subr.mxu0 0.0
      %2932 = vmatpush1.msra.mxu0 %v2621
      %2933 = vmatprep.subr.mxu0 0.0
      %2934 = vmatpush1.msra.mxu0 %v2622
      %2935 = vmatprep.subr.mxu0 0.0
      %2936 = vmatpush1.msra.mxu0 %v2623
      %2937 = vmatprep.subr.mxu0 0.0
      %2938 = vmatpush1.msra.mxu0 %v2624
      %2939 = vmatprep.subr.mxu0 0.0
      %2940 = vmatpush1.msra.mxu0 %v2625
      %2941 = vmatprep.subr.mxu0 0.0
      %2942 = vmatpush1.msra.mxu0 %v2626
      %2943 = vmatprep.subr.mxu0 0.0
      %2944 = vmatpush1.msra.mxu0 0.0
      %2945 = vmatprep.subr.mxu0 0.0
      %2946 = vmatpush1.msra.mxu0 0.0
      %2947 = vmatprep.subr.mxu0 0.0
      %2948 = vmatpush1.msra.mxu0 0.0
      %2949 = vmatprep.subr.mxu0 0.0
      %2950 = vmatpush1.msra.mxu0 0.0
      %2951 = vmatprep.subr.mxu0 0.0
      %2952 = vmatpush1.msra.mxu0 0.0
      %2953 = vmatprep.subr.mxu0 0.0
      %2954 = vmatpush1.msra.mxu0 0.0
      %2955 = vmatprep.subr.mxu0 0.0
      %2956 = vmatpush1.msra.mxu0 0.0
      %2957 = vmatprep.subr.mxu0 0.0
      %2958 = vmatpush1.msra.mxu0 0.0
      %2959 = vmatprep.subr.mxu0 0.0
      %2960 = vmatpush1.msra.mxu0 0.0
      %2961 = vmatprep.subr.mxu0 0.0
      %2962 = vmatpush1.msra.mxu0 0.0
      %2963 = vmatprep.subr.mxu0 0.0
      %2964 = vmatpush1.msra.mxu0 0.0
      %2965 = vmatprep.subr.mxu0 0.0
      %2966 = vmatpush1.msra.mxu0 0.0
      %2967 = vmatprep.subr.mxu0 0.0
      %2968 = vmatpush1.msra.mxu0 0.0
      %2969 = vmatprep.subr.mxu0 0.0
      %2970 = vmatpush1.msra.mxu0 0.0
      %2971 = vmatprep.subr.mxu0 0.0
      %2972 = vmatpush1.msra.mxu0 0.0
      %2973 = vmatprep.subr.mxu0 0.0
      %2974 = vmatpush1.msra.mxu0 0.0
      %2975 = vmatprep.mubr.f32.mxu0 0.0
      %2976 = vmatmul.mubr.f32.gmra.mrb[0].mxu0 %v2577
      %v2977 = vpop.f32.mrb[0].mxu0
      %v2978 = vadd.f32 0.0, %v2977
      %v2979 = vpop.f32.mrb[0].mxu0
      %2980 = vdwg.mxu0
      %2981 = vmatprep.subr.mxu0 0.0
      %2982 = vmatpush1.msra.mxu0 %v2627
      %2983 = vmatprep.subr.mxu0 0.0
      %2984 = vmatpush1.msra.mxu0 %v2628
      %2985 = vmatprep.subr.mxu0 0.0
      %2986 = vmatpush1.msra.mxu0 %v2629
      %2987 = vmatprep.subr.mxu0 0.0
      %2988 = vmatpush1.msra.mxu0 %v2630
      %2989 = vmatprep.subr.mxu0 0.0
      %2990 = vmatpush1.msra.mxu0 %v2631
      %2991 = vmatprep.subr.mxu0 0.0
      %2992 = vmatpush1.msra.mxu0 %v2632
      %2993 = vmatprep.subr.mxu0 0.0
      %2994 = vmatpush1.msra.mxu0 %v2633
      %2995 = vmatprep.subr.mxu0 0.0
      %2996 = vmatpush1.msra.mxu0 %v2634
      %2997 = vmatprep.subr.mxu0 0.0
      %2998 = vmatpush1.msra.mxu0 %v2635
      %2999 = vmatprep.subr.mxu0 0.0
      %3000 = vmatpush1.msra.mxu0 %v2636
      %3001 = vmatprep.subr.mxu0 0.0
      %3002 = vmatpush1.msra.mxu0 %v2637
      %3003 = vmatprep.subr.mxu0 0.0
      %3004 = vmatpush1.msra.mxu0 %v2638
      %3005 = vmatprep.subr.mxu0 0.0
      %3006 = vmatpush1.msra.mxu0 %v2639
      %3007 = vmatprep.subr.mxu0 0.0
      %3008 = vmatpush1.msra.mxu0 %v2640
      %3009 = vmatprep.subr.mxu0 0.0
      %3010 = vmatpush1.msra.mxu0 %v2641
      %3011 = vmatprep.subr.mxu0 0.0
      %3012 = vmatpush1.msra.mxu0 %v2642
      %3013 = vmatprep.subr.mxu0 0.0
      %3014 = vmatpush1.msra.mxu0 0.0
      %3015 = vmatprep.subr.mxu0 0.0
      %3016 = vmatpush1.msra.mxu0 0.0
      %3017 = vmatprep.subr.mxu0 0.0
      %3018 = vmatpush1.msra.mxu0 0.0
      %3019 = vmatprep.subr.mxu0 0.0
      %3020 = vmatpush1.msra.mxu0 0.0
      %3021 = vmatprep.subr.mxu0 0.0
      %3022 = vmatpush1.msra.mxu0 0.0
      %3023 = vmatprep.subr.mxu0 0.0
      %3024 = vmatpush1.msra.mxu0 0.0
      %3025 = vmatprep.subr.mxu0 0.0
      %3026 = vmatpush1.msra.mxu0 0.0
      %3027 = vmatprep.subr.mxu0 0.0
      %3028 = vmatpush1.msra.mxu0 0.0
      %3029 = vmatprep.subr.mxu0 0.0
      %3030 = vmatpush1.msra.mxu0 0.0
      %3031 = vmatprep.subr.mxu0 0.0
      %3032 = vmatpush1.msra.mxu0 0.0
      %3033 = vmatprep.subr.mxu0 0.0
      %3034 = vmatpush1.msra.mxu0 0.0
      %3035 = vmatprep.subr.mxu0 0.0
      %3036 = vmatpush1.msra.mxu0 0.0
      %3037 = vmatprep.subr.mxu0 0.0
      %3038 = vmatpush1.msra.mxu0 0.0
      %3039 = vmatprep.subr.mxu0 0.0
      %3040 = vmatpush1.msra.mxu0 0.0
      %3041 = vmatprep.subr.mxu0 0.0
      %3042 = vmatpush1.msra.mxu0 0.0
      %3043 = vmatprep.subr.mxu0 0.0
      %3044 = vmatpush1.msra.mxu0 0.0
      %3045 = vmatprep.mubr.f32.mxu0 0.0
      %3046 = vmatmul.mubr.f32.gmra.mrb[0].mxu0 %v2577
      %v3047 = vpop.f32.mrb[0].mxu0
      %v3048 = vadd.f32 0.0, %v3047
      %v3049 = vpop.f32.mrb[0].mxu0
      %3050 = vdwg.mxu0
      %3051 = vmatprep.subr.mxu0 0.0
      %3052 = vmatpush1.msra.mxu0 %v2643
      %3053 = vmatprep.subr.mxu0 0.0
      %3054 = vmatpush1.msra.mxu0 %v2644
      %3055 = vmatprep.subr.mxu0 0.0
      %3056 = vmatpush1.msra.mxu0 %v2645
      %3057 = vmatprep.subr.mxu0 0.0
      %3058 = vmatpush1.msra.mxu0 %v2646
      %3059 = vmatprep.subr.mxu0 0.0
      %3060 = vmatpush1.msra.mxu0 %v2647
      %3061 = vmatprep.subr.mxu0 0.0
      %3062 = vmatpush1.msra.mxu0 %v2648
      %3063 = vmatprep.subr.mxu0 0.0
      %3064 = vmatpush1.msra.mxu0 %v2649
      %3065 = vmatprep.subr.mxu0 0.0
      %3066 = vmatpush1.msra.mxu0 %v2650
      %3067 = vmatprep.subr.mxu0 0.0
      %3068 = vmatpush1.msra.mxu0 %v2651
      %3069 = vmatprep.subr.mxu0 0.0
      %3070 = vmatpush1.msra.mxu0 %v2652
      %3071 = vmatprep.subr.mxu0 0.0
      %3072 = vmatpush1.msra.mxu0 %v2653
      %3073 = vmatprep.subr.mxu0 0.0
      %3074 = vmatpush1.msra.mxu0 %v2654
      %3075 = vmatprep.subr.mxu0 0.0
      %3076 = vmatpush1.msra.mxu0 %v2655
      %3077 = vmatprep.subr.mxu0 0.0
      %3078 = vmatpush1.msra.mxu0 %v2656
      %3079 = vmatprep.subr.mxu0 0.0
      %3080 = vmatpush1.msra.mxu0 %v2657
      %3081 = vmatprep.subr.mxu0 0.0
      %3082 = vmatpush1.msra.mxu0 %v2658
      %3083 = vmatprep.subr.mxu0 0.0
      %3084 = vmatpush1.msra.mxu0 0.0
      %3085 = vmatprep.subr.mxu0 0.0
      %3086 = vmatpush1.msra.mxu0 0.0
      %3087 = vmatprep.subr.mxu0 0.0
      %3088 = vmatpush1.msra.mxu0 0.0
      %3089 = vmatprep.subr.mxu0 0.0
      %3090 = vmatpush1.msra.mxu0 0.0
      %3091 = vmatprep.subr.mxu0 0.0
      %3092 = vmatpush1.msra.mxu0 0.0
      %3093 = vmatprep.subr.mxu0 0.0
      %3094 = vmatpush1.msra.mxu0 0.0
      %3095 = vmatprep.subr.mxu0 0.0
      %3096 = vmatpush1.msra.mxu0 0.0
      %3097 = vmatprep.subr.mxu0 0.0
      %3098 = vmatpush1.msra.mxu0 0.0
      %3099 = vmatprep.subr.mxu0 0.0
      %3100 = vmatpush1.msra.mxu0 0.0
      %3101 = vmatprep.subr.mxu0 0.0
      %3102 = vmatpush1.msra.mxu0 0.0
      %3103 = vmatprep.subr.mxu0 0.0
      %3104 = vmatpush1.msra.mxu0 0.0
      %3105 = vmatprep.subr.mxu0 0.0
      %3106 = vmatpush1.msra.mxu0 0.0
      %3107 = vmatprep.subr.mxu0 0.0
      %3108 = vmatpush1.msra.mxu0 0.0
      %3109 = vmatprep.subr.mxu0 0.0
      %3110 = vmatpush1.msra.mxu0 0.0
      %3111 = vmatprep.subr.mxu0 0.0
      %3112 = vmatpush1.msra.mxu0 0.0
      %3113 = vmatprep.subr.mxu0 0.0
      %3114 = vmatpush1.msra.mxu0 0.0
      %3115 = vmatprep.mubr.f32.mxu0 0.0
      %3116 = vmatmul.mubr.f32.gmra.mrb[0].mxu0 %v2577
      %v3117 = vpop.f32.mrb[0].mxu0
      %v3118 = vadd.f32 0.0, %v3117
      %v3119 = vpop.f32.mrb[0].mxu0
      %3120 = vdwg.mxu0
      %3121 = vmatprep.subr.mxu0 0.0
      %3122 = vmatpush1.msra.mxu0 %v2659
      %3123 = vmatprep.subr.mxu0 0.0
      %3124 = vmatpush1.msra.mxu0 %v2660
      %3125 = vmatprep.subr.mxu0 0.0
      %3126 = vmatpush1.msra.mxu0 %v2661
      %3127 = vmatprep.subr.mxu0 0.0
      %3128 = vmatpush1.msra.mxu0 %v2662
      %3129 = vmatprep.subr.mxu0 0.0
      %3130 = vmatpush1.msra.mxu0 %v2663
      %3131 = vmatprep.subr.mxu0 0.0
      %3132 = vmatpush1.msra.mxu0 %v2664
      %3133 = vmatprep.subr.mxu0 0.0
      %3134 = vmatpush1.msra.mxu0 %v2665
      %3135 = vmatprep.subr.mxu0 0.0
      %3136 = vmatpush1.msra.mxu0 %v2666
      %3137 = vmatprep.subr.mxu0 0.0
      %3138 = vmatpush1.msra.mxu0 %v2667
      %3139 = vmatprep.subr.mxu0 0.0
      %3140 = vmatpush1.msra.mxu0 %v2668
      %3141 = vmatprep.subr.mxu0 0.0
      %3142 = vmatpush1.msra.mxu0 %v2669
      %3143 = vmatprep.subr.mxu0 0.0
      %3144 = vmatpush1.msra.mxu0 %v2670
      %3145 = vmatprep.subr.mxu0 0.0
      %3146 = vmatpush1.msra.mxu0 %v2671
      %3147 = vmatprep.subr.mxu0 0.0
      %3148 = vmatpush1.msra.mxu0 %v2672
      %3149 = vmatprep.subr.mxu0 0.0
      %3150 = vmatpush1.msra.mxu0 %v2673
      %3151 = vmatprep.subr.mxu0 0.0
      %3152 = vmatpush1.msra.mxu0 %v2674
      %3153 = vmatprep.subr.mxu0 0.0
      %3154 = vmatpush1.msra.mxu0 0.0
      %3155 = vmatprep.subr.mxu0 0.0
      %3156 = vmatpush1.msra.mxu0 0.0
      %3157 = vmatprep.subr.mxu0 0.0
      %3158 = vmatpush1.msra.mxu0 0.0
      %3159 = vmatprep.subr.mxu0 0.0
      %3160 = vmatpush1.msra.mxu0 0.0
      %3161 = vmatprep.subr.mxu0 0.0
      %3162 = vmatpush1.msra.mxu0 0.0
      %3163 = vmatprep.subr.mxu0 0.0
      %3164 = vmatpush1.msra.mxu0 0.0
      %3165 = vmatprep.subr.mxu0 0.0
      %3166 = vmatpush1.msra.mxu0 0.0
      %3167 = vmatprep.subr.mxu0 0.0
      %3168 = vmatpush1.msra.mxu0 0.0
      %3169 = vmatprep.subr.mxu0 0.0
      %3170 = vmatpush1.msra.mxu0 0.0
      %3171 = vmatprep.subr.mxu0 0.0
      %3172 = vmatpush1.msra.mxu0 0.0
      %3173 = vmatprep.subr.mxu0 0.0
      %3174 = vmatpush1.msra.mxu0 0.0
      %3175 = vmatprep.subr.mxu0 0.0
      %3176 = vmatpush1.msra.mxu0 0.0
      %3177 = vmatprep.subr.mxu0 0.0
      %3178 = vmatpush1.msra.mxu0 0.0
      %3179 = vmatprep.subr.mxu0 0.0
      %3180 = vmatpush1.msra.mxu0 0.0
      %3181 = vmatprep.subr.mxu0 0.0
      %3182 = vmatpush1.msra.mxu0 0.0
      %3183 = vmatprep.subr.mxu0 0.0
      %3184 = vmatpush1.msra.mxu0 0.0
      %3185 = vmatprep.mubr.f32.mxu0 0.0
      %3186 = vmatmul.mubr.f32.gmra.mrb[0].mxu0 %v2577
      %v3187 = vpop.f32.mrb[0].mxu0
      %v3188 = vadd.f32 0.0, %v3187
      %v3189 = vpop.f32.mrb[0].mxu0
      %3190 = vdwg.mxu0
      %3191 = vmatprep.subr.mxu0 0.0
      %3192 = vmatpush1.msra.mxu0 %v2675
      %3193 = vmatprep.subr.mxu0 0.0
      %3194 = vmatpush1.msra.mxu0 %v2676
      %3195 = vmatprep.subr.mxu0 0.0
      %3196 = vmatpush1.msra.mxu0 %v2677
      %3197 = vmatprep.subr.mxu0 0.0
      %3198 = vmatpush1.msra.mxu0 %v2678
      %3199 = vmatprep.subr.mxu0 0.0
      %3200 = vmatpush1.msra.mxu0 %v2679
      %3201 = vmatprep.subr.mxu0 0.0
      %3202 = vmatpush1.msra.mxu0 %v2680
      %3203 = vmatprep.subr.mxu0 0.0
      %3204 = vmatpush1.msra.mxu0 %v2681
      %3205 = vmatprep.subr.mxu0 0.0
      %3206 = vmatpush1.msra.mxu0 %v2682
      %3207 = vmatprep.subr.mxu0 0.0
      %3208 = vmatpush1.msra.mxu0 %v2683
      %3209 = vmatprep.subr.mxu0 0.0
      %3210 = vmatpush1.msra.mxu0 %v2684
      %3211 = vmatprep.subr.mxu0 0.0
      %3212 = vmatpush1.msra.mxu0 %v2685
      %3213 = vmatprep.subr.mxu0 0.0
      %3214 = vmatpush1.msra.mxu0 %v2686
      %3215 = vmatprep.subr.mxu0 0.0
      %3216 = vmatpush1.msra.mxu0 %v2687
      %3217 = vmatprep.subr.mxu0 0.0
      %3218 = vmatpush1.msra.mxu0 %v2688
      %3219 = vmatprep.subr.mxu0 0.0
      %3220 = vmatpush1.msra.mxu0 %v2689
      %3221 = vmatprep.subr.mxu0 0.0
      %3222 = vmatpush1.msra.mxu0 %v2690
      %3223 = vmatprep.subr.mxu0 0.0
      %3224 = vmatpush1.msra.mxu0 0.0
      %3225 = vmatprep.subr.mxu0 0.0
      %3226 = vmatpush1.msra.mxu0 0.0
      %3227 = vmatprep.subr.mxu0 0.0
      %3228 = vmatpush1.msra.mxu0 0.0
      %3229 = vmatprep.subr.mxu0 0.0
      %3230 = vmatpush1.msra.mxu0 0.0
      %3231 = vmatprep.subr.mxu0 0.0
      %3232 = vmatpush1.msra.mxu0 0.0
      %3233 = vmatprep.subr.mxu0 0.0
      %3234 = vmatpush1.msra.mxu0 0.0
      %3235 = vmatprep.subr.mxu0 0.0
      %3236 = vmatpush1.msra.mxu0 0.0
      %3237 = vmatprep.subr.mxu0 0.0
      %3238 = vmatpush1.msra.mxu0 0.0
      %3239 = vmatprep.subr.mxu0 0.0
      %3240 = vmatpush1.msra.mxu0 0.0
      %3241 = vmatprep.subr.mxu0 0.0
      %3242 = vmatpush1.msra.mxu0 0.0
      %3243 = vmatprep.subr.mxu0 0.0
      %3244 = vmatpush1.msra.mxu0 0.0
      %3245 = vmatprep.subr.mxu0 0.0
      %3246 = vmatpush1.msra.mxu0 0.0
      %3247 = vmatprep.subr.mxu0 0.0
      %3248 = vmatpush1.msra.mxu0 0.0
      %3249 = vmatprep.subr.mxu0 0.0
      %3250 = vmatpush1.msra.mxu0 0.0
      %3251 = vmatprep.subr.mxu0 0.0
      %3252 = vmatpush1.msra.mxu0 0.0
      %3253 = vmatprep.subr.mxu0 0.0
      %3254 = vmatpush1.msra.mxu0 0.0
      %3255 = vmatprep.mubr.f32.mxu0 0.0
      %3256 = vmatmul.mubr.f32.gmra.mrb[0].mxu0 %v2577
      %v3257 = vpop.f32.mrb[0].mxu0
      %v3258 = vadd.f32 0.0, %v3257
      %v3259 = vpop.f32.mrb[0].mxu0
      %3260 = vdwg.mxu0
      %3261 = vmatprep.subr.mxu0 0.0
      %3262 = vmatpush1.msra.mxu0 %v2691
      %3263 = vmatprep.subr.mxu0 0.0
      %3264 = vmatpush1.msra.mxu0 %v2692
      %3265 = vmatprep.subr.mxu0 0.0
      %3266 = vmatpush1.msra.mxu0 %v2693
      %3267 = vmatprep.subr.mxu0 0.0
      %3268 = vmatpush1.msra.mxu0 %v2694
      %3269 = vmatprep.subr.mxu0 0.0
      %3270 = vmatpush1.msra.mxu0 %v2695
      %3271 = vmatprep.subr.mxu0 0.0
      %3272 = vmatpush1.msra.mxu0 %v2696
      %3273 = vmatprep.subr.mxu0 0.0
      %3274 = vmatpush1.msra.mxu0 %v2697
      %3275 = vmatprep.subr.mxu0 0.0
      %3276 = vmatpush1.msra.mxu0 %v2698
      %3277 = vmatprep.subr.mxu0 0.0
      %3278 = vmatpush1.msra.mxu0 %v2699
      %3279 = vmatprep.subr.mxu0 0.0
      %3280 = vmatpush1.msra.mxu0 %v2700
      %3281 = vmatprep.subr.mxu0 0.0
      %3282 = vmatpush1.msra.mxu0 %v2701
      %3283 = vmatprep.subr.mxu0 0.0
      %3284 = vmatpush1.msra.mxu0 %v2702
      %3285 = vmatprep.subr.mxu0 0.0
      %3286 = vmatpush1.msra.mxu0 %v2703
      %3287 = vmatprep.subr.mxu0 0.0
      %3288 = vmatpush1.msra.mxu0 %v2704
      %3289 = vmatprep.subr.mxu0 0.0
      %3290 = vmatpush1.msra.mxu0 %v2705
      %3291 = vmatprep.subr.mxu0 0.0
      %3292 = vmatpush1.msra.mxu0 %v2706
      %3293 = vmatprep.subr.mxu0 0.0
      %3294 = vmatpush1.msra.mxu0 0.0
      %3295 = vmatprep.subr.mxu0 0.0
      %3296 = vmatpush1.msra.mxu0 0.0
      %3297 = vmatprep.subr.mxu0 0.0
      %3298 = vmatpush1.msra.mxu0 0.0
      %3299 = vmatprep.subr.mxu0 0.0
      %3300 = vmatpush1.msra.mxu0 0.0
      %3301 = vmatprep.subr.mxu0 0.0
      %3302 = vmatpush1.msra.mxu0 0.0
      %3303 = vmatprep.subr.mxu0 0.0
      %3304 = vmatpush1.msra.mxu0 0.0
      %3305 = vmatprep.subr.mxu0 0.0
      %3306 = vmatpush1.msra.mxu0 0.0
      %3307 = vmatprep.subr.mxu0 0.0
      %3308 = vmatpush1.msra.mxu0 0.0
      %3309 = vmatprep.subr.mxu0 0.0
      %3310 = vmatpush1.msra.mxu0 0.0
      %3311 = vmatprep.subr.mxu0 0.0
      %3312 = vmatpush1.msra.mxu0 0.0
      %3313 = vmatprep.subr.mxu0 0.0
      %3314 = vmatpush1.msra.mxu0 0.0
      %3315 = vmatprep.subr.mxu0 0.0
      %3316 = vmatpush1.msra.mxu0 0.0
      %3317 = vmatprep.subr.mxu0 0.0
      %3318 = vmatpush1.msra.mxu0 0.0
      %3319 = vmatprep.subr.mxu0 0.0
      %3320 = vmatpush1.msra.mxu0 0.0
      %3321 = vmatprep.subr.mxu0 0.0
      %3322 = vmatpush1.msra.mxu0 0.0
      %3323 = vmatprep.subr.mxu0 0.0
      %3324 = vmatpush1.msra.mxu0 0.0
      %3325 = vmatprep.mubr.f32.mxu0 0.0
      %3326 = vmatmul.mubr.f32.gmra.mrb[0].mxu0 %v2577
      %v3327 = vpop.f32.mrb[0].mxu0
      %v3328 = vadd.f32 0.0, %v3327
      %v3329 = vpop.f32.mrb[0].mxu0
      %3330 = vdwg.mxu0
      %3331 = vmatprep.subr.mxu0 0.0
      %3332 = vmatpush1.msra.mxu0 %v2707
      %3333 = vmatprep.subr.mxu0 0.0
      %3334 = vmatpush1.msra.mxu0 %v2708
      %3335 = vmatprep.subr.mxu0 0.0
      %3336 = vmatpush1.msra.mxu0 %v2709
      %3337 = vmatprep.subr.mxu0 0.0
      %3338 = vmatpush1.msra.mxu0 %v2710
      %3339 = vmatprep.subr.mxu0 0.0
      %3340 = vmatpush1.msra.mxu0 %v2711
      %3341 = vmatprep.subr.mxu0 0.0
      %3342 = vmatpush1.msra.mxu0 %v2712
      %3343 = vmatprep.subr.mxu0 0.0
      %3344 = vmatpush1.msra.mxu0 %v2713
      %3345 = vmatprep.subr.mxu0 0.0
      %3346 = vmatpush1.msra.mxu0 %v2714
      %3347 = vmatprep.subr.mxu0 0.0
      %3348 = vmatpush1.msra.mxu0 %v2715
      %3349 = vmatprep.subr.mxu0 0.0
      %3350 = vmatpush1.msra.mxu0 %v2716
      %3351 = vmatprep.subr.mxu0 0.0
      %3352 = vmatpush1.msra.mxu0 %v2717
      %3353 = vmatprep.subr.mxu0 0.0
      %3354 = vmatpush1.msra.mxu0 %v2718
      %3355 = vmatprep.subr.mxu0 0.0
      %3356 = vmatpush1.msra.mxu0 %v2719
      %3357 = vmatprep.subr.mxu0 0.0
      %3358 = vmatpush1.msra.mxu0 %v2720
      %3359 = vmatprep.subr.mxu0 0.0
      %3360 = vmatpush1.msra.mxu0 %v2721
      %3361 = vmatprep.subr.mxu0 0.0
      %3362 = vmatpush1.msra.mxu0 %v2722
      %3363 = vmatprep.subr.mxu0 0.0
      %3364 = vmatpush1.msra.mxu0 0.0
      %3365 = vmatprep.subr.mxu0 0.0
      %3366 = vmatpush1.msra.mxu0 0.0
      %3367 = vmatprep.subr.mxu0 0.0
      %3368 = vmatpush1.msra.mxu0 0.0
      %3369 = vmatprep.subr.mxu0 0.0
      %3370 = vmatpush1.msra.mxu0 0.0
      %3371 = vmatprep.subr.mxu0 0.0
      %3372 = vmatpush1.msra.mxu0 0.0
      %3373 = vmatprep.subr.mxu0 0.0
      %3374 = vmatpush1.msra.mxu0 0.0
      %3375 = vmatprep.subr.mxu0 0.0
      %3376 = vmatpush1.msra.mxu0 0.0
      %3377 = vmatprep.subr.mxu0 0.0
      %3378 = vmatpush1.msra.mxu0 0.0
      %3379 = vmatprep.subr.mxu0 0.0
      %3380 = vmatpush1.msra.mxu0 0.0
      %3381 = vmatprep.subr.mxu0 0.0
      %3382 = vmatpush1.msra.mxu0 0.0
      %3383 = vmatprep.subr.mxu0 0.0
      %3384 = vmatpush1.msra.mxu0 0.0
      %3385 = vmatprep.subr.mxu0 0.0
      %3386 = vmatpush1.msra.mxu0 0.0
      %3387 = vmatprep.subr.mxu0 0.0
      %3388 = vmatpush1.msra.mxu0 0.0
      %3389 = vmatprep.subr.mxu0 0.0
      %3390 = vmatpush1.msra.mxu0 0.0
      %3391 = vmatprep.subr.mxu0 0.0
      %3392 = vmatpush1.msra.mxu0 0.0
      %3393 = vmatprep.subr.mxu0 0.0
      %3394 = vmatpush1.msra.mxu0 0.0
      %3395 = vmatprep.mubr.f32.mxu0 0.0
      %3396 = vmatmul.mubr.f32.gmra.mrb[0].mxu0 %v2577
      %v3397 = vpop.f32.mrb[0].mxu0
      %v3398 = vadd.f32 0.0, %v3397
      %v3399 = vpop.f32.mrb[0].mxu0
      %3400 = vdwg.mxu0
      %3401 = vmatprep.subr.mxu0 0.0
      %3402 = vmatpush1.msra.mxu0 %v2723
      %3403 = vmatprep.subr.mxu0 0.0
      %3404 = vmatpush1.msra.mxu0 %v2724
      %3405 = vmatprep.subr.mxu0 0.0
      %3406 = vmatpush1.msra.mxu0 %v2725
      %3407 = vmatprep.subr.mxu0 0.0
      %3408 = vmatpush1.msra.mxu0 %v2726
      %3409 = vmatprep.subr.mxu0 0.0
      %3410 = vmatpush1.msra.mxu0 %v2727
      %3411 = vmatprep.subr.mxu0 0.0
      %3412 = vmatpush1.msra.mxu0 %v2728
      %3413 = vmatprep.subr.mxu0 0.0
      %3414 = vmatpush1.msra.mxu0 %v2729
      %3415 = vmatprep.subr.mxu0 0.0
      %3416 = vmatpush1.msra.mxu0 %v2730
      %3417 = vmatprep.subr.mxu0 0.0
      %3418 = vmatpush1.msra.mxu0 %v2731
      %3419 = vmatprep.subr.mxu0 0.0
      %3420 = vmatpush1.msra.mxu0 %v2732
      %3421 = vmatprep.subr.mxu0 0.0
      %3422 = vmatpush1.msra.mxu0 %v2733
      %3423 = vmatprep.subr.mxu0 0.0
      %3424 = vmatpush1.msra.mxu0 %v2734
      %3425 = vmatprep.subr.mxu0 0.0
      %3426 = vmatpush1.msra.mxu0 %v2735
      %3427 = vmatprep.subr.mxu0 0.0
      %3428 = vmatpush1.msra.mxu0 %v2736
      %3429 = vmatprep.subr.mxu0 0.0
      %3430 = vmatpush1.msra.mxu0 %v2737
      %3431 = vmatprep.subr.mxu0 0.0
      %3432 = vmatpush1.msra.mxu0 %v2738
      %3433 = vmatprep.subr.mxu0 0.0
      %3434 = vmatpush1.msra.mxu0 0.0
      %3435 = vmatprep.subr.mxu0 0.0
      %3436 = vmatpush1.msra.mxu0 0.0
      %3437 = vmatprep.subr.mxu0 0.0
      %3438 = vmatpush1.msra.mxu0 0.0
      %3439 = vmatprep.subr.mxu0 0.0
      %3440 = vmatpush1.msra.mxu0 0.0
      %3441 = vmatprep.subr.mxu0 0.0
      %3442 = vmatpush1.msra.mxu0 0.0
      %3443 = vmatprep.subr.mxu0 0.0
      %3444 = vmatpush1.msra.mxu0 0.0
      %3445 = vmatprep.subr.mxu0 0.0
      %3446 = vmatpush1.msra.mxu0 0.0
      %3447 = vmatprep.subr.mxu0 0.0
      %3448 = vmatpush1.msra.mxu0 0.0
      %3449 = vmatprep.subr.mxu0 0.0
      %3450 = vmatpush1.msra.mxu0 0.0
      %3451 = vmatprep.subr.mxu0 0.0
      %3452 = vmatpush1.msra.mxu0 0.0
      %3453 = vmatprep.subr.mxu0 0.0
      %3454 = vmatpush1.msra.mxu0 0.0
      %3455 = vmatprep.subr.mxu0 0.0
      %3456 = vmatpush1.msra.mxu0 0.0
      %3457 = vmatprep.subr.mxu0 0.0
      %3458 = vmatpush1.msra.mxu0 0.0
      %3459 = vmatprep.subr.mxu0 0.0
      %3460 = vmatpush1.msra.mxu0 0.0
      %3461 = vmatprep.subr.mxu0 0.0
      %3462 = vmatpush1.msra.mxu0 0.0
      %3463 = vmatprep.subr.mxu0 0.0
      %3464 = vmatpush1.msra.mxu0 0.0
      %3465 = vmatprep.mubr.f32.mxu0 0.0
      %3466 = vmatmul.mubr.f32.gmra.mrb[0].mxu0 %v2577
      %v3467 = vpop.f32.mrb[0].mxu0
      %v3468 = vadd.f32 0.0, %v3467
      %v3469 = vpop.f32.mrb[0].mxu0
      %3470 = vdwg.mxu0
      %3471 = vmatprep.subr.mxu0 0.0
      %3472 = vmatpush1.msra.mxu0 %v2739
      %3473 = vmatprep.subr.mxu0 0.0
      %3474 = vmatpush1.msra.mxu0 %v2740
      %3475 = vmatprep.subr.mxu0 0.0
      %3476 = vmatpush1.msra.mxu0 %v2741
      %3477 = vmatprep.subr.mxu0 0.0
      %3478 = vmatpush1.msra.mxu0 %v2742
      %3479 = vmatprep.subr.mxu0 0.0
      %3480 = vmatpush1.msra.mxu0 %v2743
      %3481 = vmatprep.subr.mxu0 0.0
      %3482 = vmatpush1.msra.mxu0 %v2744
      %3483 = vmatprep.subr.mxu0 0.0
      %3484 = vmatpush1.msra.mxu0 %v2745
      %3485 = vmatprep.subr.mxu0 0.0
      %3486 = vmatpush1.msra.mxu0 %v2746
      %3487 = vmatprep.subr.mxu0 0.0
      %3488 = vmatpush1.msra.mxu0 %v2747
      %3489 = vmatprep.subr.mxu0 0.0
      %3490 = vmatpush1.msra.mxu0 %v2748
      %3491 = vmatprep.subr.mxu0 0.0
      %3492 = vmatpush1.msra.mxu0 %v2749
      %3493 = vmatprep.subr.mxu0 0.0
      %3494 = vmatpush1.msra.mxu0 %v2750
      %3495 = vmatprep.subr.mxu0 0.0
      %3496 = vmatpush1.msra.mxu0 %v2751
      %3497 = vmatprep.subr.mxu0 0.0
      %3498 = vmatpush1.msra.mxu0 %v2752
      %3499 = vmatprep.subr.mxu0 0.0
      %3500 = vmatpush1.msra.mxu0 %v2753
      %3501 = vmatprep.subr.mxu0 0.0
      %3502 = vmatpush1.msra.mxu0 %v2754
      %3503 = vmatprep.subr.mxu0 0.0
      %3504 = vmatpush1.msra.mxu0 0.0
      %3505 = vmatprep.subr.mxu0 0.0
      %3506 = vmatpush1.msra.mxu0 0.0
      %3507 = vmatprep.subr.mxu0 0.0
      %3508 = vmatpush1.msra.mxu0 0.0
      %3509 = vmatprep.subr.mxu0 0.0
      %3510 = vmatpush1.msra.mxu0 0.0
      %3511 = vmatprep.subr.mxu0 0.0
      %3512 = vmatpush1.msra.mxu0 0.0
      %3513 = vmatprep.subr.mxu0 0.0
      %3514 = vmatpush1.msra.mxu0 0.0
      %3515 = vmatprep.subr.mxu0 0.0
      %3516 = vmatpush1.msra.mxu0 0.0
      %3517 = vmatprep.subr.mxu0 0.0
      %3518 = vmatpush1.msra.mxu0 0.0
      %3519 = vmatprep.subr.mxu0 0.0
      %3520 = vmatpush1.msra.mxu0 0.0
      %3521 = vmatprep.subr.mxu0 0.0
      %3522 = vmatpush1.msra.mxu0 0.0
      %3523 = vmatprep.subr.mxu0 0.0
      %3524 = vmatpush1.msra.mxu0 0.0
      %3525 = vmatprep.subr.mxu0 0.0
      %3526 = vmatpush1.msra.mxu0 0.0
      %3527 = vmatprep.subr.mxu0 0.0
      %3528 = vmatpush1.msra.mxu0 0.0
      %3529 = vmatprep.subr.mxu0 0.0
      %3530 = vmatpush1.msra.mxu0 0.0
      %3531 = vmatprep.subr.mxu0 0.0
      %3532 = vmatpush1.msra.mxu0 0.0
      %3533 = vmatprep.subr.mxu0 0.0
      %3534 = vmatpush1.msra.mxu0 0.0
      %3535 = vmatprep.mubr.f32.mxu0 0.0
      %3536 = vmatmul.mubr.f32.gmra.mrb[0].mxu0 %v2577
      %v3537 = vpop.f32.mrb[0].mxu0
      %v3538 = vadd.f32 0.0, %v3537
      %v3539 = vpop.f32.mrb[0].mxu0
      %3540 = vdwg.mxu0
      %3541 = vmatprep.subr.mxu0 0.0
      %3542 = vmatpush1.msra.mxu0 %v2755
      %3543 = vmatprep.subr.mxu0 0.0
      %3544 = vmatpush1.msra.mxu0 %v2756
      %3545 = vmatprep.subr.mxu0 0.0
      %3546 = vmatpush1.msra.mxu0 %v2757
      %3547 = vmatprep.subr.mxu0 0.0
      %3548 = vmatpush1.msra.mxu0 %v2758
      %3549 = vmatprep.subr.mxu0 0.0
      %3550 = vmatpush1.msra.mxu0 %v2759
      %3551 = vmatprep.subr.mxu0 0.0
      %3552 = vmatpush1.msra.mxu0 %v2760
      %3553 = vmatprep.subr.mxu0 0.0
      %3554 = vmatpush1.msra.mxu0 %v2761
      %3555 = vmatprep.subr.mxu0 0.0
      %3556 = vmatpush1.msra.mxu0 %v2762
      %3557 = vmatprep.subr.mxu0 0.0
      %3558 = vmatpush1.msra.mxu0 %v2763
      %3559 = vmatprep.subr.mxu0 0.0
      %3560 = vmatpush1.msra.mxu0 %v2764
      %3561 = vmatprep.subr.mxu0 0.0
      %3562 = vmatpush1.msra.mxu0 %v2765
      %3563 = vmatprep.subr.mxu0 0.0
      %3564 = vmatpush1.msra.mxu0 %v2766
      %3565 = vmatprep.subr.mxu0 0.0
      %3566 = vmatpush1.msra.mxu0 %v2767
      %3567 = vmatprep.subr.mxu0 0.0
      %3568 = vmatpush1.msra.mxu0 %v2768
      %3569 = vmatprep.subr.mxu0 0.0
      %3570 = vmatpush1.msra.mxu0 %v2769
      %3571 = vmatprep.subr.mxu0 0.0
      %3572 = vmatpush1.msra.mxu0 %v2770
      %3573 = vmatprep.subr.mxu0 0.0
      %3574 = vmatpush1.msra.mxu0 0.0
      %3575 = vmatprep.subr.mxu0 0.0
      %3576 = vmatpush1.msra.mxu0 0.0
      %3577 = vmatprep.subr.mxu0 0.0
      %3578 = vmatpush1.msra.mxu0 0.0
      %3579 = vmatprep.subr.mxu0 0.0
      %3580 = vmatpush1.msra.mxu0 0.0
      %3581 = vmatprep.subr.mxu0 0.0
      %3582 = vmatpush1.msra.mxu0 0.0
      %3583 = vmatprep.subr.mxu0 0.0
      %3584 = vmatpush1.msra.mxu0 0.0
      %3585 = vmatprep.subr.mxu0 0.0
      %3586 = vmatpush1.msra.mxu0 0.0
      %3587 = vmatprep.subr.mxu0 0.0
      %3588 = vmatpush1.msra.mxu0 0.0
      %3589 = vmatprep.subr.mxu0 0.0
      %3590 = vmatpush1.msra.mxu0 0.0
      %3591 = vmatprep.subr.mxu0 0.0
      %3592 = vmatpush1.msra.mxu0 0.0
      %3593 = vmatprep.subr.mxu0 0.0
      %3594 = vmatpush1.msra.mxu0 0.0
      %3595 = vmatprep.subr.mxu0 0.0
      %3596 = vmatpush1.msra.mxu0 0.0
      %3597 = vmatprep.subr.mxu0 0.0
      %3598 = vmatpush1.msra.mxu0 0.0
      %3599 = vmatprep.subr.mxu0 0.0
      %3600 = vmatpush1.msra.mxu0 0.0
      %3601 = vmatprep.subr.mxu0 0.0
      %3602 = vmatpush1.msra.mxu0 0.0
      %3603 = vmatprep.subr.mxu0 0.0
      %3604 = vmatpush1.msra.mxu0 0.0
      %3605 = vmatprep.mubr.f32.mxu0 0.0
      %3606 = vmatmul.mubr.f32.gmra.mrb[0].mxu0 %v2577
      %v3607 = vpop.f32.mrb[0].mxu0
      %v3608 = vadd.f32 0.0, %v3607
      %v3609 = vpop.f32.mrb[0].mxu0
      %3610 = vdwg.mxu0
      %v3612 = vsel %vm1432, %v2838, 0
      %v3615 = vsel %vm1432, %v3118, 0
      %3617 = vmatprep.subr.mxu0 0.0
      %3618 = vmatpush1.xpose.msra.mxu0 %v3615
      %3619 = vmatprep.subr.mxu0 0.0
      %3620 = vmatpush1.xpose.msra.mxu0 0.0
      %3621 = vmatprep.subr.mxu0 0.0
      %3622 = vmatpush1.xpose.msra.mxu0 0.0
      %3623 = vmatprep.subr.mxu0 0.0
      %3624 = vmatpush1.xpose.msra.mxu0 0.0
      %3625 = vmatprep.subr.mxu0 0.0
      %3626 = vmatpush1.xpose.msra.mxu0 0.0
      %3627 = vmatprep.subr.mxu0 0.0
      %3628 = vmatpush1.xpose.msra.mxu0 0.0
      %3629 = vmatprep.subr.mxu0 0.0
      %3630 = vmatpush1.xpose.msra.mxu0 0.0
      %3631 = vmatprep.subr.mxu0 0.0
      %3632 = vmatpush1.xpose.msra.mxu0 0.0
      %3633 = vmatprep.subr.mxu0 0.0
      %3634 = vmatpush1.xpose.msra.mxu0 0.0
      %3635 = vmatprep.subr.mxu0 0.0
      %3636 = vmatpush1.xpose.msra.mxu0 0.0
      %3637 = vmatprep.subr.mxu0 0.0
      %3638 = vmatpush1.xpose.msra.mxu0 0.0
      %3639 = vmatprep.subr.mxu0 0.0
      %3640 = vmatpush1.xpose.msra.mxu0 0.0
      %3641 = vmatprep.subr.mxu0 0.0
      %3642 = vmatpush1.xpose.msra.mxu0 0.0
      %3643 = vmatprep.subr.mxu0 0.0
      %3644 = vmatpush1.xpose.msra.mxu0 0.0
      %3645 = vmatprep.subr.mxu0 0.0
      %3646 = vmatpush1.xpose.msra.mxu0 0.0
      %3647 = vmatprep.subr.mxu0 0.0
      %3648 = vmatpush1.xpose.msra.mxu0 0.0
      %3649 = vmatprep.subr.mxu0 0.0
      %3650 = vmatpush1.xpose.msra.mxu0 0.0
      %3651 = vmatprep.subr.mxu0 0.0
      %3652 = vmatpush1.xpose.msra.mxu0 0.0
      %3653 = vmatprep.subr.mxu0 0.0
      %3654 = vmatpush1.xpose.msra.mxu0 0.0
      %3655 = vmatprep.subr.mxu0 0.0
      %3656 = vmatpush1.xpose.msra.mxu0 0.0
      %3657 = vmatprep.subr.mxu0 0.0
      %3658 = vmatpush1.xpose.msra.mxu0 0.0
      %3659 = vmatprep.subr.mxu0 0.0
      %3660 = vmatpush1.xpose.msra.mxu0 0.0
      %3661 = vmatprep.subr.mxu0 0.0
      %3662 = vmatpush1.xpose.msra.mxu0 0.0
      %3663 = vmatprep.subr.mxu0 0.0
      %3664 = vmatpush1.xpose.msra.mxu0 0.0
      %3665 = vmatprep.subr.mxu0 0.0
      %3666 = vmatpush1.xpose.msra.mxu0 0.0
      %3667 = vmatprep.subr.mxu0 0.0
      %3668 = vmatpush1.xpose.msra.mxu0 0.0
      %3669 = vmatprep.subr.mxu0 0.0
      %3670 = vmatpush1.xpose.msra.mxu0 0.0
      %3671 = vmatprep.subr.mxu0 0.0
      %3672 = vmatpush1.xpose.msra.mxu0 0.0
      %3673 = vmatprep.subr.mxu0 0.0
      %3674 = vmatpush1.xpose.msra.mxu0 0.0
      %3675 = vmatprep.subr.mxu0 0.0
      %3676 = vmatpush1.xpose.msra.mxu0 0.0
      %3677 = vmatprep.subr.mxu0 0.0
      %3678 = vmatpush1.xpose.msra.mxu0 0.0
      %3679 = vmatprep.subr.mxu0 0.0
      %3680 = vmatpush1.xpose.msra.mxu0 0.0
      %3681 = vmatprep.mubr.f32.mxu0 0.0
      %3682 = vmatmul.mubr.f32.gmra.mrb[0].mxu0 %v3612
      %v3683 = vpop.f32.mrb[0].mxu0
      %v3684 = vadd.f32 %v381, %v3683
      %v3685 = vpop.f32.mrb[0].mxu0
      %3686 = vdwg.mxu0
      %v3688 = vsel %vm1432, %v2908, 0
      %v3691 = vsel %vm1432, %v3188, 0
      %3693 = vmatprep.subr.mxu0 0.0
      %3694 = vmatpush1.xpose.msra.mxu0 %v3691
      %3695 = vmatprep.subr.mxu0 0.0
      %3696 = vmatpush1.xpose.msra.mxu0 0.0
      %3697 = vmatprep.subr.mxu0 0.0
      %3698 = vmatpush1.xpose.msra.mxu0 0.0
      %3699 = vmatprep.subr.mxu0 0.0
      %3700 = vmatpush1.xpose.msra.mxu0 0.0
      %3701 = vmatprep.subr.mxu0 0.0
      %3702 = vmatpush1.xpose.msra.mxu0 0.0
      %3703 = vmatprep.subr.mxu0 0.0
      %3704 = vmatpush1.xpose.msra.mxu0 0.0
      %3705 = vmatprep.subr.mxu0 0.0
      %3706 = vmatpush1.xpose.msra.mxu0 0.0
      %3707 = vmatprep.subr.mxu0 0.0
      %3708 = vmatpush1.xpose.msra.mxu0 0.0
      %3709 = vmatprep.subr.mxu0 0.0
      %3710 = vmatpush1.xpose.msra.mxu0 0.0
      %3711 = vmatprep.subr.mxu0 0.0
      %3712 = vmatpush1.xpose.msra.mxu0 0.0
      %3713 = vmatprep.subr.mxu0 0.0
      %3714 = vmatpush1.xpose.msra.mxu0 0.0
      %3715 = vmatprep.subr.mxu0 0.0
      %3716 = vmatpush1.xpose.msra.mxu0 0.0
      %3717 = vmatprep.subr.mxu0 0.0
      %3718 = vmatpush1.xpose.msra.mxu0 0.0
      %3719 = vmatprep.subr.mxu0 0.0
      %3720 = vmatpush1.xpose.msra.mxu0 0.0
      %3721 = vmatprep.subr.mxu0 0.0
      %3722 = vmatpush1.xpose.msra.mxu0 0.0
      %3723 = vmatprep.subr.mxu0 0.0
      %3724 = vmatpush1.xpose.msra.mxu0 0.0
      %3725 = vmatprep.subr.mxu0 0.0
      %3726 = vmatpush1.xpose.msra.mxu0 0.0
      %3727 = vmatprep.subr.mxu0 0.0
      %3728 = vmatpush1.xpose.msra.mxu0 0.0
      %3729 = vmatprep.subr.mxu0 0.0
      %3730 = vmatpush1.xpose.msra.mxu0 0.0
      %3731 = vmatprep.subr.mxu0 0.0
      %3732 = vmatpush1.xpose.msra.mxu0 0.0
      %3733 = vmatprep.subr.mxu0 0.0
      %3734 = vmatpush1.xpose.msra.mxu0 0.0
      %3735 = vmatprep.subr.mxu0 0.0
      %3736 = vmatpush1.xpose.msra.mxu0 0.0
      %3737 = vmatprep.subr.mxu0 0.0
      %3738 = vmatpush1.xpose.msra.mxu0 0.0
      %3739 = vmatprep.subr.mxu0 0.0
      %3740 = vmatpush1.xpose.msra.mxu0 0.0
      %3741 = vmatprep.subr.mxu0 0.0
      %3742 = vmatpush1.xpose.msra.mxu0 0.0
      %3743 = vmatprep.subr.mxu0 0.0
      %3744 = vmatpush1.xpose.msra.mxu0 0.0
      %3745 = vmatprep.subr.mxu0 0.0
      %3746 = vmatpush1.xpose.msra.mxu0 0.0
      %3747 = vmatprep.subr.mxu0 0.0
      %3748 = vmatpush1.xpose.msra.mxu0 0.0
      %3749 = vmatprep.subr.mxu0 0.0
      %3750 = vmatpush1.xpose.msra.mxu0 0.0
      %3751 = vmatprep.subr.mxu0 0.0
      %3752 = vmatpush1.xpose.msra.mxu0 0.0
      %3753 = vmatprep.subr.mxu0 0.0
      %3754 = vmatpush1.xpose.msra.mxu0 0.0
      %3755 = vmatprep.subr.mxu0 0.0
      %3756 = vmatpush1.xpose.msra.mxu0 0.0
      %3757 = vmatprep.mubr.f32.mxu0 0.0
      %3758 = vmatmul.mubr.f32.gmra.mrb[0].mxu0 %v3688
      %v3759 = vpop.f32.mrb[0].mxu0
      %v3760 = vadd.f32 %v382, %v3759
      %v3761 = vpop.f32.mrb[0].mxu0
      %3762 = vdwg.mxu0
      %v3764 = vsel %vm1432, %v2978, 0
      %v3767 = vsel %vm1432, %v3258, 0
      %3769 = vmatprep.subr.mxu0 0.0
      %3770 = vmatpush1.xpose.msra.mxu0 %v3767
      %3771 = vmatprep.subr.mxu0 0.0
      %3772 = vmatpush1.xpose.msra.mxu0 0.0
      %3773 = vmatprep.subr.mxu0 0.0
      %3774 = vmatpush1.xpose.msra.mxu0 0.0
      %3775 = vmatprep.subr.mxu0 0.0
      %3776 = vmatpush1.xpose.msra.mxu0 0.0
      %3777 = vmatprep.subr.mxu0 0.0
      %3778 = vmatpush1.xpose.msra.mxu0 0.0
      %3779 = vmatprep.subr.mxu0 0.0
      %3780 = vmatpush1.xpose.msra.mxu0 0.0
      %3781 = vmatprep.subr.mxu0 0.0
      %3782 = vmatpush1.xpose.msra.mxu0 0.0
      %3783 = vmatprep.subr.mxu0 0.0
      %3784 = vmatpush1.xpose.msra.mxu0 0.0
      %3785 = vmatprep.subr.mxu0 0.0
      %3786 = vmatpush1.xpose.msra.mxu0 0.0
      %3787 = vmatprep.subr.mxu0 0.0
      %3788 = vmatpush1.xpose.msra.mxu0 0.0
      %3789 = vmatprep.subr.mxu0 0.0
      %3790 = vmatpush1.xpose.msra.mxu0 0.0
      %3791 = vmatprep.subr.mxu0 0.0
      %3792 = vmatpush1.xpose.msra.mxu0 0.0
      %3793 = vmatprep.subr.mxu0 0.0
      %3794 = vmatpush1.xpose.msra.mxu0 0.0
      %3795 = vmatprep.subr.mxu0 0.0
      %3796 = vmatpush1.xpose.msra.mxu0 0.0
      %3797 = vmatprep.subr.mxu0 0.0
      %3798 = vmatpush1.xpose.msra.mxu0 0.0
      %3799 = vmatprep.subr.mxu0 0.0
      %3800 = vmatpush1.xpose.msra.mxu0 0.0
      %3801 = vmatprep.subr.mxu0 0.0
      %3802 = vmatpush1.xpose.msra.mxu0 0.0
      %3803 = vmatprep.subr.mxu0 0.0
      %3804 = vmatpush1.xpose.msra.mxu0 0.0
      %3805 = vmatprep.subr.mxu0 0.0
      %3806 = vmatpush1.xpose.msra.mxu0 0.0
      %3807 = vmatprep.subr.mxu0 0.0
      %3808 = vmatpush1.xpose.msra.mxu0 0.0
      %3809 = vmatprep.subr.mxu0 0.0
      %3810 = vmatpush1.xpose.msra.mxu0 0.0
      %3811 = vmatprep.subr.mxu0 0.0
      %3812 = vmatpush1.xpose.msra.mxu0 0.0
      %3813 = vmatprep.subr.mxu0 0.0
      %3814 = vmatpush1.xpose.msra.mxu0 0.0
      %3815 = vmatprep.subr.mxu0 0.0
      %3816 = vmatpush1.xpose.msra.mxu0 0.0
      %3817 = vmatprep.subr.mxu0 0.0
      %3818 = vmatpush1.xpose.msra.mxu0 0.0
      %3819 = vmatprep.subr.mxu0 0.0
      %3820 = vmatpush1.xpose.msra.mxu0 0.0
      %3821 = vmatprep.subr.mxu0 0.0
      %3822 = vmatpush1.xpose.msra.mxu0 0.0
      %3823 = vmatprep.subr.mxu0 0.0
      %3824 = vmatpush1.xpose.msra.mxu0 0.0
      %3825 = vmatprep.subr.mxu0 0.0
      %3826 = vmatpush1.xpose.msra.mxu0 0.0
      %3827 = vmatprep.subr.mxu0 0.0
      %3828 = vmatpush1.xpose.msra.mxu0 0.0
      %3829 = vmatprep.subr.mxu0 0.0
      %3830 = vmatpush1.xpose.msra.mxu0 0.0
      %3831 = vmatprep.subr.mxu0 0.0
      %3832 = vmatpush1.xpose.msra.mxu0 0.0
      %3833 = vmatprep.mubr.f32.mxu0 0.0
      %3834 = vmatmul.mubr.f32.gmra.mrb[0].mxu0 %v3764
      %v3835 = vpop.f32.mrb[0].mxu0
      %v3836 = vadd.f32 %v383, %v3835
      %v3837 = vpop.f32.mrb[0].mxu0
      %3838 = vdwg.mxu0
      %v3840 = vsel %vm1432, %v3048, 0
      %v3843 = vsel %vm1432, %v3328, 0
      %3845 = vmatprep.subr.mxu0 0.0
      %3846 = vmatpush1.xpose.msra.mxu0 %v3843
      %3847 = vmatprep.subr.mxu0 0.0
      %3848 = vmatpush1.xpose.msra.mxu0 0.0
      %3849 = vmatprep.subr.mxu0 0.0
      %3850 = vmatpush1.xpose.msra.mxu0 0.0
      %3851 = vmatprep.subr.mxu0 0.0
      %3852 = vmatpush1.xpose.msra.mxu0 0.0
      %3853 = vmatprep.subr.mxu0 0.0
      %3854 = vmatpush1.xpose.msra.mxu0 0.0
      %3855 = vmatprep.subr.mxu0 0.0
      %3856 = vmatpush1.xpose.msra.mxu0 0.0
      %3857 = vmatprep.subr.mxu0 0.0
      %3858 = vmatpush1.xpose.msra.mxu0 0.0
      %3859 = vmatprep.subr.mxu0 0.0
      %3860 = vmatpush1.xpose.msra.mxu0 0.0
      %3861 = vmatprep.subr.mxu0 0.0
      %3862 = vmatpush1.xpose.msra.mxu0 0.0
      %3863 = vmatprep.subr.mxu0 0.0
      %3864 = vmatpush1.xpose.msra.mxu0 0.0
      %3865 = vmatprep.subr.mxu0 0.0
      %3866 = vmatpush1.xpose.msra.mxu0 0.0
      %3867 = vmatprep.subr.mxu0 0.0
      %3868 = vmatpush1.xpose.msra.mxu0 0.0
      %3869 = vmatprep.subr.mxu0 0.0
      %3870 = vmatpush1.xpose.msra.mxu0 0.0
      %3871 = vmatprep.subr.mxu0 0.0
      %3872 = vmatpush1.xpose.msra.mxu0 0.0
      %3873 = vmatprep.subr.mxu0 0.0
      %3874 = vmatpush1.xpose.msra.mxu0 0.0
      %3875 = vmatprep.subr.mxu0 0.0
      %3876 = vmatpush1.xpose.msra.mxu0 0.0
      %3877 = vmatprep.subr.mxu0 0.0
      %3878 = vmatpush1.xpose.msra.mxu0 0.0
      %3879 = vmatprep.subr.mxu0 0.0
      %3880 = vmatpush1.xpose.msra.mxu0 0.0
      %3881 = vmatprep.subr.mxu0 0.0
      %3882 = vmatpush1.xpose.msra.mxu0 0.0
      %3883 = vmatprep.subr.mxu0 0.0
      %3884 = vmatpush1.xpose.msra.mxu0 0.0
      %3885 = vmatprep.subr.mxu0 0.0
      %3886 = vmatpush1.xpose.msra.mxu0 0.0
      %3887 = vmatprep.subr.mxu0 0.0
      %3888 = vmatpush1.xpose.msra.mxu0 0.0
      %3889 = vmatprep.subr.mxu0 0.0
      %3890 = vmatpush1.xpose.msra.mxu0 0.0
      %3891 = vmatprep.subr.mxu0 0.0
      %3892 = vmatpush1.xpose.msra.mxu0 0.0
      %3893 = vmatprep.subr.mxu0 0.0
      %3894 = vmatpush1.xpose.msra.mxu0 0.0
      %3895 = vmatprep.subr.mxu0 0.0
      %3896 = vmatpush1.xpose.msra.mxu0 0.0
      %3897 = vmatprep.subr.mxu0 0.0
      %3898 = vmatpush1.xpose.msra.mxu0 0.0
      %3899 = vmatprep.subr.mxu0 0.0
      %3900 = vmatpush1.xpose.msra.mxu0 0.0
      %3901 = vmatprep.subr.mxu0 0.0
      %3902 = vmatpush1.xpose.msra.mxu0 0.0
      %3903 = vmatprep.subr.mxu0 0.0
      %3904 = vmatpush1.xpose.msra.mxu0 0.0
      %3905 = vmatprep.subr.mxu0 0.0
      %3906 = vmatpush1.xpose.msra.mxu0 0.0
      %3907 = vmatprep.subr.mxu0 0.0
      %3908 = vmatpush1.xpose.msra.mxu0 0.0
      %3909 = vmatprep.mubr.f32.mxu0 0.0
      %3910 = vmatmul.mubr.f32.gmra.mrb[0].mxu0 %v3840
      %v3911 = vpop.f32.mrb[0].mxu0
      %v3912 = vadd.f32 %v384, %v3911
      %v3913 = vpop.f32.mrb[0].mxu0
      %3914 = vdwg.mxu0
      %v3915 = vsel %vm1432, %v3684, -inf
      %3916 = vmax.xlane.f32.xlu0 %v3915
      %v3917 = vpop.xlane.xlu0 %3916
      %v3918 = vsel %vm1432, %v3760, -inf
      %3919 = vmax.xlane.f32.xlu0 %v3918
      %v3920 = vpop.xlane.xlu0 %3919
      %v3921 = vsel %vm1432, %v3836, -inf
      %3922 = vmax.xlane.f32.xlu0 %v3921
      %v3923 = vpop.xlane.xlu0 %3922
      %v3924 = vsel %vm1432, %v3912, -inf
      %3925 = vmax.xlane.f32.xlu0 %v3924
      %v3926 = vpop.xlane.xlu0 %3925
      %v3927 = vsub.f32 %v3684, %v3917
      %v3928 = vsub.f32 %v3760, %v3920
      %v3929 = vsub.f32 %v3836, %v3923
      %v3930 = vsub.f32 %v3912, %v3926
      %v3931 = vmul.f32 %v3927, 1.442695
      %v3932 = vpow.pop %v3931
      %v3933 = vmul.f32 %v3928, 1.442695
      %v3934 = vpow.pop %v3933
      %v3935 = vmul.f32 %v3929, 1.442695
      %v3936 = vpow.pop %v3935
      %v3937 = vmul.f32 %v3930, 1.442695
      %v3938 = vpow.pop %v3937
      %v3939 = vsel %vm1432, %v3932, 0.0
      %3940 = vadd.xlane.f32.xlu0 %v3939
      %v3941 = vpop.xlane.xlu0 %3940
      %v3942 = vsel %vm1432, %v3934, 0.0
      %3943 = vadd.xlane.f32.xlu0 %v3942
      %v3944 = vpop.xlane.xlu0 %3943
      %v3945 = vsel %vm1432, %v3936, 0.0
      %3946 = vadd.xlane.f32.xlu0 %v3945
      %v3947 = vpop.xlane.xlu0 %3946
      %v3948 = vsel %vm1432, %v3938, 0.0
      %3949 = vadd.xlane.f32.xlu0 %v3948
      %v3950 = vpop.xlane.xlu0 %3949
      %v3951 = vrcp.pop %v3941
      %v3952 = vrcp.pop %v3944
      %v3953 = vrcp.pop %v3947
      %v3954 = vrcp.pop %v3950
      %v3955 = vmul.f32 %v3932, %v3951
      %v3956 = vmul.f32 %v3934, %v3952
      %v3957 = vmul.f32 %v3936, %v3953
      %v3958 = vmul.f32 %v3938, %v3954
      %v3960 = vsel %vm1432, %v3955, 0
      %3962 = vmatprep.subr.mxu0 0.0
      %3963 = vmatpush1.msra.mxu0 %v3398
      %3964 = vmatprep.subr.mxu0 0.0
      %3965 = vmatpush1.msra.mxu0 0.0
      %3966 = vmatprep.subr.mxu0 0.0
      %3967 = vmatpush1.msra.mxu0 0.0
      %3968 = vmatprep.subr.mxu0 0.0
      %3969 = vmatpush1.msra.mxu0 0.0
      %3970 = vmatprep.subr.mxu0 0.0
      %3971 = vmatpush1.msra.mxu0 0.0
      %3972 = vmatprep.subr.mxu0 0.0
      %3973 = vmatpush1.msra.mxu0 0.0
      %3974 = vmatprep.subr.mxu0 0.0
      %3975 = vmatpush1.msra.mxu0 0.0
      %3976 = vmatprep.subr.mxu0 0.0
      %3977 = vmatpush1.msra.mxu0 0.0
      %3978 = vmatprep.subr.mxu0 0.0
      %3979 = vmatpush1.msra.mxu0 0.0
      %3980 = vmatprep.subr.mxu0 0.0
      %3981 = vmatpush1.msra.mxu0 0.0
      %3982 = vmatprep.subr.mxu0 0.0
      %3983 = vmatpush1.msra.mxu0 0.0
      %3984 = vmatprep.subr.mxu0 0.0
      %3985 = vmatpush1.msra.mxu0 0.0
      %3986 = vmatprep.subr.mxu0 0.0
      %3987 = vmatpush1.msra.mxu0 0.0
      %3988 = vmatprep.subr.mxu0 0.0
      %3989 = vmatpush1.msra.mxu0 0.0
      %3990 = vmatprep.subr.mxu0 0.0
      %3991 = vmatpush1.msra.mxu0 0.0
      %3992 = vmatprep.subr.mxu0 0.0
      %3993 = vmatpush1.msra.mxu0 0.0
      %3994 = vmatprep.subr.mxu0 0.0
      %3995 = vmatpush1.msra.mxu0 0.0
      %3996 = vmatprep.subr.mxu0 0.0
      %3997 = vmatpush1.msra.mxu0 0.0
      %3998 = vmatprep.subr.mxu0 0.0
      %3999 = vmatpush1.msra.mxu0 0.0
      %4000 = vmatprep.subr.mxu0 0.0
      %4001 = vmatpush1.msra.mxu0 0.0
      %4002 = vmatprep.subr.mxu0 0.0
      %4003 = vmatpush1.msra.mxu0 0.0
      %4004 = vmatprep.subr.mxu0 0.0
      %4005 = vmatpush1.msra.mxu0 0.0
      %4006 = vmatprep.subr.mxu0 0.0
      %4007 = vmatpush1.msra.mxu0 0.0
      %4008 = vmatprep.subr.mxu0 0.0
      %4009 = vmatpush1.msra.mxu0 0.0
      %4010 = vmatprep.subr.mxu0 0.0
      %4011 = vmatpush1.msra.mxu0 0.0
      %4012 = vmatprep.subr.mxu0 0.0
      %4013 = vmatpush1.msra.mxu0 0.0
      %4014 = vmatprep.subr.mxu0 0.0
      %4015 = vmatpush1.msra.mxu0 0.0
      %4016 = vmatprep.subr.mxu0 0.0
      %4017 = vmatpush1.msra.mxu0 0.0
      %4018 = vmatprep.subr.mxu0 0.0
      %4019 = vmatpush1.msra.mxu0 0.0
      %4020 = vmatprep.subr.mxu0 0.0
      %4021 = vmatpush1.msra.mxu0 0.0
      %4022 = vmatprep.subr.mxu0 0.0
      %4023 = vmatpush1.msra.mxu0 0.0
      %4024 = vmatprep.subr.mxu0 0.0
      %4025 = vmatpush1.msra.mxu0 0.0
      %4026 = vmatprep.mubr.f32.mxu0 0.0
      %4027 = vmatmul.mubr.f32.gmra.mrb[0].mxu0 %v3960
      %v4028 = vpop.f32.mrb[0].mxu0
      %v4029 = vadd.f32 0.0, %v4028
      %v4030 = vpop.f32.mrb[0].mxu0
      %4031 = vdwg.mxu0
      %v4033 = vsel %vm1432, %v3956, 0
      %4035 = vmatprep.subr.mxu0 0.0
      %4036 = vmatpush1.msra.mxu0 %v3468
      %4037 = vmatprep.subr.mxu0 0.0
      %4038 = vmatpush1.msra.mxu0 0.0
      %4039 = vmatprep.subr.mxu0 0.0
      %4040 = vmatpush1.msra.mxu0 0.0
      %4041 = vmatprep.subr.mxu0 0.0
      %4042 = vmatpush1.msra.mxu0 0.0
      %4043 = vmatprep.subr.mxu0 0.0
      %4044 = vmatpush1.msra.mxu0 0.0
      %4045 = vmatprep.subr.mxu0 0.0
      %4046 = vmatpush1.msra.mxu0 0.0
      %4047 = vmatprep.subr.mxu0 0.0
      %4048 = vmatpush1.msra.mxu0 0.0
      %4049 = vmatprep.subr.mxu0 0.0
      %4050 = vmatpush1.msra.mxu0 0.0
      %4051 = vmatprep.subr.mxu0 0.0
      %4052 = vmatpush1.msra.mxu0 0.0
      %4053 = vmatprep.subr.mxu0 0.0
      %4054 = vmatpush1.msra.mxu0 0.0
      %4055 = vmatprep.subr.mxu0 0.0
      %4056 = vmatpush1.msra.mxu0 0.0
      %4057 = vmatprep.subr.mxu0 0.0
      %4058 = vmatpush1.msra.mxu0 0.0
      %4059 = vmatprep.subr.mxu0 0.0
      %4060 = vmatpush1.msra.mxu0 0.0
      %4061 = vmatprep.subr.mxu0 0.0
      %4062 = vmatpush1.msra.mxu0 0.0
      %4063 = vmatprep.subr.mxu0 0.0
      %4064 = vmatpush1.msra.mxu0 0.0
      %4065 = vmatprep.subr.mxu0 0.0
      %4066 = vmatpush1.msra.mxu0 0.0
      %4067 = vmatprep.subr.mxu0 0.0
      %4068 = vmatpush1.msra.mxu0 0.0
      %4069 = vmatprep.subr.mxu0 0.0
      %4070 = vmatpush1.msra.mxu0 0.0
      %4071 = vmatprep.subr.mxu0 0.0
      %4072 = vmatpush1.msra.mxu0 0.0
      %4073 = vmatprep.subr.mxu0 0.0
      %4074 = vmatpush1.msra.mxu0 0.0
      %4075 = vmatprep.subr.mxu0 0.0
      %4076 = vmatpush1.msra.mxu0 0.0
      %4077 = vmatprep.subr.mxu0 0.0
      %4078 = vmatpush1.msra.mxu0 0.0
      %4079 = vmatprep.subr.mxu0 0.0
      %4080 = vmatpush1.msra.mxu0 0.0
      %4081 = vmatprep.subr.mxu0 0.0
      %4082 = vmatpush1.msra.mxu0 0.0
      %4083 = vmatprep.subr.mxu0 0.0
      %4084 = vmatpush1.msra.mxu0 0.0
      %4085 = vmatprep.subr.mxu0 0.0
      %4086 = vmatpush1.msra.mxu0 0.0
      %4087 = vmatprep.subr.mxu0 0.0
      %4088 = vmatpush1.msra.mxu0 0.0
      %4089 = vmatprep.subr.mxu0 0.0
      %4090 = vmatpush1.msra.mxu0 0.0
      %4091 = vmatprep.subr.mxu0 0.0
      %4092 = vmatpush1.msra.mxu0 0.0
      %4093 = vmatprep.subr.mxu0 0.0
      %4094 = vmatpush1.msra.mxu0 0.0
      %4095 = vmatprep.subr.mxu0 0.0
      %4096 = vmatpush1.msra.mxu0 0.0
      %4097 = vmatprep.subr.mxu0 0.0
      %4098 = vmatpush1.msra.mxu0 0.0
      %4099 = vmatprep.mubr.f32.mxu0 0.0
      %4100 = vmatmul.mubr.f32.gmra.mrb[0].mxu0 %v4033
      %v4101 = vpop.f32.mrb[0].mxu0
      %v4102 = vadd.f32 0.0, %v4101
      %v4103 = vpop.f32.mrb[0].mxu0
      %4104 = vdwg.mxu0
      %v4106 = vsel %vm1432, %v3957, 0
      %4108 = vmatprep.subr.mxu0 0.0
      %4109 = vmatpush1.msra.mxu0 %v3538
      %4110 = vmatprep.subr.mxu0 0.0
      %4111 = vmatpush1.msra.mxu0 0.0
      %4112 = vmatprep.subr.mxu0 0.0
      %4113 = vmatpush1.msra.mxu0 0.0
      %4114 = vmatprep.subr.mxu0 0.0
      %4115 = vmatpush1.msra.mxu0 0.0
      %4116 = vmatprep.subr.mxu0 0.0
      %4117 = vmatpush1.msra.mxu0 0.0
      %4118 = vmatprep.subr.mxu0 0.0
      %4119 = vmatpush1.msra.mxu0 0.0
      %4120 = vmatprep.subr.mxu0 0.0
      %4121 = vmatpush1.msra.mxu0 0.0
      %4122 = vmatprep.subr.mxu0 0.0
      %4123 = vmatpush1.msra.mxu0 0.0
      %4124 = vmatprep.subr.mxu0 0.0
      %4125 = vmatpush1.msra.mxu0 0.0
      %4126 = vmatprep.subr.mxu0 0.0
      %4127 = vmatpush1.msra.mxu0 0.0
      %4128 = vmatprep.subr.mxu0 0.0
      %4129 = vmatpush1.msra.mxu0 0.0
      %4130 = vmatprep.subr.mxu0 0.0
      %4131 = vmatpush1.msra.mxu0 0.0
      %4132 = vmatprep.subr.mxu0 0.0
      %4133 = vmatpush1.msra.mxu0 0.0
      %4134 = vmatprep.subr.mxu0 0.0
      %4135 = vmatpush1.msra.mxu0 0.0
      %4136 = vmatprep.subr.mxu0 0.0
      %4137 = vmatpush1.msra.mxu0 0.0
      %4138 = vmatprep.subr.mxu0 0.0
      %4139 = vmatpush1.msra.mxu0 0.0
      %4140 = vmatprep.subr.mxu0 0.0
      %4141 = vmatpush1.msra.mxu0 0.0
      %4142 = vmatprep.subr.mxu0 0.0
      %4143 = vmatpush1.msra.mxu0 0.0
      %4144 = vmatprep.subr.mxu0 0.0
      %4145 = vmatpush1.msra.mxu0 0.0
      %4146 = vmatprep.subr.mxu0 0.0
      %4147 = vmatpush1.msra.mxu0 0.0
      %4148 = vmatprep.subr.mxu0 0.0
      %4149 = vmatpush1.msra.mxu0 0.0
      %4150 = vmatprep.subr.mxu0 0.0
      %4151 = vmatpush1.msra.mxu0 0.0
      %4152 = vmatprep.subr.mxu0 0.0
      %4153 = vmatpush1.msra.mxu0 0.0
      %4154 = vmatprep.subr.mxu0 0.0
      %4155 = vmatpush1.msra.mxu0 0.0
      %4156 = vmatprep.subr.mxu0 0.0
      %4157 = vmatpush1.msra.mxu0 0.0
      %4158 = vmatprep.subr.mxu0 0.0
      %4159 = vmatpush1.msra.mxu0 0.0
      %4160 = vmatprep.subr.mxu0 0.0
      %4161 = vmatpush1.msra.mxu0 0.0
      %4162 = vmatprep.subr.mxu0 0.0
      %4163 = vmatpush1.msra.mxu0 0.0
      %4164 = vmatprep.subr.mxu0 0.0
      %4165 = vmatpush1.msra.mxu0 0.0
      %4166 = vmatprep.subr.mxu0 0.0
      %4167 = vmatpush1.msra.mxu0 0.0
      %4168 = vmatprep.subr.mxu0 0.0
      %4169 = vmatpush1.msra.mxu0 0.0
      %4170 = vmatprep.subr.mxu0 0.0
      %4171 = vmatpush1.msra.mxu0 0.0
      %4172 = vmatprep.mubr.f32.mxu0 0.0
      %4173 = vmatmul.mubr.f32.gmra.mrb[0].mxu0 %v4106
      %v4174 = vpop.f32.mrb[0].mxu0
      %v4175 = vadd.f32 0.0, %v4174
      %v4176 = vpop.f32.mrb[0].mxu0
      %4177 = vdwg.mxu0
      %v4179 = vsel %vm1432, %v3958, 0
      %4181 = vmatprep.subr.mxu0 0.0
      %4182 = vmatpush1.msra.mxu0 %v3608
      %4183 = vmatprep.subr.mxu0 0.0
      %4184 = vmatpush1.msra.mxu0 0.0
      %4185 = vmatprep.subr.mxu0 0.0
      %4186 = vmatpush1.msra.mxu0 0.0
      %4187 = vmatprep.subr.mxu0 0.0
      %4188 = vmatpush1.msra.mxu0 0.0
      %4189 = vmatprep.subr.mxu0 0.0
      %4190 = vmatpush1.msra.mxu0 0.0
      %4191 = vmatprep.subr.mxu0 0.0
      %4192 = vmatpush1.msra.mxu0 0.0
      %4193 = vmatprep.subr.mxu0 0.0
      %4194 = vmatpush1.msra.mxu0 0.0
      %4195 = vmatprep.subr.mxu0 0.0
      %4196 = vmatpush1.msra.mxu0 0.0
      %4197 = vmatprep.subr.mxu0 0.0
      %4198 = vmatpush1.msra.mxu0 0.0
      %4199 = vmatprep.subr.mxu0 0.0
      %4200 = vmatpush1.msra.mxu0 0.0
      %4201 = vmatprep.subr.mxu0 0.0
      %4202 = vmatpush1.msra.mxu0 0.0
      %4203 = vmatprep.subr.mxu0 0.0
      %4204 = vmatpush1.msra.mxu0 0.0
      %4205 = vmatprep.subr.mxu0 0.0
      %4206 = vmatpush1.msra.mxu0 0.0
      %4207 = vmatprep.subr.mxu0 0.0
      %4208 = vmatpush1.msra.mxu0 0.0
      %4209 = vmatprep.subr.mxu0 0.0
      %4210 = vmatpush1.msra.mxu0 0.0
      %4211 = vmatprep.subr.mxu0 0.0
      %4212 = vmatpush1.msra.mxu0 0.0
      %4213 = vmatprep.subr.mxu0 0.0
      %4214 = vmatpush1.msra.mxu0 0.0
      %4215 = vmatprep.subr.mxu0 0.0
      %4216 = vmatpush1.msra.mxu0 0.0
      %4217 = vmatprep.subr.mxu0 0.0
      %4218 = vmatpush1.msra.mxu0 0.0
      %4219 = vmatprep.subr.mxu0 0.0
      %4220 = vmatpush1.msra.mxu0 0.0
      %4221 = vmatprep.subr.mxu0 0.0
      %4222 = vmatpush1.msra.mxu0 0.0
      %4223 = vmatprep.subr.mxu0 0.0
      %4224 = vmatpush1.msra.mxu0 0.0
      %4225 = vmatprep.subr.mxu0 0.0
      %4226 = vmatpush1.msra.mxu0 0.0
      %4227 = vmatprep.subr.mxu0 0.0
      %4228 = vmatpush1.msra.mxu0 0.0
      %4229 = vmatprep.subr.mxu0 0.0
      %4230 = vmatpush1.msra.mxu0 0.0
      %4231 = vmatprep.subr.mxu0 0.0
      %4232 = vmatpush1.msra.mxu0 0.0
      %4233 = vmatprep.subr.mxu0 0.0
      %4234 = vmatpush1.msra.mxu0 0.0
      %4235 = vmatprep.subr.mxu0 0.0
      %4236 = vmatpush1.msra.mxu0 0.0
      %4237 = vmatprep.subr.mxu0 0.0
      %4238 = vmatpush1.msra.mxu0 0.0
      %4239 = vmatprep.subr.mxu0 0.0
      %4240 = vmatpush1.msra.mxu0 0.0
      %4241 = vmatprep.subr.mxu0 0.0
      %4242 = vmatpush1.msra.mxu0 0.0
      %4243 = vmatprep.subr.mxu0 0.0
      %4244 = vmatpush1.msra.mxu0 0.0
      %4245 = vmatprep.mubr.f32.mxu0 0.0
      %4246 = vmatmul.mubr.f32.gmra.mrb[0].mxu0 %v4179
      %v4247 = vpop.f32.mrb[0].mxu0
      %v4248 = vadd.f32 0.0, %v4247
      %v4249 = vpop.f32.mrb[0].mxu0
      %4250 = vdwg.mxu0
      %s4251 = scalar_lea.vmem %s5, 32
      %v4252 = vld [vmem:[%s4251] sm:$0xff]
      %v4253 = vld [vmem:[%s4251 + $0x8] sm:$0xff]
      %v4254 = vld [vmem:[%s4251 + $0x10] sm:$0xff]
      %v4255 = vld [vmem:[%s4251 + $0x18] sm:$0xff]
      %v4257 = vsel %vm1432, %v4029, 0
      %4259 = vmatprep.subr.mxu0 0.0
      %4260 = vmatpush1.msra.mxu0 %v4252
      %4261 = vmatprep.subr.mxu0 0.0
      %4262 = vmatpush1.msra.mxu0 0.0
      %4263 = vmatprep.subr.mxu0 0.0
      %4264 = vmatpush1.msra.mxu0 0.0
      %4265 = vmatprep.subr.mxu0 0.0
      %4266 = vmatpush1.msra.mxu0 0.0
      %4267 = vmatprep.subr.mxu0 0.0
      %4268 = vmatpush1.msra.mxu0 0.0
      %4269 = vmatprep.subr.mxu0 0.0
      %4270 = vmatpush1.msra.mxu0 0.0
      %4271 = vmatprep.subr.mxu0 0.0
      %4272 = vmatpush1.msra.mxu0 0.0
      %4273 = vmatprep.subr.mxu0 0.0
      %4274 = vmatpush1.msra.mxu0 0.0
      %4275 = vmatprep.subr.mxu0 0.0
      %4276 = vmatpush1.msra.mxu0 0.0
      %4277 = vmatprep.subr.mxu0 0.0
      %4278 = vmatpush1.msra.mxu0 0.0
      %4279 = vmatprep.subr.mxu0 0.0
      %4280 = vmatpush1.msra.mxu0 0.0
      %4281 = vmatprep.subr.mxu0 0.0
      %4282 = vmatpush1.msra.mxu0 0.0
      %4283 = vmatprep.subr.mxu0 0.0
      %4284 = vmatpush1.msra.mxu0 0.0
      %4285 = vmatprep.subr.mxu0 0.0
      %4286 = vmatpush1.msra.mxu0 0.0
      %4287 = vmatprep.subr.mxu0 0.0
      %4288 = vmatpush1.msra.mxu0 0.0
      %4289 = vmatprep.subr.mxu0 0.0
      %4290 = vmatpush1.msra.mxu0 0.0
      %4291 = vmatprep.subr.mxu0 0.0
      %4292 = vmatpush1.msra.mxu0 0.0
      %4293 = vmatprep.subr.mxu0 0.0
      %4294 = vmatpush1.msra.mxu0 0.0
      %4295 = vmatprep.subr.mxu0 0.0
      %4296 = vmatpush1.msra.mxu0 0.0
      %4297 = vmatprep.subr.mxu0 0.0
      %4298 = vmatpush1.msra.mxu0 0.0
      %4299 = vmatprep.subr.mxu0 0.0
      %4300 = vmatpush1.msra.mxu0 0.0
      %4301 = vmatprep.subr.mxu0 0.0
      %4302 = vmatpush1.msra.mxu0 0.0
      %4303 = vmatprep.subr.mxu0 0.0
      %4304 = vmatpush1.msra.mxu0 0.0
      %4305 = vmatprep.subr.mxu0 0.0
      %4306 = vmatpush1.msra.mxu0 0.0
      %4307 = vmatprep.subr.mxu0 0.0
      %4308 = vmatpush1.msra.mxu0 0.0
      %4309 = vmatprep.subr.mxu0 0.0
      %4310 = vmatpush1.msra.mxu0 0.0
      %4311 = vmatprep.subr.mxu0 0.0
      %4312 = vmatpush1.msra.mxu0 0.0
      %4313 = vmatprep.subr.mxu0 0.0
      %4314 = vmatpush1.msra.mxu0 0.0
      %4315 = vmatprep.subr.mxu0 0.0
      %4316 = vmatpush1.msra.mxu0 0.0
      %4317 = vmatprep.subr.mxu0 0.0
      %4318 = vmatpush1.msra.mxu0 0.0
      %4319 = vmatprep.subr.mxu0 0.0
      %4320 = vmatpush1.msra.mxu0 0.0
      %4321 = vmatprep.subr.mxu0 0.0
      %4322 = vmatpush1.msra.mxu0 0.0
      %4323 = vmatprep.mubr.f32.mxu0 0.0
      %4324 = vmatmul.mubr.f32.gmra.mrb[0].mxu0 %v4257
      %v4325 = vpop.f32.mrb[0].mxu0
      %v4326 = vadd.f32 0.0, %v4325
      %v4327 = vpop.f32.mrb[0].mxu0
      %4328 = vdwg.mxu0
      %v4330 = vsel %vm1432, %v4102, 0
      %4332 = vmatprep.subr.mxu0 0.0
      %4333 = vmatpush1.msra.mxu0 %v4253
      %4334 = vmatprep.subr.mxu0 0.0
      %4335 = vmatpush1.msra.mxu0 0.0
      %4336 = vmatprep.subr.mxu0 0.0
      %4337 = vmatpush1.msra.mxu0 0.0
      %4338 = vmatprep.subr.mxu0 0.0
      %4339 = vmatpush1.msra.mxu0 0.0
      %4340 = vmatprep.subr.mxu0 0.0
      %4341 = vmatpush1.msra.mxu0 0.0
      %4342 = vmatprep.subr.mxu0 0.0
      %4343 = vmatpush1.msra.mxu0 0.0
      %4344 = vmatprep.subr.mxu0 0.0
      %4345 = vmatpush1.msra.mxu0 0.0
      %4346 = vmatprep.subr.mxu0 0.0
      %4347 = vmatpush1.msra.mxu0 0.0
      %4348 = vmatprep.subr.mxu0 0.0
      %4349 = vmatpush1.msra.mxu0 0.0
      %4350 = vmatprep.subr.mxu0 0.0
      %4351 = vmatpush1.msra.mxu0 0.0
      %4352 = vmatprep.subr.mxu0 0.0
      %4353 = vmatpush1.msra.mxu0 0.0
      %4354 = vmatprep.subr.mxu0 0.0
      %4355 = vmatpush1.msra.mxu0 0.0
      %4356 = vmatprep.subr.mxu0 0.0
      %4357 = vmatpush1.msra.mxu0 0.0
      %4358 = vmatprep.subr.mxu0 0.0
      %4359 = vmatpush1.msra.mxu0 0.0
      %4360 = vmatprep.subr.mxu0 0.0
      %4361 = vmatpush1.msra.mxu0 0.0
      %4362 = vmatprep.subr.mxu0 0.0
      %4363 = vmatpush1.msra.mxu0 0.0
      %4364 = vmatprep.subr.mxu0 0.0
      %4365 = vmatpush1.msra.mxu0 0.0
      %4366 = vmatprep.subr.mxu0 0.0
      %4367 = vmatpush1.msra.mxu0 0.0
      %4368 = vmatprep.subr.mxu0 0.0
      %4369 = vmatpush1.msra.mxu0 0.0
      %4370 = vmatprep.subr.mxu0 0.0
      %4371 = vmatpush1.msra.mxu0 0.0
      %4372 = vmatprep.subr.mxu0 0.0
      %4373 = vmatpush1.msra.mxu0 0.0
      %4374 = vmatprep.subr.mxu0 0.0
      %4375 = vmatpush1.msra.mxu0 0.0
      %4376 = vmatprep.subr.mxu0 0.0
      %4377 = vmatpush1.msra.mxu0 0.0
      %4378 = vmatprep.subr.mxu0 0.0
      %4379 = vmatpush1.msra.mxu0 0.0
      %4380 = vmatprep.subr.mxu0 0.0
      %4381 = vmatpush1.msra.mxu0 0.0
      %4382 = vmatprep.subr.mxu0 0.0
      %4383 = vmatpush1.msra.mxu0 0.0
      %4384 = vmatprep.subr.mxu0 0.0
      %4385 = vmatpush1.msra.mxu0 0.0
      %4386 = vmatprep.subr.mxu0 0.0
      %4387 = vmatpush1.msra.mxu0 0.0
      %4388 = vmatprep.subr.mxu0 0.0
      %4389 = vmatpush1.msra.mxu0 0.0
      %4390 = vmatprep.subr.mxu0 0.0
      %4391 = vmatpush1.msra.mxu0 0.0
      %4392 = vmatprep.subr.mxu0 0.0
      %4393 = vmatpush1.msra.mxu0 0.0
      %4394 = vmatprep.subr.mxu0 0.0
      %4395 = vmatpush1.msra.mxu0 0.0
      %4396 = vmatprep.mubr.f32.mxu0 0.0
      %4397 = vmatmul.mubr.f32.gmra.mrb[0].mxu0 %v4330
      %v4398 = vpop.f32.mrb[0].mxu0
      %v4399 = vadd.f32 0.0, %v4398
      %v4400 = vpop.f32.mrb[0].mxu0
      %4401 = vdwg.mxu0
      %v4403 = vsel %vm1432, %v4175, 0
      %4405 = vmatprep.subr.mxu0 0.0
      %4406 = vmatpush1.msra.mxu0 %v4254
      %4407 = vmatprep.subr.mxu0 0.0
      %4408 = vmatpush1.msra.mxu0 0.0
      %4409 = vmatprep.subr.mxu0 0.0
      %4410 = vmatpush1.msra.mxu0 0.0
      %4411 = vmatprep.subr.mxu0 0.0
      %4412 = vmatpush1.msra.mxu0 0.0
      %4413 = vmatprep.subr.mxu0 0.0
      %4414 = vmatpush1.msra.mxu0 0.0
      %4415 = vmatprep.subr.mxu0 0.0
      %4416 = vmatpush1.msra.mxu0 0.0
      %4417 = vmatprep.subr.mxu0 0.0
      %4418 = vmatpush1.msra.mxu0 0.0
      %4419 = vmatprep.subr.mxu0 0.0
      %4420 = vmatpush1.msra.mxu0 0.0
      %4421 = vmatprep.subr.mxu0 0.0
      %4422 = vmatpush1.msra.mxu0 0.0
      %4423 = vmatprep.subr.mxu0 0.0
      %4424 = vmatpush1.msra.mxu0 0.0
      %4425 = vmatprep.subr.mxu0 0.0
      %4426 = vmatpush1.msra.mxu0 0.0
      %4427 = vmatprep.subr.mxu0 0.0
      %4428 = vmatpush1.msra.mxu0 0.0
      %4429 = vmatprep.subr.mxu0 0.0
      %4430 = vmatpush1.msra.mxu0 0.0
      %4431 = vmatprep.subr.mxu0 0.0
      %4432 = vmatpush1.msra.mxu0 0.0
      %4433 = vmatprep.subr.mxu0 0.0
      %4434 = vmatpush1.msra.mxu0 0.0
      %4435 = vmatprep.subr.mxu0 0.0
      %4436 = vmatpush1.msra.mxu0 0.0
      %4437 = vmatprep.subr.mxu0 0.0
      %4438 = vmatpush1.msra.mxu0 0.0
      %4439 = vmatprep.subr.mxu0 0.0
      %4440 = vmatpush1.msra.mxu0 0.0
      %4441 = vmatprep.subr.mxu0 0.0
      %4442 = vmatpush1.msra.mxu0 0.0
      %4443 = vmatprep.subr.mxu0 0.0
      %4444 = vmatpush1.msra.mxu0 0.0
      %4445 = vmatprep.subr.mxu0 0.0
      %4446 = vmatpush1.msra.mxu0 0.0
      %4447 = vmatprep.subr.mxu0 0.0
      %4448 = vmatpush1.msra.mxu0 0.0
      %4449 = vmatprep.subr.mxu0 0.0
      %4450 = vmatpush1.msra.mxu0 0.0
      %4451 = vmatprep.subr.mxu0 0.0
      %4452 = vmatpush1.msra.mxu0 0.0
      %4453 = vmatprep.subr.mxu0 0.0
      %4454 = vmatpush1.msra.mxu0 0.0
      %4455 = vmatprep.subr.mxu0 0.0
      %4456 = vmatpush1.msra.mxu0 0.0
      %4457 = vmatprep.subr.mxu0 0.0
      %4458 = vmatpush1.msra.mxu0 0.0
      %4459 = vmatprep.subr.mxu0 0.0
      %4460 = vmatpush1.msra.mxu0 0.0
      %4461 = vmatprep.subr.mxu0 0.0
      %4462 = vmatpush1.msra.mxu0 0.0
      %4463 = vmatprep.subr.mxu0 0.0
      %4464 = vmatpush1.msra.mxu0 0.0
      %4465 = vmatprep.subr.mxu0 0.0
      %4466 = vmatpush1.msra.mxu0 0.0
      %4467 = vmatprep.subr.mxu0 0.0
      %4468 = vmatpush1.msra.mxu0 0.0
      %4469 = vmatprep.mubr.f32.mxu0 0.0
      %4470 = vmatmul.mubr.f32.gmra.mrb[0].mxu0 %v4403
      %v4471 = vpop.f32.mrb[0].mxu0
      %v4472 = vadd.f32 0.0, %v4471
      %v4473 = vpop.f32.mrb[0].mxu0
      %4474 = vdwg.mxu0
      %v4476 = vsel %vm1432, %v4248, 0
      %4478 = vmatprep.subr.mxu0 0.0
      %4479 = vmatpush1.msra.mxu0 %v4255
      %4480 = vmatprep.subr.mxu0 0.0
      %4481 = vmatpush1.msra.mxu0 0.0
      %4482 = vmatprep.subr.mxu0 0.0
      %4483 = vmatpush1.msra.mxu0 0.0
      %4484 = vmatprep.subr.mxu0 0.0
      %4485 = vmatpush1.msra.mxu0 0.0
      %4486 = vmatprep.subr.mxu0 0.0
      %4487 = vmatpush1.msra.mxu0 0.0
      %4488 = vmatprep.subr.mxu0 0.0
      %4489 = vmatpush1.msra.mxu0 0.0
      %4490 = vmatprep.subr.mxu0 0.0
      %4491 = vmatpush1.msra.mxu0 0.0
      %4492 = vmatprep.subr.mxu0 0.0
      %4493 = vmatpush1.msra.mxu0 0.0
      %4494 = vmatprep.subr.mxu0 0.0
      %4495 = vmatpush1.msra.mxu0 0.0
      %4496 = vmatprep.subr.mxu0 0.0
      %4497 = vmatpush1.msra.mxu0 0.0
      %4498 = vmatprep.subr.mxu0 0.0
      %4499 = vmatpush1.msra.mxu0 0.0
      %4500 = vmatprep.subr.mxu0 0.0
      %4501 = vmatpush1.msra.mxu0 0.0
      %4502 = vmatprep.subr.mxu0 0.0
      %4503 = vmatpush1.msra.mxu0 0.0
      %4504 = vmatprep.subr.mxu0 0.0
      %4505 = vmatpush1.msra.mxu0 0.0
      %4506 = vmatprep.subr.mxu0 0.0
      %4507 = vmatpush1.msra.mxu0 0.0
      %4508 = vmatprep.subr.mxu0 0.0
      %4509 = vmatpush1.msra.mxu0 0.0
      %4510 = vmatprep.subr.mxu0 0.0
      %4511 = vmatpush1.msra.mxu0 0.0
      %4512 = vmatprep.subr.mxu0 0.0
      %4513 = vmatpush1.msra.mxu0 0.0
      %4514 = vmatprep.subr.mxu0 0.0
      %4515 = vmatpush1.msra.mxu0 0.0
      %4516 = vmatprep.subr.mxu0 0.0
      %4517 = vmatpush1.msra.mxu0 0.0
      %4518 = vmatprep.subr.mxu0 0.0
      %4519 = vmatpush1.msra.mxu0 0.0
      %4520 = vmatprep.subr.mxu0 0.0
      %4521 = vmatpush1.msra.mxu0 0.0
      %4522 = vmatprep.subr.mxu0 0.0
      %4523 = vmatpush1.msra.mxu0 0.0
      %4524 = vmatprep.subr.mxu0 0.0
      %4525 = vmatpush1.msra.mxu0 0.0
      %4526 = vmatprep.subr.mxu0 0.0
      %4527 = vmatpush1.msra.mxu0 0.0
      %4528 = vmatprep.subr.mxu0 0.0
      %4529 = vmatpush1.msra.mxu0 0.0
      %4530 = vmatprep.subr.mxu0 0.0
      %4531 = vmatpush1.msra.mxu0 0.0
      %4532 = vmatprep.subr.mxu0 0.0
      %4533 = vmatpush1.msra.mxu0 0.0
      %4534 = vmatprep.subr.mxu0 0.0
      %4535 = vmatpush1.msra.mxu0 0.0
      %4536 = vmatprep.subr.mxu0 0.0
      %4537 = vmatpush1.msra.mxu0 0.0
      %4538 = vmatprep.subr.mxu0 0.0
      %4539 = vmatpush1.msra.mxu0 0.0
      %4540 = vmatprep.subr.mxu0 0.0
      %4541 = vmatpush1.msra.mxu0 0.0
      %4542 = vmatprep.mubr.f32.mxu0 0.0
      %4543 = vmatmul.mubr.f32.gmra.mrb[0].mxu0 %v4476
      %v4544 = vpop.f32.mrb[0].mxu0
      %v4545 = vadd.f32 0.0, %v4544
      %v4546 = vpop.f32.mrb[0].mxu0
      %4547 = vdwg.mxu0
      %v4548 = vadd.f32 %v4326, %v4399
      %v4549 = vadd.f32 %v4548, %v4472
      %v4550 = vadd.f32 %v4549, %v4545
      %v4551 = vadd.f32 %v2561, %v4550
      %s4552 = scalar_lea.vmem %s6, 1
      %v4553 = vld [vmem:[%s4552] sm:$0x1]
      %v4554 = vmul.f32 %v4551, %v4551
      %4555 = vadd.xlane.f32.xlu0 %v4554
      %v4556 = vpop.xlane.xlu0 %4555
      %v4557 = vmul.f32 %v4556, 0.03125
      %v4558 = vadd.f32 %v4557, 1e-06
      %v4559 = vrsqrt.pop %v4558
      %v4560 = vmul.f32 %v4551, %v4559
      %v4562 = vlaneseq
      %v4563 = vshrl.u32 %v4562, 7
      %v4564 = vsub.s32 0, %v4563
      %v4565 = vrot.slane %v4553, %v4564
      %v4567 = vmul.f32 %v4560, %v4565
      %s4568 = scalar_lea.vmem %s7, 128
      %v4569 = vld [vmem:[%s4568] sm:$0xff]
      %v4570 = vld [vmem:[%s4568 + $0x8] sm:$0xff]
      %v4571 = vld [vmem:[%s4568 + $0x10] sm:$0xff]
      %v4572 = vld [vmem:[%s4568 + $0x18] sm:$0xff]
      %v4573 = vld [vmem:[%s4568 + $0x20] sm:$0xff]
      %v4574 = vld [vmem:[%s4568 + $0x28] sm:$0xff]
      %v4575 = vld [vmem:[%s4568 + $0x30] sm:$0xff]
      %v4576 = vld [vmem:[%s4568 + $0x38] sm:$0xff]
      %v4577 = vld [vmem:[%s4568 + $0x40] sm:$0xff]
      %v4578 = vld [vmem:[%s4568 + $0x48] sm:$0xff]
      %v4579 = vld [vmem:[%s4568 + $0x50] sm:$0xff]
      %v4580 = vld [vmem:[%s4568 + $0x58] sm:$0xff]
      %v4581 = vld [vmem:[%s4568 + $0x60] sm:$0xff]
      %v4582 = vld [vmem:[%s4568 + $0x68] sm:$0xff]
      %v4583 = vld [vmem:[%s4568 + $0x70] sm:$0xff]
      %v4584 = vld [vmem:[%s4568 + $0x78] sm:$0xff]
      %4585 = vmatprep.subr.mxu0 0.0
      %4586 = vmatpush1.msra.mxu0 %v4569
      %4587 = vmatprep.subr.mxu0 0.0
      %4588 = vmatpush1.msra.mxu0 %v4570
      %4589 = vmatprep.subr.mxu0 0.0
      %4590 = vmatpush1.msra.mxu0 %v4571
      %4591 = vmatprep.subr.mxu0 0.0
      %4592 = vmatpush1.msra.mxu0 %v4572
      %4593 = vmatprep.subr.mxu0 0.0
      %4594 = vmatpush1.msra.mxu0 %v4573
      %4595 = vmatprep.subr.mxu0 0.0
      %4596 = vmatpush1.msra.mxu0 %v4574
      %4597 = vmatprep.subr.mxu0 0.0
      %4598 = vmatpush1.msra.mxu0 %v4575
      %4599 = vmatprep.subr.mxu0 0.0
      %4600 = vmatpush1.msra.mxu0 %v4576
      %4601 = vmatprep.subr.mxu0 0.0
      %4602 = vmatpush1.msra.mxu0 %v4577
      %4603 = vmatprep.subr.mxu0 0.0
      %4604 = vmatpush1.msra.mxu0 %v4578
      %4605 = vmatprep.subr.mxu0 0.0
      %4606 = vmatpush1.msra.mxu0 %v4579
      %4607 = vmatprep.subr.mxu0 0.0
      %4608 = vmatpush1.msra.mxu0 %v4580
      %4609 = vmatprep.subr.mxu0 0.0
      %4610 = vmatpush1.msra.mxu0 %v4581
      %4611 = vmatprep.subr.mxu0 0.0
      %4612 = vmatpush1.msra.mxu0 %v4582
      %4613 = vmatprep.subr.mxu0 0.0
      %4614 = vmatpush1.msra.mxu0 %v4583
      %4615 = vmatprep.subr.mxu0 0.0
      %4616 = vmatpush1.msra.mxu0 %v4584
      %4617 = vmatprep.subr.mxu0 0.0
      %4618 = vmatpush1.msra.mxu0 0.0
      %4619 = vmatprep.subr.mxu0 0.0
      %4620 = vmatpush1.msra.mxu0 0.0
      %4621 = vmatprep.subr.mxu0 0.0
      %4622 = vmatpush1.msra.mxu0 0.0
      %4623 = vmatprep.subr.mxu0 0.0
      %4624 = vmatpush1.msra.mxu0 0.0
      %4625 = vmatprep.subr.mxu0 0.0
      %4626 = vmatpush1.msra.mxu0 0.0
      %4627 = vmatprep.subr.mxu0 0.0
      %4628 = vmatpush1.msra.mxu0 0.0
      %4629 = vmatprep.subr.mxu0 0.0
      %4630 = vmatpush1.msra.mxu0 0.0
      %4631 = vmatprep.subr.mxu0 0.0
      %4632 = vmatpush1.msra.mxu0 0.0
      %4633 = vmatprep.subr.mxu0 0.0
      %4634 = vmatpush1.msra.mxu0 0.0
      %4635 = vmatprep.subr.mxu0 0.0
      %4636 = vmatpush1.msra.mxu0 0.0
      %4637 = vmatprep.subr.mxu0 0.0
      %4638 = vmatpush1.msra.mxu0 0.0
      %4639 = vmatprep.subr.mxu0 0.0
      %4640 = vmatpush1.msra.mxu0 0.0
      %4641 = vmatprep.subr.mxu0 0.0
      %4642 = vmatpush1.msra.mxu0 0.0
      %4643 = vmatprep.subr.mxu0 0.0
      %4644 = vmatpush1.msra.mxu0 0.0
      %4645 = vmatprep.subr.mxu0 0.0
      %4646 = vmatpush1.msra.mxu0 0.0
      %4647 = vmatprep.subr.mxu0 0.0
      %4648 = vmatpush1.msra.mxu0 0.0
      %4649 = vmatprep.mubr.f32.mxu0 0.0
      %4650 = vmatmul.mubr.f32.gmra.mrb[0].mxu0 %v4567
      %v4651 = vpop.f32.mrb[0].mxu0
      %v4652 = vadd.f32 0.0, %v4651
      %v4653 = vpop.f32.mrb[0].mxu0
      %4654 = vdwg.mxu0
      %v4655 = vmax.f32 %v4652, 0.0
      %s4656 = scalar_lea.vmem %s8, 128
      %v4657 = vld [vmem:[%s4656] sm:$0xff]
      %v4658 = vld [vmem:[%s4656 + $0x8] sm:$0xff]
      %v4659 = vld [vmem:[%s4656 + $0x10] sm:$0xff]
      %v4660 = vld [vmem:[%s4656 + $0x18] sm:$0xff]
      %v4661 = vld [vmem:[%s4656 + $0x20] sm:$0xff]
      %v4662 = vld [vmem:[%s4656 + $0x28] sm:$0xff]
      %v4663 = vld [vmem:[%s4656 + $0x30] sm:$0xff]
      %v4664 = vld [vmem:[%s4656 + $0x38] sm:$0xff]
      %v4665 = vld [vmem:[%s4656 + $0x40] sm:$0xff]
      %v4666 = vld [vmem:[%s4656 + $0x48] sm:$0xff]
      %v4667 = vld [vmem:[%s4656 + $0x50] sm:$0xff]
      %v4668 = vld [vmem:[%s4656 + $0x58] sm:$0xff]
      %v4669 = vld [vmem:[%s4656 + $0x60] sm:$0xff]
      %v4670 = vld [vmem:[%s4656 + $0x68] sm:$0xff]
      %v4671 = vld [vmem:[%s4656 + $0x70] sm:$0xff]
      %v4672 = vld [vmem:[%s4656 + $0x78] sm:$0xff]
      %4673 = vmatprep.subr.mxu0 0.0
      %4674 = vmatpush1.msra.mxu0 %v4657
      %4675 = vmatprep.subr.mxu0 0.0
      %4676 = vmatpush1.msra.mxu0 %v4658
      %4677 = vmatprep.subr.mxu0 0.0
      %4678 = vmatpush1.msra.mxu0 %v4659
      %4679 = vmatprep.subr.mxu0 0.0
      %4680 = vmatpush1.msra.mxu0 %v4660
      %4681 = vmatprep.subr.mxu0 0.0
      %4682 = vmatpush1.msra.mxu0 %v4661
      %4683 = vmatprep.subr.mxu0 0.0
      %4684 = vmatpush1.msra.mxu0 %v4662
      %4685 = vmatprep.subr.mxu0 0.0
      %4686 = vmatpush1.msra.mxu0 %v4663
      %4687 = vmatprep.subr.mxu0 0.0
      %4688 = vmatpush1.msra.mxu0 %v4664
      %4689 = vmatprep.subr.mxu0 0.0
      %4690 = vmatpush1.msra.mxu0 %v4665
      %4691 = vmatprep.subr.mxu0 0.0
      %4692 = vmatpush1.msra.mxu0 %v4666
      %4693 = vmatprep.subr.mxu0 0.0
      %4694 = vmatpush1.msra.mxu0 %v4667
      %4695 = vmatprep.subr.mxu0 0.0
      %4696 = vmatpush1.msra.mxu0 %v4668
      %4697 = vmatprep.subr.mxu0 0.0
      %4698 = vmatpush1.msra.mxu0 %v4669
      %4699 = vmatprep.subr.mxu0 0.0
      %4700 = vmatpush1.msra.mxu0 %v4670
      %4701 = vmatprep.subr.mxu0 0.0
      %4702 = vmatpush1.msra.mxu0 %v4671
      %4703 = vmatprep.subr.mxu0 0.0
      %4704 = vmatpush1.msra.mxu0 %v4672
      %4705 = vmatprep.subr.mxu0 0.0
      %4706 = vmatpush1.msra.mxu0 0.0
      %4707 = vmatprep.subr.mxu0 0.0
      %4708 = vmatpush1.msra.mxu0 0.0
      %4709 = vmatprep.subr.mxu0 0.0
      %4710 = vmatpush1.msra.mxu0 0.0
      %4711 = vmatprep.subr.mxu0 0.0
      %4712 = vmatpush1.msra.mxu0 0.0
      %4713 = vmatprep.subr.mxu0 0.0
      %4714 = vmatpush1.msra.mxu0 0.0
      %4715 = vmatprep.subr.mxu0 0.0
      %4716 = vmatpush1.msra.mxu0 0.0
      %4717 = vmatprep.subr.mxu0 0.0
      %4718 = vmatpush1.msra.mxu0 0.0
      %4719 = vmatprep.subr.mxu0 0.0
      %4720 = vmatpush1.msra.mxu0 0.0
      %4721 = vmatprep.subr.mxu0 0.0
      %4722 = vmatpush1.msra.mxu0 0.0
      %4723 = vmatprep.subr.mxu0 0.0
      %4724 = vmatpush1.msra.mxu0 0.0
      %4725 = vmatprep.subr.mxu0 0.0
      %4726 = vmatpush1.msra.mxu0 0.0
      %4727 = vmatprep.subr.mxu0 0.0
      %4728 = vmatpush1.msra.mxu0 0.0
      %4729 = vmatprep.subr.mxu0 0.0
      %4730 = vmatpush1.msra.mxu0 0.0
      %4731 = vmatprep.subr.mxu0 0.0
      %4732 = vmatpush1.msra.mxu0 0.0
      %4733 = vmatprep.subr.mxu0 0.0
      %4734 = vmatpush1.msra.mxu0 0.0
      %4735 = vmatprep.subr.mxu0 0.0
      %4736 = vmatpush1.msra.mxu0 0.0
      %4737 = vmatprep.mubr.f32.mxu0 0.0
      %4738 = vmatmul.mubr.f32.gmra.mrb[0].mxu0 %v4655
      %v4739 = vpop.f32.mrb[0].mxu0
      %v4740 = vadd.f32 0.0, %v4739
      %v4741 = vpop.f32.mrb[0].mxu0
      %4742 = vdwg.mxu0
      %v4743 = vadd.f32 %v4551, %v4740
      %v4744 = vld [vmem:[%s9] sm:$0x1]
      %v4745 = vmul.f32 %v4743, %v4743
      %4746 = vadd.xlane.f32.xlu0 %v4745
      %v4747 = vpop.xlane.xlu0 %4746
      %v4748 = vmul.f32 %v4747, 0.03125
      %v4749 = vadd.f32 %v4748, 1e-06
      %v4750 = vrsqrt.pop %v4749
      %v4751 = vmul.f32 %v4743, %v4750
      %v4753 = vlaneseq
      %v4754 = vshrl.u32 %v4753, 7
      %v4755 = vsub.s32 0, %v4754
      %v4756 = vrot.slane %v4744, %v4755
      %v4758 = vmul.f32 %v4751, %v4756
      %4759 = vst [vmem:[%s368] sm:$0xff] %v4758
      %p4760 = scmp.lt.s32.totalorder %s21, 1
      %s4761 = scalar_select %p4760, %s21, 1
      %s4762 = smul.addr %s4761, 8
      %s4763 = scalar_lea.vmem %s10, %s4762
      // Predicated region
      $region61: #{t5_encoder.1} parent=59 // pred_check
        %p4764 = pneg %p259
      $region62: #{t5_encoder.1} parent=59 // pred_check_branch
        %4766 = sbr.rel (%p4764) target = $region64
      $region63: #{t5_encoder.1} parent=59 // pred_region
        _
      $region64: #{t5_encoder.1} parent=59 // pred_fallthru
        _
    $region60: #{t5_encoder.1} parent=5 // pred_fallthru
      _
    %p4767 = scmp.le.s32.totalorder 2, %s16
    // Predicated region
    $region65: #{t5_encoder.1} parent=5 // pred_check
      %p4768 = pneg %p4767
    $region66: #{t5_encoder.1} parent=5 // pred_check_branch
      %4770 = sbr.rel (%p4768) target = $region68
    $region67: #{t5_encoder.1} parent=5 // pred_region
      %s4771 = ssub.s32 %s16, 2
      // Predicated region
      $region69: #{t5_encoder.1} parent=67 // pred_check
        %p4772 = pneg %p265
      $region70: #{t5_encoder.1} parent=67 // pred_check_branch
        %4774 = sbr.rel (%p4772) target = $region72
      $region71: #{t5_encoder.1} parent=67 // pred_region
        %p4775 = scmp.lt.s32.totalorder %s22, 1
        %s4776 = scalar_select %p4775, %s22, 1
        %s4777 = smul.addr %s4776, 8
        %s4778 = scalar_lea.vmem %s10, %s4777
      $region72: #{t5_encoder.1} parent=67 // pred_fallthru
        _
    $region68: #{t5_encoder.1} parent=5 // pred_fallthru
      _
  $region6: #{t5_encoder.1} parent=0 // loop_footer
    %s20 = sadd.s32 1, %s16
  $region7: #{t5_encoder.1} parent=0 // loop_footer_branch
    %15 = sbr.rel target = $region3
  $region8: #{t5_encoder.1} parent=0 // loop_exit
    _

</llo_original>
